<compile_context>
chip_gen: v7x
topology: tpu7x:2x2x1
jax: 0.10.0
libtpu: 0.0.40
codegen_flags: <defaults>
</compile_context>

<pallas_src>
import functools

import jax
import jax.numpy as jnp
from jax.experimental import pallas as pl
from jax.experimental.pallas import tpu as pltpu


# -----------------------------------------------------------------------------
# Single fused kernel: in-kernel embedding/input projection + biLSTM recurrence
# (both queries, both directions) + cosine(dim=1) + Linear(2H->64) + Linear(64->C)
# + sigmoid.  Only the (B, C) result is ever stored to HBM.
# -----------------------------------------------------------------------------
def _lstm_qa_kernel(tok0_ref, tok1_ref, gtab_ref, whhf_ref, whhb_ref,
                    w1_ref, b1_ref, w2_ref, b2_ref, out_ref,
                    *, seq_len, batch, hidden, vocab_pad):
    L, B, H, VP = seq_len, batch, hidden, vocab_pad
    H4 = 4 * H

    gtab = gtab_ref[...]                    # (VP, 8H): emb@Wih + (b_ih+b_hh) folded in
    whh_f = whhf_ref[...]                   # (H, 4H)
    whh_b = whhb_ref[...]                   # (H, 4H)
    ids0 = tok0_ref[...]                    # (B, L) int32
    ids1 = tok1_ref[...]

    # --- In-kernel embedding + input projection --------------------------------
    # One-hot (B, VP) @ gtab per (query, timestep).  Independent of the recurrence,
    # so these MXU pushes schedule off the serial h@Whh chain.
    vocab_iota = jax.lax.broadcasted_iota(jnp.int32, (B, VP), 1)

    def gate_inputs(ids, t):
        onehot = (vocab_iota == ids[:, t:t + 1]).astype(jnp.float32)   # (B, VP)
        return jnp.dot(onehot, gtab, preferred_element_type=jnp.float32)  # (B, 8H)

    gx0 = [gate_inputs(ids0, t) for t in range(L)]   # query 0, all timesteps
    gx1 = [gate_inputs(ids1, t) for t in range(L)]   # query 1, all timesteps

    # --- LSTM cell --------------------------------------------------------------
    def cell(gates, c):                     # gates (B, 4H), PyTorch order i,f,g,o
        # One sigmoid + one tanh over the full 128-lane gate vreg, then slice bands
        # (exact sigmoid: approx reciprocal error would compound through 8 steps).
        sig = 1.0 / (1.0 + jnp.exp(-gates))
        th = jnp.tanh(gates)
        i_g = sig[:, 0 * H:1 * H]
        f_g = sig[:, 1 * H:2 * H]
        g_g = th[:, 2 * H:3 * H]
        o_g = sig[:, 3 * H:4 * H]
        c_new = f_g * c + i_g * g_g
        h_new = o_g * jnp.tanh(c_new)
        return h_new, c_new

    # --- Recurrence: separate (h, c) per query and per direction ----------------
    z = jnp.zeros((B, H), jnp.float32)
    h0f = c0f = h0b = c0b = z               # query 0: forward / backward
    h1f = c1f = h1b = c1b = z               # query 1: forward / backward
    dot_f = dot_b = z                       # online sum_t o0[t]*o1[t]
    sq0f = sq0b = sq1f = sq1b = z           # online sum_t o[t]^2

    for t in range(L):                      # static unroll; only h@Whh is serial
        gh0f = jnp.dot(h0f, whh_f, preferred_element_type=jnp.float32)
        gh0b = jnp.dot(h0b, whh_b, preferred_element_type=jnp.float32)
        gh1f = jnp.dot(h1f, whh_f, preferred_element_type=jnp.float32)
        gh1b = jnp.dot(h1b, whh_b, preferred_element_type=jnp.float32)

        # Forward direction consumes input position t, backward consumes L-1-t.
        h0f, c0f = cell(gx0[t][:, :H4] + gh0f, c0f)
        h0b, c0b = cell(gx0[L - 1 - t][:, H4:] + gh0b, c0b)
        h1f, c1f = cell(gx1[t][:, :H4] + gh1f, c1f)
        h1b, c1b = cell(gx1[L - 1 - t][:, H4:] + gh1b, c1b)

        # Both queries share the same sequence position at every iteration, so the
        # elementwise products align with the per-position cosine reduction (dim=1).
        dot_f = dot_f + h0f * h1f
        dot_b = dot_b + h0b * h1b
        sq0f = sq0f + h0f * h0f
        sq0b = sq0b + h0b * h0b
        sq1f = sq1f + h1f * h1f
        sq1b = sq1b + h1b * h1b

    # --- Cosine + head -----------------------------------------------------------
    eps = 1e-8
    num = jnp.concatenate([dot_f, dot_b], axis=1)                       # (B, 2H)
    den = (jnp.concatenate([sq0f, sq0b], axis=1) *
           jnp.concatenate([sq1f, sq1b], axis=1))
    # dot / max(||a||*||b||, eps)  ==  dot * rsqrt(max(||a||^2*||b||^2, eps^2))
    cos = num * jax.lax.rsqrt(jnp.maximum(den, eps * eps))              # (B, 2H)

    y = jnp.dot(cos, w1_ref[...], preferred_element_type=jnp.float32) + b1_ref[...]
    out = jnp.dot(y, w2_ref[...], preferred_element_type=jnp.float32) + b2_ref[...]
    out_ref[...] = 1.0 / (1.0 + jnp.exp(-out))                          # (B, C)


def lstm_qa_fused(tok0, tok1, gtab, whh_f, whh_b, w1, b1, w2, b2):
    B, L = tok0.shape
    H = whh_f.shape[0]
    C = w2.shape[1]
    VP = gtab.shape[0]
    kernel = functools.partial(_lstm_qa_kernel,
                               seq_len=L, batch=B, hidden=H, vocab_pad=VP)
    vmem = pl.BlockSpec(memory_space=pltpu.MemorySpace.VMEM)
    return pl.pallas_call(
        kernel,
        out_shape=jax.ShapeDtypeStruct((B, C), jnp.float32),
        in_specs=[vmem] * 9,          # whole arrays (<0.5 MiB) resident in VMEM
        out_specs=vmem,               # no grid: nothing to pipeline
    )(tok0, tok1, gtab, whh_f, whh_b, w1, b1, w2, b2)


# -----------------------------------------------------------------------------
# Parameters (deterministic, synthetic), stored in the fused layouts the kernel
# consumes.  The embedding and the LSTM input projection (+ both biases) are
# algebraically folded into one table: gtab[v] = emb[v] @ [Wih_f^T|Wih_b^T] + b.
# -----------------------------------------------------------------------------
def init_params(key, vocab_size, hidden_size, embedding_size, n_classes):
    E, H, C, V = embedding_size, hidden_size, n_classes, vocab_size
    VP = ((V + 127) // 128) * 128           # pad vocab rows to the MXU/lane width
    keys = jax.random.split(key, 13)
    s_lstm = 1.0 / float(H) ** 0.5
    s_l1 = 1.0 / float(2 * H) ** 0.5
    s_l2 = 1.0 / float(64) ** 0.5

    def u(k, shape, scale):
        return jax.random.uniform(k, shape, jnp.float32, -scale, scale)

    emb = jax.random.normal(keys[0], (V, E), jnp.float32)
    emb = emb.at[0].set(0.0)                # padding_idx=0 -> zero embedding row

    wih_f = u(keys[1], (E, 4 * H), s_lstm)  # pre-transposed: x @ W
    whh_f = u(keys[2], (H, 4 * H), s_lstm)
    b_f = u(keys[3], (1, 4 * H), s_lstm) + u(keys[4], (1, 4 * H), s_lstm)  # b_ih+b_hh
    wih_b = u(keys[5], (E, 4 * H), s_lstm)
    whh_b = u(keys[6], (H, 4 * H), s_lstm)
    b_b = u(keys[7], (1, 4 * H), s_lstm) + u(keys[8], (1, 4 * H), s_lstm)

    gtab = (emb @ jnp.concatenate([wih_f, wih_b], axis=1)
            + jnp.concatenate([b_f, b_b], axis=1))                    # (V, 8H)
    gtab = jnp.zeros((VP, 8 * H), jnp.float32).at[:V].set(gtab)       # (VP, 8H)

    return dict(
        gtab=gtab,
        whh_f=whh_f, whh_b=whh_b,
        w1=u(keys[9], (2 * H, 64), s_l1), b1=u(keys[10], (1, 64), s_l1),
        w2=u(keys[11], (64, C), s_l2), b2=u(keys[12], (1, C), s_l2),
    )


@jax.jit
def lstm_qa_forward(params, tok0, tok1):
    # Single dispatch: no embedding gather / transpose / reshape glue — everything
    # (including the embedding lookup) happens inside the Pallas kernel.
    return lstm_qa_fused(tok0, tok1, params["gtab"],
                         params["whh_f"], params["whh_b"],
                         params["w1"], params["b1"], params["w2"], params["b2"])


if __name__ == "__main__":
    VOCAB, HIDDEN, EMB, N_CLASSES = 50, 32, 64, 3
    B, L = 2, 8

    key = jax.random.PRNGKey(0)
    kp, k0, k1 = jax.random.split(key, 3)
    params = init_params(kp, VOCAB, HIDDEN, EMB, N_CLASSES)
    tok0 = jax.random.randint(k0, (B, L), 0, VOCAB, dtype=jnp.int32)
    tok1 = jax.random.randint(k1, (B, L), 0, VOCAB, dtype=jnp.int32)

    out = lstm_qa_forward(params, tok0, tok1)
    out = jax.block_until_ready(out)
    assert out.shape == (B, N_CLASSES)
    assert bool(jnp.all(jnp.isfinite(out)))
    assert bool(jnp.all((out >= 0.0) & (out <= 1.0)))
    print("KERNEL_OK")
</pallas_src>

<mosaic_0001>
module attributes {stable_mosaic.version = 11 : i64} {
  func.func @_lstm_qa_kernel(%arg0: memref<2x8xi32, #tpu.memory_space<vmem>>, %arg1: memref<2x8xi32, #tpu.memory_space<vmem>>, %arg2: memref<128x256xf32, #tpu.memory_space<vmem>>, %arg3: memref<32x128xf32, #tpu.memory_space<vmem>>, %arg4: memref<32x128xf32, #tpu.memory_space<vmem>>, %arg5: memref<64x64xf32, #tpu.memory_space<vmem>>, %arg6: memref<1x64xf32, #tpu.memory_space<vmem>>, %arg7: memref<64x3xf32, #tpu.memory_space<vmem>>, %arg8: memref<1x3xf32, #tpu.memory_space<vmem>>, %arg9: memref<2x3xf32, #tpu.memory_space<vmem>>) attributes {dimension_semantics = [], scalar_prefetch = 0 : i64, scratch_operands = 0 : i64, tpu.core_type = #tpu.core_type<tc>} {
    %c0 = arith.constant 0 : index
    %c0_0 = arith.constant 0 : index
    %0 = vector.load %arg2[%c0, %c0_0] : memref<128x256xf32, #tpu.memory_space<vmem>>, vector<128x256xf32>
    %c0_1 = arith.constant 0 : index
    %c0_2 = arith.constant 0 : index
    %1 = vector.load %arg3[%c0_1, %c0_2] : memref<32x128xf32, #tpu.memory_space<vmem>>, vector<32x128xf32>
    %c0_3 = arith.constant 0 : index
    %c0_4 = arith.constant 0 : index
    %2 = vector.load %arg4[%c0_3, %c0_4] : memref<32x128xf32, #tpu.memory_space<vmem>>, vector<32x128xf32>
    %c0_5 = arith.constant 0 : index
    %c0_6 = arith.constant 0 : index
    %3 = vector.load %arg0[%c0_5, %c0_6] : memref<2x8xi32, #tpu.memory_space<vmem>>, vector<2x8xi32>
    %c0_7 = arith.constant 0 : index
    %c0_8 = arith.constant 0 : index
    %4 = vector.load %arg1[%c0_7, %c0_8] : memref<2x8xi32, #tpu.memory_space<vmem>>, vector<2x8xi32>
    %5 = tpu.iota {dimensions = array<i32: 1>} : vector<2x128xi32>
    %6 = vector.extract_strided_slice %3 {offsets = [0, 0], sizes = [2, 1], strides = [1, 1]} : vector<2x8xi32> to vector<2x1xi32>
    %7 = vector.broadcast %6 : vector<2x1xi32> to vector<2x128xi32>
    %8 = arith.cmpi eq, %5, %7 : vector<2x128xi32>
    %9 = arith.extui %8 : vector<2x128xi1> to vector<2x128xi32>
    %10 = arith.sitofp %9 : vector<2x128xi32> to vector<2x128xf32>
    %cst = arith.constant dense<0.000000e+00> : vector<2x256xf32>
    %11 = tpu.matmul %10, %0, %cst {dimension_numbers = #tpu.dot_dimension_numbers<[1], [0], [0], [1], [0, 0, 1, 1], [], []>} : vector<2x128xf32>, vector<128x256xf32>, vector<2x256xf32> -> vector<2x256xf32>
    %12 = vector.extract_strided_slice %3 {offsets = [0, 1], sizes = [2, 1], strides = [1, 1]} : vector<2x8xi32> to vector<2x1xi32>
    %13 = vector.broadcast %12 : vector<2x1xi32> to vector<2x128xi32>
    %14 = arith.cmpi eq, %5, %13 : vector<2x128xi32>
    %15 = arith.extui %14 : vector<2x128xi1> to vector<2x128xi32>
    %16 = arith.sitofp %15 : vector<2x128xi32> to vector<2x128xf32>
    %cst_9 = arith.constant dense<0.000000e+00> : vector<2x256xf32>
    %17 = tpu.matmul %16, %0, %cst_9 {dimension_numbers = #tpu.dot_dimension_numbers<[1], [0], [0], [1], [0, 0, 1, 1], [], []>} : vector<2x128xf32>, vector<128x256xf32>, vector<2x256xf32> -> vector<2x256xf32>
    %18 = vector.extract_strided_slice %3 {offsets = [0, 2], sizes = [2, 1], strides = [1, 1]} : vector<2x8xi32> to vector<2x1xi32>
    %19 = vector.broadcast %18 : vector<2x1xi32> to vector<2x128xi32>
    %20 = arith.cmpi eq, %5, %19 : vector<2x128xi32>
    %21 = arith.extui %20 : vector<2x128xi1> to vector<2x128xi32>
    %22 = arith.sitofp %21 : vector<2x128xi32> to vector<2x128xf32>
    %cst_10 = arith.constant dense<0.000000e+00> : vector<2x256xf32>
    %23 = tpu.matmul %22, %0, %cst_10 {dimension_numbers = #tpu.dot_dimension_numbers<[1], [0], [0], [1], [0, 0, 1, 1], [], []>} : vector<2x128xf32>, vector<128x256xf32>, vector<2x256xf32> -> vector<2x256xf32>
    %24 = vector.extract_strided_slice %3 {offsets = [0, 3], sizes = [2, 1], strides = [1, 1]} : vector<2x8xi32> to vector<2x1xi32>
    %25 = vector.broadcast %24 : vector<2x1xi32> to vector<2x128xi32>
    %26 = arith.cmpi eq, %5, %25 : vector<2x128xi32>
    %27 = arith.extui %26 : vector<2x128xi1> to vector<2x128xi32>
    %28 = arith.sitofp %27 : vector<2x128xi32> to vector<2x128xf32>
    %cst_11 = arith.constant dense<0.000000e+00> : vector<2x256xf32>
    %29 = tpu.matmul %28, %0, %cst_11 {dimension_numbers = #tpu.dot_dimension_numbers<[1], [0], [0], [1], [0, 0, 1, 1], [], []>} : vector<2x128xf32>, vector<128x256xf32>, vector<2x256xf32> -> vector<2x256xf32>
    %30 = vector.extract_strided_slice %3 {offsets = [0, 4], sizes = [2, 1], strides = [1, 1]} : vector<2x8xi32> to vector<2x1xi32>
    %31 = vector.broadcast %30 : vector<2x1xi32> to vector<2x128xi32>
    %32 = arith.cmpi eq, %5, %31 : vector<2x128xi32>
    %33 = arith.extui %32 : vector<2x128xi1> to vector<2x128xi32>
    %34 = arith.sitofp %33 : vector<2x128xi32> to vector<2x128xf32>
    %cst_12 = arith.constant dense<0.000000e+00> : vector<2x256xf32>
    %35 = tpu.matmul %34, %0, %cst_12 {dimension_numbers = #tpu.dot_dimension_numbers<[1], [0], [0], [1], [0, 0, 1, 1], [], []>} : vector<2x128xf32>, vector<128x256xf32>, vector<2x256xf32> -> vector<2x256xf32>
    %36 = vector.extract_strided_slice %3 {offsets = [0, 5], sizes = [2, 1], strides = [1, 1]} : vector<2x8xi32> to vector<2x1xi32>
    %37 = vector.broadcast %36 : vector<2x1xi32> to vector<2x128xi32>
    %38 = arith.cmpi eq, %5, %37 : vector<2x128xi32>
    %39 = arith.extui %38 : vector<2x128xi1> to vector<2x128xi32>
    %40 = arith.sitofp %39 : vector<2x128xi32> to vector<2x128xf32>
    %cst_13 = arith.constant dense<0.000000e+00> : vector<2x256xf32>
    %41 = tpu.matmul %40, %0, %cst_13 {dimension_numbers = #tpu.dot_dimension_numbers<[1], [0], [0], [1], [0, 0, 1, 1], [], []>} : vector<2x128xf32>, vector<128x256xf32>, vector<2x256xf32> -> vector<2x256xf32>
    %42 = vector.extract_strided_slice %3 {offsets = [0, 6], sizes = [2, 1], strides = [1, 1]} : vector<2x8xi32> to vector<2x1xi32>
    %43 = vector.broadcast %42 : vector<2x1xi32> to vector<2x128xi32>
    %44 = arith.cmpi eq, %5, %43 : vector<2x128xi32>
    %45 = arith.extui %44 : vector<2x128xi1> to vector<2x128xi32>
    %46 = arith.sitofp %45 : vector<2x128xi32> to vector<2x128xf32>
    %cst_14 = arith.constant dense<0.000000e+00> : vector<2x256xf32>
    %47 = tpu.matmul %46, %0, %cst_14 {dimension_numbers = #tpu.dot_dimension_numbers<[1], [0], [0], [1], [0, 0, 1, 1], [], []>} : vector<2x128xf32>, vector<128x256xf32>, vector<2x256xf32> -> vector<2x256xf32>
    %48 = vector.extract_strided_slice %3 {offsets = [0, 7], sizes = [2, 1], strides = [1, 1]} : vector<2x8xi32> to vector<2x1xi32>
    %49 = vector.broadcast %48 : vector<2x1xi32> to vector<2x128xi32>
    %50 = arith.cmpi eq, %5, %49 : vector<2x128xi32>
    %51 = arith.extui %50 : vector<2x128xi1> to vector<2x128xi32>
    %52 = arith.sitofp %51 : vector<2x128xi32> to vector<2x128xf32>
    %cst_15 = arith.constant dense<0.000000e+00> : vector<2x256xf32>
    %53 = tpu.matmul %52, %0, %cst_15 {dimension_numbers = #tpu.dot_dimension_numbers<[1], [0], [0], [1], [0, 0, 1, 1], [], []>} : vector<2x128xf32>, vector<128x256xf32>, vector<2x256xf32> -> vector<2x256xf32>
    %54 = vector.extract_strided_slice %4 {offsets = [0, 0], sizes = [2, 1], strides = [1, 1]} : vector<2x8xi32> to vector<2x1xi32>
    %55 = vector.broadcast %54 : vector<2x1xi32> to vector<2x128xi32>
    %56 = arith.cmpi eq, %5, %55 : vector<2x128xi32>
    %57 = arith.extui %56 : vector<2x128xi1> to vector<2x128xi32>
    %58 = arith.sitofp %57 : vector<2x128xi32> to vector<2x128xf32>
    %cst_16 = arith.constant dense<0.000000e+00> : vector<2x256xf32>
    %59 = tpu.matmul %58, %0, %cst_16 {dimension_numbers = #tpu.dot_dimension_numbers<[1], [0], [0], [1], [0, 0, 1, 1], [], []>} : vector<2x128xf32>, vector<128x256xf32>, vector<2x256xf32> -> vector<2x256xf32>
    %60 = vector.extract_strided_slice %4 {offsets = [0, 1], sizes = [2, 1], strides = [1, 1]} : vector<2x8xi32> to vector<2x1xi32>
    %61 = vector.broadcast %60 : vector<2x1xi32> to vector<2x128xi32>
    %62 = arith.cmpi eq, %5, %61 : vector<2x128xi32>
    %63 = arith.extui %62 : vector<2x128xi1> to vector<2x128xi32>
    %64 = arith.sitofp %63 : vector<2x128xi32> to vector<2x128xf32>
    %cst_17 = arith.constant dense<0.000000e+00> : vector<2x256xf32>
    %65 = tpu.matmul %64, %0, %cst_17 {dimension_numbers = #tpu.dot_dimension_numbers<[1], [0], [0], [1], [0, 0, 1, 1], [], []>} : vector<2x128xf32>, vector<128x256xf32>, vector<2x256xf32> -> vector<2x256xf32>
    %66 = vector.extract_strided_slice %4 {offsets = [0, 2], sizes = [2, 1], strides = [1, 1]} : vector<2x8xi32> to vector<2x1xi32>
    %67 = vector.broadcast %66 : vector<2x1xi32> to vector<2x128xi32>
    %68 = arith.cmpi eq, %5, %67 : vector<2x128xi32>
    %69 = arith.extui %68 : vector<2x128xi1> to vector<2x128xi32>
    %70 = arith.sitofp %69 : vector<2x128xi32> to vector<2x128xf32>
    %cst_18 = arith.constant dense<0.000000e+00> : vector<2x256xf32>
    %71 = tpu.matmul %70, %0, %cst_18 {dimension_numbers = #tpu.dot_dimension_numbers<[1], [0], [0], [1], [0, 0, 1, 1], [], []>} : vector<2x128xf32>, vector<128x256xf32>, vector<2x256xf32> -> vector<2x256xf32>
    %72 = vector.extract_strided_slice %4 {offsets = [0, 3], sizes = [2, 1], strides = [1, 1]} : vector<2x8xi32> to vector<2x1xi32>
    %73 = vector.broadcast %72 : vector<2x1xi32> to vector<2x128xi32>
    %74 = arith.cmpi eq, %5, %73 : vector<2x128xi32>
    %75 = arith.extui %74 : vector<2x128xi1> to vector<2x128xi32>
    %76 = arith.sitofp %75 : vector<2x128xi32> to vector<2x128xf32>
    %cst_19 = arith.constant dense<0.000000e+00> : vector<2x256xf32>
    %77 = tpu.matmul %76, %0, %cst_19 {dimension_numbers = #tpu.dot_dimension_numbers<[1], [0], [0], [1], [0, 0, 1, 1], [], []>} : vector<2x128xf32>, vector<128x256xf32>, vector<2x256xf32> -> vector<2x256xf32>
    %78 = vector.extract_strided_slice %4 {offsets = [0, 4], sizes = [2, 1], strides = [1, 1]} : vector<2x8xi32> to vector<2x1xi32>
    %79 = vector.broadcast %78 : vector<2x1xi32> to vector<2x128xi32>
    %80 = arith.cmpi eq, %5, %79 : vector<2x128xi32>
    %81 = arith.extui %80 : vector<2x128xi1> to vector<2x128xi32>
    %82 = arith.sitofp %81 : vector<2x128xi32> to vector<2x128xf32>
    %cst_20 = arith.constant dense<0.000000e+00> : vector<2x256xf32>
    %83 = tpu.matmul %82, %0, %cst_20 {dimension_numbers = #tpu.dot_dimension_numbers<[1], [0], [0], [1], [0, 0, 1, 1], [], []>} : vector<2x128xf32>, vector<128x256xf32>, vector<2x256xf32> -> vector<2x256xf32>
    %84 = vector.extract_strided_slice %4 {offsets = [0, 5], sizes = [2, 1], strides = [1, 1]} : vector<2x8xi32> to vector<2x1xi32>
    %85 = vector.broadcast %84 : vector<2x1xi32> to vector<2x128xi32>
    %86 = arith.cmpi eq, %5, %85 : vector<2x128xi32>
    %87 = arith.extui %86 : vector<2x128xi1> to vector<2x128xi32>
    %88 = arith.sitofp %87 : vector<2x128xi32> to vector<2x128xf32>
    %cst_21 = arith.constant dense<0.000000e+00> : vector<2x256xf32>
    %89 = tpu.matmul %88, %0, %cst_21 {dimension_numbers = #tpu.dot_dimension_numbers<[1], [0], [0], [1], [0, 0, 1, 1], [], []>} : vector<2x128xf32>, vector<128x256xf32>, vector<2x256xf32> -> vector<2x256xf32>
    %90 = vector.extract_strided_slice %4 {offsets = [0, 6], sizes = [2, 1], strides = [1, 1]} : vector<2x8xi32> to vector<2x1xi32>
    %91 = vector.broadcast %90 : vector<2x1xi32> to vector<2x128xi32>
    %92 = arith.cmpi eq, %5, %91 : vector<2x128xi32>
    %93 = arith.extui %92 : vector<2x128xi1> to vector<2x128xi32>
    %94 = arith.sitofp %93 : vector<2x128xi32> to vector<2x128xf32>
    %cst_22 = arith.constant dense<0.000000e+00> : vector<2x256xf32>
    %95 = tpu.matmul %94, %0, %cst_22 {dimension_numbers = #tpu.dot_dimension_numbers<[1], [0], [0], [1], [0, 0, 1, 1], [], []>} : vector<2x128xf32>, vector<128x256xf32>, vector<2x256xf32> -> vector<2x256xf32>
    %96 = vector.extract_strided_slice %4 {offsets = [0, 7], sizes = [2, 1], strides = [1, 1]} : vector<2x8xi32> to vector<2x1xi32>
    %97 = vector.broadcast %96 : vector<2x1xi32> to vector<2x128xi32>
    %98 = arith.cmpi eq, %5, %97 : vector<2x128xi32>
    %99 = arith.extui %98 : vector<2x128xi1> to vector<2x128xi32>
    %100 = arith.sitofp %99 : vector<2x128xi32> to vector<2x128xf32>
    %cst_23 = arith.constant dense<0.000000e+00> : vector<2x256xf32>
    %101 = tpu.matmul %100, %0, %cst_23 {dimension_numbers = #tpu.dot_dimension_numbers<[1], [0], [0], [1], [0, 0, 1, 1], [], []>} : vector<2x128xf32>, vector<128x256xf32>, vector<2x256xf32> -> vector<2x256xf32>
    %cst_24 = arith.constant 0.000000e+00 : f32
    %102 = vector.broadcast %cst_24 : f32 to vector<2x32xf32>
    %cst_25 = arith.constant dense<0.000000e+00> : vector<2x128xf32>
    %103 = tpu.matmul %102, %1, %cst_25 {dimension_numbers = #tpu.dot_dimension_numbers<[1], [0], [0], [1], [0, 0, 1, 1], [], []>} : vector<2x32xf32>, vector<32x128xf32>, vector<2x128xf32> -> vector<2x128xf32>
    %cst_26 = arith.constant dense<0.000000e+00> : vector<2x128xf32>
    %104 = tpu.matmul %102, %2, %cst_26 {dimension_numbers = #tpu.dot_dimension_numbers<[1], [0], [0], [1], [0, 0, 1, 1], [], []>} : vector<2x32xf32>, vector<32x128xf32>, vector<2x128xf32> -> vector<2x128xf32>
    %cst_27 = arith.constant dense<0.000000e+00> : vector<2x128xf32>
    %105 = tpu.matmul %102, %1, %cst_27 {dimension_numbers = #tpu.dot_dimension_numbers<[1], [0], [0], [1], [0, 0, 1, 1], [], []>} : vector<2x32xf32>, vector<32x128xf32>, vector<2x128xf32> -> vector<2x128xf32>
    %cst_28 = arith.constant dense<0.000000e+00> : vector<2x128xf32>
    %106 = tpu.matmul %102, %2, %cst_28 {dimension_numbers = #tpu.dot_dimension_numbers<[1], [0], [0], [1], [0, 0, 1, 1], [], []>} : vector<2x32xf32>, vector<32x128xf32>, vector<2x128xf32> -> vector<2x128xf32>
    %107 = vector.extract_strided_slice %11 {offsets = [0, 0], sizes = [2, 128], strides = [1, 1]} : vector<2x256xf32> to vector<2x128xf32>
    %108 = arith.addf %107, %103 : vector<2x128xf32>
    %cst_29 = arith.constant 0.000000e+00 : f32
    %109 = vector.broadcast %cst_29 : f32 to vector<2x128xf32>
    %110 = arith.subf %109, %108 : vector<2x128xf32>
    %111 = math.exp %110 : vector<2x128xf32>
    %cst_30 = arith.constant 1.000000e+00 : f32
    %112 = vector.broadcast %cst_30 : f32 to vector<2x128xf32>
    %113 = arith.addf %112, %111 : vector<2x128xf32>
    %cst_31 = arith.constant 1.000000e+00 : f32
    %114 = vector.broadcast %cst_31 : f32 to vector<2x128xf32>
    %115 = arith.divf %114, %113 : vector<2x128xf32>
    %116 = math.tanh %108 : vector<2x128xf32>
    %117 = vector.extract_strided_slice %115 {offsets = [0, 0], sizes = [2, 32], strides = [1, 1]} : vector<2x128xf32> to vector<2x32xf32>
    %118 = vector.extract_strided_slice %115 {offsets = [0, 32], sizes = [2, 32], strides = [1, 1]} : vector<2x128xf32> to vector<2x32xf32>
    %119 = vector.extract_strided_slice %116 {offsets = [0, 64], sizes = [2, 32], strides = [1, 1]} : vector<2x128xf32> to vector<2x32xf32>
    %120 = vector.extract_strided_slice %115 {offsets = [0, 96], sizes = [2, 32], strides = [1, 1]} : vector<2x128xf32> to vector<2x32xf32>
    %121 = arith.mulf %118, %102 : vector<2x32xf32>
    %122 = arith.mulf %117, %119 : vector<2x32xf32>
    %123 = arith.addf %121, %122 : vector<2x32xf32>
    %124 = math.tanh %123 : vector<2x32xf32>
    %125 = arith.mulf %120, %124 : vector<2x32xf32>
    %126 = vector.extract_strided_slice %53 {offsets = [0, 128], sizes = [2, 128], strides = [1, 1]} : vector<2x256xf32> to vector<2x128xf32>
    %127 = arith.addf %126, %104 : vector<2x128xf32>
    %cst_32 = arith.constant 0.000000e+00 : f32
    %128 = vector.broadcast %cst_32 : f32 to vector<2x128xf32>
    %129 = arith.subf %128, %127 : vector<2x128xf32>
    %130 = math.exp %129 : vector<2x128xf32>
    %cst_33 = arith.constant 1.000000e+00 : f32
    %131 = vector.broadcast %cst_33 : f32 to vector<2x128xf32>
    %132 = arith.addf %131, %130 : vector<2x128xf32>
    %cst_34 = arith.constant 1.000000e+00 : f32
    %133 = vector.broadcast %cst_34 : f32 to vector<2x128xf32>
    %134 = arith.divf %133, %132 : vector<2x128xf32>
    %135 = math.tanh %127 : vector<2x128xf32>
    %136 = vector.extract_strided_slice %134 {offsets = [0, 0], sizes = [2, 32], strides = [1, 1]} : vector<2x128xf32> to vector<2x32xf32>
    %137 = vector.extract_strided_slice %134 {offsets = [0, 32], sizes = [2, 32], strides = [1, 1]} : vector<2x128xf32> to vector<2x32xf32>
    %138 = vector.extract_strided_slice %135 {offsets = [0, 64], sizes = [2, 32], strides = [1, 1]} : vector<2x128xf32> to vector<2x32xf32>
    %139 = vector.extract_strided_slice %134 {offsets = [0, 96], sizes = [2, 32], strides = [1, 1]} : vector<2x128xf32> to vector<2x32xf32>
    %140 = arith.mulf %137, %102 : vector<2x32xf32>
    %141 = arith.mulf %136, %138 : vector<2x32xf32>
    %142 = arith.addf %140, %141 : vector<2x32xf32>
    %143 = math.tanh %142 : vector<2x32xf32>
    %144 = arith.mulf %139, %143 : vector<2x32xf32>
    %145 = vector.extract_strided_slice %59 {offsets = [0, 0], sizes = [2, 128], strides = [1, 1]} : vector<2x256xf32> to vector<2x128xf32>
    %146 = arith.addf %145, %105 : vector<2x128xf32>
    %cst_35 = arith.constant 0.000000e+00 : f32
    %147 = vector.broadcast %cst_35 : f32 to vector<2x128xf32>
    %148 = arith.subf %147, %146 : vector<2x128xf32>
    %149 = math.exp %148 : vector<2x128xf32>
    %cst_36 = arith.constant 1.000000e+00 : f32
    %150 = vector.broadcast %cst_36 : f32 to vector<2x128xf32>
    %151 = arith.addf %150, %149 : vector<2x128xf32>
    %cst_37 = arith.constant 1.000000e+00 : f32
    %152 = vector.broadcast %cst_37 : f32 to vector<2x128xf32>
    %153 = arith.divf %152, %151 : vector<2x128xf32>
    %154 = math.tanh %146 : vector<2x128xf32>
    %155 = vector.extract_strided_slice %153 {offsets = [0, 0], sizes = [2, 32], strides = [1, 1]} : vector<2x128xf32> to vector<2x32xf32>
    %156 = vector.extract_strided_slice %153 {offsets = [0, 32], sizes = [2, 32], strides = [1, 1]} : vector<2x128xf32> to vector<2x32xf32>
    %157 = vector.extract_strided_slice %154 {offsets = [0, 64], sizes = [2, 32], strides = [1, 1]} : vector<2x128xf32> to vector<2x32xf32>
    %158 = vector.extract_strided_slice %153 {offsets = [0, 96], sizes = [2, 32], strides = [1, 1]} : vector<2x128xf32> to vector<2x32xf32>
    %159 = arith.mulf %156, %102 : vector<2x32xf32>
    %160 = arith.mulf %155, %157 : vector<2x32xf32>
    %161 = arith.addf %159, %160 : vector<2x32xf32>
    %162 = math.tanh %161 : vector<2x32xf32>
    %163 = arith.mulf %158, %162 : vector<2x32xf32>
    %164 = vector.extract_strided_slice %101 {offsets = [0, 128], sizes = [2, 128], strides = [1, 1]} : vector<2x256xf32> to vector<2x128xf32>
    %165 = arith.addf %164, %106 : vector<2x128xf32>
    %cst_38 = arith.constant 0.000000e+00 : f32
    %166 = vector.broadcast %cst_38 : f32 to vector<2x128xf32>
    %167 = arith.subf %166, %165 : vector<2x128xf32>
    %168 = math.exp %167 : vector<2x128xf32>
    %cst_39 = arith.constant 1.000000e+00 : f32
    %169 = vector.broadcast %cst_39 : f32 to vector<2x128xf32>
    %170 = arith.addf %169, %168 : vector<2x128xf32>
    %cst_40 = arith.constant 1.000000e+00 : f32
    %171 = vector.broadcast %cst_40 : f32 to vector<2x128xf32>
    %172 = arith.divf %171, %170 : vector<2x128xf32>
    %173 = math.tanh %165 : vector<2x128xf32>
    %174 = vector.extract_strided_slice %172 {offsets = [0, 0], sizes = [2, 32], strides = [1, 1]} : vector<2x128xf32> to vector<2x32xf32>
    %175 = vector.extract_strided_slice %172 {offsets = [0, 32], sizes = [2, 32], strides = [1, 1]} : vector<2x128xf32> to vector<2x32xf32>
    %176 = vector.extract_strided_slice %173 {offsets = [0, 64], sizes = [2, 32], strides = [1, 1]} : vector<2x128xf32> to vector<2x32xf32>
    %177 = vector.extract_strided_slice %172 {offsets = [0, 96], sizes = [2, 32], strides = [1, 1]} : vector<2x128xf32> to vector<2x32xf32>
    %178 = arith.mulf %175, %102 : vector<2x32xf32>
    %179 = arith.mulf %174, %176 : vector<2x32xf32>
    %180 = arith.addf %178, %179 : vector<2x32xf32>
    %181 = math.tanh %180 : vector<2x32xf32>
    %182 = arith.mulf %177, %181 : vector<2x32xf32>
    %183 = arith.mulf %125, %163 : vector<2x32xf32>
    %184 = arith.addf %102, %183 : vector<2x32xf32>
    %185 = arith.mulf %144, %182 : vector<2x32xf32>
    %186 = arith.addf %102, %185 : vector<2x32xf32>
    %187 = arith.mulf %125, %125 : vector<2x32xf32>
    %188 = arith.addf %102, %187 : vector<2x32xf32>
    %189 = arith.mulf %144, %144 : vector<2x32xf32>
    %190 = arith.addf %102, %189 : vector<2x32xf32>
    %191 = arith.mulf %163, %163 : vector<2x32xf32>
    %192 = arith.addf %102, %191 : vector<2x32xf32>
    %193 = arith.mulf %182, %182 : vector<2x32xf32>
    %194 = arith.addf %102, %193 : vector<2x32xf32>
    %cst_41 = arith.constant dense<0.000000e+00> : vector<2x128xf32>
    %195 = tpu.matmul %125, %1, %cst_41 {dimension_numbers = #tpu.dot_dimension_numbers<[1], [0], [0], [1], [0, 0, 1, 1], [], []>} : vector<2x32xf32>, vector<32x128xf32>, vector<2x128xf32> -> vector<2x128xf32>
    %cst_42 = arith.constant dense<0.000000e+00> : vector<2x128xf32>
    %196 = tpu.matmul %144, %2, %cst_42 {dimension_numbers = #tpu.dot_dimension_numbers<[1], [0], [0], [1], [0, 0, 1, 1], [], []>} : vector<2x32xf32>, vector<32x128xf32>, vector<2x128xf32> -> vector<2x128xf32>
    %cst_43 = arith.constant dense<0.000000e+00> : vector<2x128xf32>
    %197 = tpu.matmul %163, %1, %cst_43 {dimension_numbers = #tpu.dot_dimension_numbers<[1], [0], [0], [1], [0, 0, 1, 1], [], []>} : vector<2x32xf32>, vector<32x128xf32>, vector<2x128xf32> -> vector<2x128xf32>
    %cst_44 = arith.constant dense<0.000000e+00> : vector<2x128xf32>
    %198 = tpu.matmul %182, %2, %cst_44 {dimension_numbers = #tpu.dot_dimension_numbers<[1], [0], [0], [1], [0, 0, 1, 1], [], []>} : vector<2x32xf32>, vector<32x128xf32>, vector<2x128xf32> -> vector<2x128xf32>
    %199 = vector.extract_strided_slice %17 {offsets = [0, 0], sizes = [2, 128], strides = [1, 1]} : vector<2x256xf32> to vector<2x128xf32>
    %200 = arith.addf %199, %195 : vector<2x128xf32>
    %cst_45 = arith.constant 0.000000e+00 : f32
    %201 = vector.broadcast %cst_45 : f32 to vector<2x128xf32>
    %202 = arith.subf %201, %200 : vector<2x128xf32>
    %203 = math.exp %202 : vector<2x128xf32>
    %cst_46 = arith.constant 1.000000e+00 : f32
    %204 = vector.broadcast %cst_46 : f32 to vector<2x128xf32>
    %205 = arith.addf %204, %203 : vector<2x128xf32>
    %cst_47 = arith.constant 1.000000e+00 : f32
    %206 = vector.broadcast %cst_47 : f32 to vector<2x128xf32>
    %207 = arith.divf %206, %205 : vector<2x128xf32>
    %208 = math.tanh %200 : vector<2x128xf32>
    %209 = vector.extract_strided_slice %207 {offsets = [0, 0], sizes = [2, 32], strides = [1, 1]} : vector<2x128xf32> to vector<2x32xf32>
    %210 = vector.extract_strided_slice %207 {offsets = [0, 32], sizes = [2, 32], strides = [1, 1]} : vector<2x128xf32> to vector<2x32xf32>
    %211 = vector.extract_strided_slice %208 {offsets = [0, 64], sizes = [2, 32], strides = [1, 1]} : vector<2x128xf32> to vector<2x32xf32>
    %212 = vector.extract_strided_slice %207 {offsets = [0, 96], sizes = [2, 32], strides = [1, 1]} : vector<2x128xf32> to vector<2x32xf32>
    %213 = arith.mulf %210, %123 : vector<2x32xf32>
    %214 = arith.mulf %209, %211 : vector<2x32xf32>
    %215 = arith.addf %213, %214 : vector<2x32xf32>
    %216 = math.tanh %215 : vector<2x32xf32>
    %217 = arith.mulf %212, %216 : vector<2x32xf32>
    %218 = vector.extract_strided_slice %47 {offsets = [0, 128], sizes = [2, 128], strides = [1, 1]} : vector<2x256xf32> to vector<2x128xf32>
    %219 = arith.addf %218, %196 : vector<2x128xf32>
    %cst_48 = arith.constant 0.000000e+00 : f32
    %220 = vector.broadcast %cst_48 : f32 to vector<2x128xf32>
    %221 = arith.subf %220, %219 : vector<2x128xf32>
    %222 = math.exp %221 : vector<2x128xf32>
    %cst_49 = arith.constant 1.000000e+00 : f32
    %223 = vector.broadcast %cst_49 : f32 to vector<2x128xf32>
    %224 = arith.addf %223, %222 : vector<2x128xf32>
    %cst_50 = arith.constant 1.000000e+00 : f32
    %225 = vector.broadcast %cst_50 : f32 to vector<2x128xf32>
    %226 = arith.divf %225, %224 : vector<2x128xf32>
    %227 = math.tanh %219 : vector<2x128xf32>
    %228 = vector.extract_strided_slice %226 {offsets = [0, 0], sizes = [2, 32], strides = [1, 1]} : vector<2x128xf32> to vector<2x32xf32>
    %229 = vector.extract_strided_slice %226 {offsets = [0, 32], sizes = [2, 32], strides = [1, 1]} : vector<2x128xf32> to vector<2x32xf32>
    %230 = vector.extract_strided_slice %227 {offsets = [0, 64], sizes = [2, 32], strides = [1, 1]} : vector<2x128xf32> to vector<2x32xf32>
    %231 = vector.extract_strided_slice %226 {offsets = [0, 96], sizes = [2, 32], strides = [1, 1]} : vector<2x128xf32> to vector<2x32xf32>
    %232 = arith.mulf %229, %142 : vector<2x32xf32>
    %233 = arith.mulf %228, %230 : vector<2x32xf32>
    %234 = arith.addf %232, %233 : vector<2x32xf32>
    %235 = math.tanh %234 : vector<2x32xf32>
    %236 = arith.mulf %231, %235 : vector<2x32xf32>
    %237 = vector.extract_strided_slice %65 {offsets = [0, 0], sizes = [2, 128], strides = [1, 1]} : vector<2x256xf32> to vector<2x128xf32>
    %238 = arith.addf %237, %197 : vector<2x128xf32>
    %cst_51 = arith.constant 0.000000e+00 : f32
    %239 = vector.broadcast %cst_51 : f32 to vector<2x128xf32>
    %240 = arith.subf %239, %238 : vector<2x128xf32>
    %241 = math.exp %240 : vector<2x128xf32>
    %cst_52 = arith.constant 1.000000e+00 : f32
    %242 = vector.broadcast %cst_52 : f32 to vector<2x128xf32>
    %243 = arith.addf %242, %241 : vector<2x128xf32>
    %cst_53 = arith.constant 1.000000e+00 : f32
    %244 = vector.broadcast %cst_53 : f32 to vector<2x128xf32>
    %245 = arith.divf %244, %243 : vector<2x128xf32>
    %246 = math.tanh %238 : vector<2x128xf32>
    %247 = vector.extract_strided_slice %245 {offsets = [0, 0], sizes = [2, 32], strides = [1, 1]} : vector<2x128xf32> to vector<2x32xf32>
    %248 = vector.extract_strided_slice %245 {offsets = [0, 32], sizes = [2, 32], strides = [1, 1]} : vector<2x128xf32> to vector<2x32xf32>
    %249 = vector.extract_strided_slice %246 {offsets = [0, 64], sizes = [2, 32], strides = [1, 1]} : vector<2x128xf32> to vector<2x32xf32>
    %250 = vector.extract_strided_slice %245 {offsets = [0, 96], sizes = [2, 32], strides = [1, 1]} : vector<2x128xf32> to vector<2x32xf32>
    %251 = arith.mulf %248, %161 : vector<2x32xf32>
    %252 = arith.mulf %247, %249 : vector<2x32xf32>
    %253 = arith.addf %251, %252 : vector<2x32xf32>
    %254 = math.tanh %253 : vector<2x32xf32>
    %255 = arith.mulf %250, %254 : vector<2x32xf32>
    %256 = vector.extract_strided_slice %95 {offsets = [0, 128], sizes = [2, 128], strides = [1, 1]} : vector<2x256xf32> to vector<2x128xf32>
    %257 = arith.addf %256, %198 : vector<2x128xf32>
    %cst_54 = arith.constant 0.000000e+00 : f32
    %258 = vector.broadcast %cst_54 : f32 to vector<2x128xf32>
    %259 = arith.subf %258, %257 : vector<2x128xf32>
    %260 = math.exp %259 : vector<2x128xf32>
    %cst_55 = arith.constant 1.000000e+00 : f32
    %261 = vector.broadcast %cst_55 : f32 to vector<2x128xf32>
    %262 = arith.addf %261, %260 : vector<2x128xf32>
    %cst_56 = arith.constant 1.000000e+00 : f32
    %263 = vector.broadcast %cst_56 : f32 to vector<2x128xf32>
    %264 = arith.divf %263, %262 : vector<2x128xf32>
    %265 = math.tanh %257 : vector<2x128xf32>
    %266 = vector.extract_strided_slice %264 {offsets = [0, 0], sizes = [2, 32], strides = [1, 1]} : vector<2x128xf32> to vector<2x32xf32>
    %267 = vector.extract_strided_slice %264 {offsets = [0, 32], sizes = [2, 32], strides = [1, 1]} : vector<2x128xf32> to vector<2x32xf32>
    %268 = vector.extract_strided_slice %265 {offsets = [0, 64], sizes = [2, 32], strides = [1, 1]} : vector<2x128xf32> to vector<2x32xf32>
    %269 = vector.extract_strided_slice %264 {offsets = [0, 96], sizes = [2, 32], strides = [1, 1]} : vector<2x128xf32> to vector<2x32xf32>
    %270 = arith.mulf %267, %180 : vector<2x32xf32>
    %271 = arith.mulf %266, %268 : vector<2x32xf32>
    %272 = arith.addf %270, %271 : vector<2x32xf32>
    %273 = math.tanh %272 : vector<2x32xf32>
    %274 = arith.mulf %269, %273 : vector<2x32xf32>
    %275 = arith.mulf %217, %255 : vector<2x32xf32>
    %276 = arith.addf %184, %275 : vector<2x32xf32>
    %277 = arith.mulf %236, %274 : vector<2x32xf32>
    %278 = arith.addf %186, %277 : vector<2x32xf32>
    %279 = arith.mulf %217, %217 : vector<2x32xf32>
    %280 = arith.addf %188, %279 : vector<2x32xf32>
    %281 = arith.mulf %236, %236 : vector<2x32xf32>
    %282 = arith.addf %190, %281 : vector<2x32xf32>
    %283 = arith.mulf %255, %255 : vector<2x32xf32>
    %284 = arith.addf %192, %283 : vector<2x32xf32>
    %285 = arith.mulf %274, %274 : vector<2x32xf32>
    %286 = arith.addf %194, %285 : vector<2x32xf32>
    %cst_57 = arith.constant dense<0.000000e+00> : vector<2x128xf32>
    %287 = tpu.matmul %217, %1, %cst_57 {dimension_numbers = #tpu.dot_dimension_numbers<[1], [0], [0], [1], [0, 0, 1, 1], [], []>} : vector<2x32xf32>, vector<32x128xf32>, vector<2x128xf32> -> vector<2x128xf32>
    %cst_58 = arith.constant dense<0.000000e+00> : vector<2x128xf32>
    %288 = tpu.matmul %236, %2, %cst_58 {dimension_numbers = #tpu.dot_dimension_numbers<[1], [0], [0], [1], [0, 0, 1, 1], [], []>} : vector<2x32xf32>, vector<32x128xf32>, vector<2x128xf32> -> vector<2x128xf32>
    %cst_59 = arith.constant dense<0.000000e+00> : vector<2x128xf32>
    %289 = tpu.matmul %255, %1, %cst_59 {dimension_numbers = #tpu.dot_dimension_numbers<[1], [0], [0], [1], [0, 0, 1, 1], [], []>} : vector<2x32xf32>, vector<32x128xf32>, vector<2x128xf32> -> vector<2x128xf32>
    %cst_60 = arith.constant dense<0.000000e+00> : vector<2x128xf32>
    %290 = tpu.matmul %274, %2, %cst_60 {dimension_numbers = #tpu.dot_dimension_numbers<[1], [0], [0], [1], [0, 0, 1, 1], [], []>} : vector<2x32xf32>, vector<32x128xf32>, vector<2x128xf32> -> vector<2x128xf32>
    %291 = vector.extract_strided_slice %23 {offsets = [0, 0], sizes = [2, 128], strides = [1, 1]} : vector<2x256xf32> to vector<2x128xf32>
    %292 = arith.addf %291, %287 : vector<2x128xf32>
    %cst_61 = arith.constant 0.000000e+00 : f32
    %293 = vector.broadcast %cst_61 : f32 to vector<2x128xf32>
    %294 = arith.subf %293, %292 : vector<2x128xf32>
    %295 = math.exp %294 : vector<2x128xf32>
    %cst_62 = arith.constant 1.000000e+00 : f32
    %296 = vector.broadcast %cst_62 : f32 to vector<2x128xf32>
    %297 = arith.addf %296, %295 : vector<2x128xf32>
    %cst_63 = arith.constant 1.000000e+00 : f32
    %298 = vector.broadcast %cst_63 : f32 to vector<2x128xf32>
    %299 = arith.divf %298, %297 : vector<2x128xf32>
    %300 = math.tanh %292 : vector<2x128xf32>
    %301 = vector.extract_strided_slice %299 {offsets = [0, 0], sizes = [2, 32], strides = [1, 1]} : vector<2x128xf32> to vector<2x32xf32>
    %302 = vector.extract_strided_slice %299 {offsets = [0, 32], sizes = [2, 32], strides = [1, 1]} : vector<2x128xf32> to vector<2x32xf32>
    %303 = vector.extract_strided_slice %300 {offsets = [0, 64], sizes = [2, 32], strides = [1, 1]} : vector<2x128xf32> to vector<2x32xf32>
    %304 = vector.extract_strided_slice %299 {offsets = [0, 96], sizes = [2, 32], strides = [1, 1]} : vector<2x128xf32> to vector<2x32xf32>
    %305 = arith.mulf %302, %215 : vector<2x32xf32>
    %306 = arith.mulf %301, %303 : vector<2x32xf32>
    %307 = arith.addf %305, %306 : vector<2x32xf32>
    %308 = math.tanh %307 : vector<2x32xf32>
    %309 = arith.mulf %304, %308 : vector<2x32xf32>
    %310 = vector.extract_strided_slice %41 {offsets = [0, 128], sizes = [2, 128], strides = [1, 1]} : vector<2x256xf32> to vector<2x128xf32>
    %311 = arith.addf %310, %288 : vector<2x128xf32>
    %cst_64 = arith.constant 0.000000e+00 : f32
    %312 = vector.broadcast %cst_64 : f32 to vector<2x128xf32>
    %313 = arith.subf %312, %311 : vector<2x128xf32>
    %314 = math.exp %313 : vector<2x128xf32>
    %cst_65 = arith.constant 1.000000e+00 : f32
    %315 = vector.broadcast %cst_65 : f32 to vector<2x128xf32>
    %316 = arith.addf %315, %314 : vector<2x128xf32>
    %cst_66 = arith.constant 1.000000e+00 : f32
    %317 = vector.broadcast %cst_66 : f32 to vector<2x128xf32>
    %318 = arith.divf %317, %316 : vector<2x128xf32>
    %319 = math.tanh %311 : vector<2x128xf32>
    %320 = vector.extract_strided_slice %318 {offsets = [0, 0], sizes = [2, 32], strides = [1, 1]} : vector<2x128xf32> to vector<2x32xf32>
    %321 = vector.extract_strided_slice %318 {offsets = [0, 32], sizes = [2, 32], strides = [1, 1]} : vector<2x128xf32> to vector<2x32xf32>
    %322 = vector.extract_strided_slice %319 {offsets = [0, 64], sizes = [2, 32], strides = [1, 1]} : vector<2x128xf32> to vector<2x32xf32>
    %323 = vector.extract_strided_slice %318 {offsets = [0, 96], sizes = [2, 32], strides = [1, 1]} : vector<2x128xf32> to vector<2x32xf32>
    %324 = arith.mulf %321, %234 : vector<2x32xf32>
    %325 = arith.mulf %320, %322 : vector<2x32xf32>
    %326 = arith.addf %324, %325 : vector<2x32xf32>
    %327 = math.tanh %326 : vector<2x32xf32>
    %328 = arith.mulf %323, %327 : vector<2x32xf32>
    %329 = vector.extract_strided_slice %71 {offsets = [0, 0], sizes = [2, 128], strides = [1, 1]} : vector<2x256xf32> to vector<2x128xf32>
    %330 = arith.addf %329, %289 : vector<2x128xf32>
    %cst_67 = arith.constant 0.000000e+00 : f32
    %331 = vector.broadcast %cst_67 : f32 to vector<2x128xf32>
    %332 = arith.subf %331, %330 : vector<2x128xf32>
    %333 = math.exp %332 : vector<2x128xf32>
    %cst_68 = arith.constant 1.000000e+00 : f32
    %334 = vector.broadcast %cst_68 : f32 to vector<2x128xf32>
    %335 = arith.addf %334, %333 : vector<2x128xf32>
    %cst_69 = arith.constant 1.000000e+00 : f32
    %336 = vector.broadcast %cst_69 : f32 to vector<2x128xf32>
    %337 = arith.divf %336, %335 : vector<2x128xf32>
    %338 = math.tanh %330 : vector<2x128xf32>
    %339 = vector.extract_strided_slice %337 {offsets = [0, 0], sizes = [2, 32], strides = [1, 1]} : vector<2x128xf32> to vector<2x32xf32>
    %340 = vector.extract_strided_slice %337 {offsets = [0, 32], sizes = [2, 32], strides = [1, 1]} : vector<2x128xf32> to vector<2x32xf32>
    %341 = vector.extract_strided_slice %338 {offsets = [0, 64], sizes = [2, 32], strides = [1, 1]} : vector<2x128xf32> to vector<2x32xf32>
    %342 = vector.extract_strided_slice %337 {offsets = [0, 96], sizes = [2, 32], strides = [1, 1]} : vector<2x128xf32> to vector<2x32xf32>
    %343 = arith.mulf %340, %253 : vector<2x32xf32>
    %344 = arith.mulf %339, %341 : vector<2x32xf32>
    %345 = arith.addf %343, %344 : vector<2x32xf32>
    %346 = math.tanh %345 : vector<2x32xf32>
    %347 = arith.mulf %342, %346 : vector<2x32xf32>
    %348 = vector.extract_strided_slice %89 {offsets = [0, 128], sizes = [2, 128], strides = [1, 1]} : vector<2x256xf32> to vector<2x128xf32>
    %349 = arith.addf %348, %290 : vector<2x128xf32>
    %cst_70 = arith.constant 0.000000e+00 : f32
    %350 = vector.broadcast %cst_70 : f32 to vector<2x128xf32>
    %351 = arith.subf %350, %349 : vector<2x128xf32>
    %352 = math.exp %351 : vector<2x128xf32>
    %cst_71 = arith.constant 1.000000e+00 : f32
    %353 = vector.broadcast %cst_71 : f32 to vector<2x128xf32>
    %354 = arith.addf %353, %352 : vector<2x128xf32>
    %cst_72 = arith.constant 1.000000e+00 : f32
    %355 = vector.broadcast %cst_72 : f32 to vector<2x128xf32>
    %356 = arith.divf %355, %354 : vector<2x128xf32>
    %357 = math.tanh %349 : vector<2x128xf32>
    %358 = vector.extract_strided_slice %356 {offsets = [0, 0], sizes = [2, 32], strides = [1, 1]} : vector<2x128xf32> to vector<2x32xf32>
    %359 = vector.extract_strided_slice %356 {offsets = [0, 32], sizes = [2, 32], strides = [1, 1]} : vector<2x128xf32> to vector<2x32xf32>
    %360 = vector.extract_strided_slice %357 {offsets = [0, 64], sizes = [2, 32], strides = [1, 1]} : vector<2x128xf32> to vector<2x32xf32>
    %361 = vector.extract_strided_slice %356 {offsets = [0, 96], sizes = [2, 32], strides = [1, 1]} : vector<2x128xf32> to vector<2x32xf32>
    %362 = arith.mulf %359, %272 : vector<2x32xf32>
    %363 = arith.mulf %358, %360 : vector<2x32xf32>
    %364 = arith.addf %362, %363 : vector<2x32xf32>
    %365 = math.tanh %364 : vector<2x32xf32>
    %366 = arith.mulf %361, %365 : vector<2x32xf32>
    %367 = arith.mulf %309, %347 : vector<2x32xf32>
    %368 = arith.addf %276, %367 : vector<2x32xf32>
    %369 = arith.mulf %328, %366 : vector<2x32xf32>
    %370 = arith.addf %278, %369 : vector<2x32xf32>
    %371 = arith.mulf %309, %309 : vector<2x32xf32>
    %372 = arith.addf %280, %371 : vector<2x32xf32>
    %373 = arith.mulf %328, %328 : vector<2x32xf32>
    %374 = arith.addf %282, %373 : vector<2x32xf32>
    %375 = arith.mulf %347, %347 : vector<2x32xf32>
    %376 = arith.addf %284, %375 : vector<2x32xf32>
    %377 = arith.mulf %366, %366 : vector<2x32xf32>
    %378 = arith.addf %286, %377 : vector<2x32xf32>
    %cst_73 = arith.constant dense<0.000000e+00> : vector<2x128xf32>
    %379 = tpu.matmul %309, %1, %cst_73 {dimension_numbers = #tpu.dot_dimension_numbers<[1], [0], [0], [1], [0, 0, 1, 1], [], []>} : vector<2x32xf32>, vector<32x128xf32>, vector<2x128xf32> -> vector<2x128xf32>
    %cst_74 = arith.constant dense<0.000000e+00> : vector<2x128xf32>
    %380 = tpu.matmul %328, %2, %cst_74 {dimension_numbers = #tpu.dot_dimension_numbers<[1], [0], [0], [1], [0, 0, 1, 1], [], []>} : vector<2x32xf32>, vector<32x128xf32>, vector<2x128xf32> -> vector<2x128xf32>
    %cst_75 = arith.constant dense<0.000000e+00> : vector<2x128xf32>
    %381 = tpu.matmul %347, %1, %cst_75 {dimension_numbers = #tpu.dot_dimension_numbers<[1], [0], [0], [1], [0, 0, 1, 1], [], []>} : vector<2x32xf32>, vector<32x128xf32>, vector<2x128xf32> -> vector<2x128xf32>
    %cst_76 = arith.constant dense<0.000000e+00> : vector<2x128xf32>
    %382 = tpu.matmul %366, %2, %cst_76 {dimension_numbers = #tpu.dot_dimension_numbers<[1], [0], [0], [1], [0, 0, 1, 1], [], []>} : vector<2x32xf32>, vector<32x128xf32>, vector<2x128xf32> -> vector<2x128xf32>
    %383 = vector.extract_strided_slice %29 {offsets = [0, 0], sizes = [2, 128], strides = [1, 1]} : vector<2x256xf32> to vector<2x128xf32>
    %384 = arith.addf %383, %379 : vector<2x128xf32>
    %cst_77 = arith.constant 0.000000e+00 : f32
    %385 = vector.broadcast %cst_77 : f32 to vector<2x128xf32>
    %386 = arith.subf %385, %384 : vector<2x128xf32>
    %387 = math.exp %386 : vector<2x128xf32>
    %cst_78 = arith.constant 1.000000e+00 : f32
    %388 = vector.broadcast %cst_78 : f32 to vector<2x128xf32>
    %389 = arith.addf %388, %387 : vector<2x128xf32>
    %cst_79 = arith.constant 1.000000e+00 : f32
    %390 = vector.broadcast %cst_79 : f32 to vector<2x128xf32>
    %391 = arith.divf %390, %389 : vector<2x128xf32>
    %392 = math.tanh %384 : vector<2x128xf32>
    %393 = vector.extract_strided_slice %391 {offsets = [0, 0], sizes = [2, 32], strides = [1, 1]} : vector<2x128xf32> to vector<2x32xf32>
    %394 = vector.extract_strided_slice %391 {offsets = [0, 32], sizes = [2, 32], strides = [1, 1]} : vector<2x128xf32> to vector<2x32xf32>
    %395 = vector.extract_strided_slice %392 {offsets = [0, 64], sizes = [2, 32], strides = [1, 1]} : vector<2x128xf32> to vector<2x32xf32>
    %396 = vector.extract_strided_slice %391 {offsets = [0, 96], sizes = [2, 32], strides = [1, 1]} : vector<2x128xf32> to vector<2x32xf32>
    %397 = arith.mulf %394, %307 : vector<2x32xf32>
    %398 = arith.mulf %393, %395 : vector<2x32xf32>
    %399 = arith.addf %397, %398 : vector<2x32xf32>
    %400 = math.tanh %399 : vector<2x32xf32>
    %401 = arith.mulf %396, %400 : vector<2x32xf32>
    %402 = vector.extract_strided_slice %35 {offsets = [0, 128], sizes = [2, 128], strides = [1, 1]} : vector<2x256xf32> to vector<2x128xf32>
    %403 = arith.addf %402, %380 : vector<2x128xf32>
    %cst_80 = arith.constant 0.000000e+00 : f32
    %404 = vector.broadcast %cst_80 : f32 to vector<2x128xf32>
    %405 = arith.subf %404, %403 : vector<2x128xf32>
    %406 = math.exp %405 : vector<2x128xf32>
    %cst_81 = arith.constant 1.000000e+00 : f32
    %407 = vector.broadcast %cst_81 : f32 to vector<2x128xf32>
    %408 = arith.addf %407, %406 : vector<2x128xf32>
    %cst_82 = arith.constant 1.000000e+00 : f32
    %409 = vector.broadcast %cst_82 : f32 to vector<2x128xf32>
    %410 = arith.divf %409, %408 : vector<2x128xf32>
    %411 = math.tanh %403 : vector<2x128xf32>
    %412 = vector.extract_strided_slice %410 {offsets = [0, 0], sizes = [2, 32], strides = [1, 1]} : vector<2x128xf32> to vector<2x32xf32>
    %413 = vector.extract_strided_slice %410 {offsets = [0, 32], sizes = [2, 32], strides = [1, 1]} : vector<2x128xf32> to vector<2x32xf32>
    %414 = vector.extract_strided_slice %411 {offsets = [0, 64], sizes = [2, 32], strides = [1, 1]} : vector<2x128xf32> to vector<2x32xf32>
    %415 = vector.extract_strided_slice %410 {offsets = [0, 96], sizes = [2, 32], strides = [1, 1]} : vector<2x128xf32> to vector<2x32xf32>
    %416 = arith.mulf %413, %326 : vector<2x32xf32>
    %417 = arith.mulf %412, %414 : vector<2x32xf32>
    %418 = arith.addf %416, %417 : vector<2x32xf32>
    %419 = math.tanh %418 : vector<2x32xf32>
    %420 = arith.mulf %415, %419 : vector<2x32xf32>
    %421 = vector.extract_strided_slice %77 {offsets = [0, 0], sizes = [2, 128], strides = [1, 1]} : vector<2x256xf32> to vector<2x128xf32>
    %422 = arith.addf %421, %381 : vector<2x128xf32>
    %cst_83 = arith.constant 0.000000e+00 : f32
    %423 = vector.broadcast %cst_83 : f32 to vector<2x128xf32>
    %424 = arith.subf %423, %422 : vector<2x128xf32>
    %425 = math.exp %424 : vector<2x128xf32>
    %cst_84 = arith.constant 1.000000e+00 : f32
    %426 = vector.broadcast %cst_84 : f32 to vector<2x128xf32>
    %427 = arith.addf %426, %425 : vector<2x128xf32>
    %cst_85 = arith.constant 1.000000e+00 : f32
    %428 = vector.broadcast %cst_85 : f32 to vector<2x128xf32>
    %429 = arith.divf %428, %427 : vector<2x128xf32>
    %430 = math.tanh %422 : vector<2x128xf32>
    %431 = vector.extract_strided_slice %429 {offsets = [0, 0], sizes = [2, 32], strides = [1, 1]} : vector<2x128xf32> to vector<2x32xf32>
    %432 = vector.extract_strided_slice %429 {offsets = [0, 32], sizes = [2, 32], strides = [1, 1]} : vector<2x128xf32> to vector<2x32xf32>
    %433 = vector.extract_strided_slice %430 {offsets = [0, 64], sizes = [2, 32], strides = [1, 1]} : vector<2x128xf32> to vector<2x32xf32>
    %434 = vector.extract_strided_slice %429 {offsets = [0, 96], sizes = [2, 32], strides = [1, 1]} : vector<2x128xf32> to vector<2x32xf32>
    %435 = arith.mulf %432, %345 : vector<2x32xf32>
    %436 = arith.mulf %431, %433 : vector<2x32xf32>
    %437 = arith.addf %435, %436 : vector<2x32xf32>
    %438 = math.tanh %437 : vector<2x32xf32>
    %439 = arith.mulf %434, %438 : vector<2x32xf32>
    %440 = vector.extract_strided_slice %83 {offsets = [0, 128], sizes = [2, 128], strides = [1, 1]} : vector<2x256xf32> to vector<2x128xf32>
    %441 = arith.addf %440, %382 : vector<2x128xf32>
    %cst_86 = arith.constant 0.000000e+00 : f32
    %442 = vector.broadcast %cst_86 : f32 to vector<2x128xf32>
    %443 = arith.subf %442, %441 : vector<2x128xf32>
    %444 = math.exp %443 : vector<2x128xf32>
    %cst_87 = arith.constant 1.000000e+00 : f32
    %445 = vector.broadcast %cst_87 : f32 to vector<2x128xf32>
    %446 = arith.addf %445, %444 : vector<2x128xf32>
    %cst_88 = arith.constant 1.000000e+00 : f32
    %447 = vector.broadcast %cst_88 : f32 to vector<2x128xf32>
    %448 = arith.divf %447, %446 : vector<2x128xf32>
    %449 = math.tanh %441 : vector<2x128xf32>
    %450 = vector.extract_strided_slice %448 {offsets = [0, 0], sizes = [2, 32], strides = [1, 1]} : vector<2x128xf32> to vector<2x32xf32>
    %451 = vector.extract_strided_slice %448 {offsets = [0, 32], sizes = [2, 32], strides = [1, 1]} : vector<2x128xf32> to vector<2x32xf32>
    %452 = vector.extract_strided_slice %449 {offsets = [0, 64], sizes = [2, 32], strides = [1, 1]} : vector<2x128xf32> to vector<2x32xf32>
    %453 = vector.extract_strided_slice %448 {offsets = [0, 96], sizes = [2, 32], strides = [1, 1]} : vector<2x128xf32> to vector<2x32xf32>
    %454 = arith.mulf %451, %364 : vector<2x32xf32>
    %455 = arith.mulf %450, %452 : vector<2x32xf32>
    %456 = arith.addf %454, %455 : vector<2x32xf32>
    %457 = math.tanh %456 : vector<2x32xf32>
    %458 = arith.mulf %453, %457 : vector<2x32xf32>
    %459 = arith.mulf %401, %439 : vector<2x32xf32>
    %460 = arith.addf %368, %459 : vector<2x32xf32>
    %461 = arith.mulf %420, %458 : vector<2x32xf32>
    %462 = arith.addf %370, %461 : vector<2x32xf32>
    %463 = arith.mulf %401, %401 : vector<2x32xf32>
    %464 = arith.addf %372, %463 : vector<2x32xf32>
    %465 = arith.mulf %420, %420 : vector<2x32xf32>
    %466 = arith.addf %374, %465 : vector<2x32xf32>
    %467 = arith.mulf %439, %439 : vector<2x32xf32>
    %468 = arith.addf %376, %467 : vector<2x32xf32>
    %469 = arith.mulf %458, %458 : vector<2x32xf32>
    %470 = arith.addf %378, %469 : vector<2x32xf32>
    %cst_89 = arith.constant dense<0.000000e+00> : vector<2x128xf32>
    %471 = tpu.matmul %401, %1, %cst_89 {dimension_numbers = #tpu.dot_dimension_numbers<[1], [0], [0], [1], [0, 0, 1, 1], [], []>} : vector<2x32xf32>, vector<32x128xf32>, vector<2x128xf32> -> vector<2x128xf32>
    %cst_90 = arith.constant dense<0.000000e+00> : vector<2x128xf32>
    %472 = tpu.matmul %420, %2, %cst_90 {dimension_numbers = #tpu.dot_dimension_numbers<[1], [0], [0], [1], [0, 0, 1, 1], [], []>} : vector<2x32xf32>, vector<32x128xf32>, vector<2x128xf32> -> vector<2x128xf32>
    %cst_91 = arith.constant dense<0.000000e+00> : vector<2x128xf32>
    %473 = tpu.matmul %439, %1, %cst_91 {dimension_numbers = #tpu.dot_dimension_numbers<[1], [0], [0], [1], [0, 0, 1, 1], [], []>} : vector<2x32xf32>, vector<32x128xf32>, vector<2x128xf32> -> vector<2x128xf32>
    %cst_92 = arith.constant dense<0.000000e+00> : vector<2x128xf32>
    %474 = tpu.matmul %458, %2, %cst_92 {dimension_numbers = #tpu.dot_dimension_numbers<[1], [0], [0], [1], [0, 0, 1, 1], [], []>} : vector<2x32xf32>, vector<32x128xf32>, vector<2x128xf32> -> vector<2x128xf32>
    %475 = vector.extract_strided_slice %35 {offsets = [0, 0], sizes = [2, 128], strides = [1, 1]} : vector<2x256xf32> to vector<2x128xf32>
    %476 = arith.addf %475, %471 : vector<2x128xf32>
    %cst_93 = arith.constant 0.000000e+00 : f32
    %477 = vector.broadcast %cst_93 : f32 to vector<2x128xf32>
    %478 = arith.subf %477, %476 : vector<2x128xf32>
    %479 = math.exp %478 : vector<2x128xf32>
    %cst_94 = arith.constant 1.000000e+00 : f32
    %480 = vector.broadcast %cst_94 : f32 to vector<2x128xf32>
    %481 = arith.addf %480, %479 : vector<2x128xf32>
    %cst_95 = arith.constant 1.000000e+00 : f32
    %482 = vector.broadcast %cst_95 : f32 to vector<2x128xf32>
    %483 = arith.divf %482, %481 : vector<2x128xf32>
    %484 = math.tanh %476 : vector<2x128xf32>
    %485 = vector.extract_strided_slice %483 {offsets = [0, 0], sizes = [2, 32], strides = [1, 1]} : vector<2x128xf32> to vector<2x32xf32>
    %486 = vector.extract_strided_slice %483 {offsets = [0, 32], sizes = [2, 32], strides = [1, 1]} : vector<2x128xf32> to vector<2x32xf32>
    %487 = vector.extract_strided_slice %484 {offsets = [0, 64], sizes = [2, 32], strides = [1, 1]} : vector<2x128xf32> to vector<2x32xf32>
    %488 = vector.extract_strided_slice %483 {offsets = [0, 96], sizes = [2, 32], strides = [1, 1]} : vector<2x128xf32> to vector<2x32xf32>
    %489 = arith.mulf %486, %399 : vector<2x32xf32>
    %490 = arith.mulf %485, %487 : vector<2x32xf32>
    %491 = arith.addf %489, %490 : vector<2x32xf32>
    %492 = math.tanh %491 : vector<2x32xf32>
    %493 = arith.mulf %488, %492 : vector<2x32xf32>
    %494 = vector.extract_strided_slice %29 {offsets = [0, 128], sizes = [2, 128], strides = [1, 1]} : vector<2x256xf32> to vector<2x128xf32>
    %495 = arith.addf %494, %472 : vector<2x128xf32>
    %cst_96 = arith.constant 0.000000e+00 : f32
    %496 = vector.broadcast %cst_96 : f32 to vector<2x128xf32>
    %497 = arith.subf %496, %495 : vector<2x128xf32>
    %498 = math.exp %497 : vector<2x128xf32>
    %cst_97 = arith.constant 1.000000e+00 : f32
    %499 = vector.broadcast %cst_97 : f32 to vector<2x128xf32>
    %500 = arith.addf %499, %498 : vector<2x128xf32>
    %cst_98 = arith.constant 1.000000e+00 : f32
    %501 = vector.broadcast %cst_98 : f32 to vector<2x128xf32>
    %502 = arith.divf %501, %500 : vector<2x128xf32>
    %503 = math.tanh %495 : vector<2x128xf32>
    %504 = vector.extract_strided_slice %502 {offsets = [0, 0], sizes = [2, 32], strides = [1, 1]} : vector<2x128xf32> to vector<2x32xf32>
    %505 = vector.extract_strided_slice %502 {offsets = [0, 32], sizes = [2, 32], strides = [1, 1]} : vector<2x128xf32> to vector<2x32xf32>
    %506 = vector.extract_strided_slice %503 {offsets = [0, 64], sizes = [2, 32], strides = [1, 1]} : vector<2x128xf32> to vector<2x32xf32>
    %507 = vector.extract_strided_slice %502 {offsets = [0, 96], sizes = [2, 32], strides = [1, 1]} : vector<2x128xf32> to vector<2x32xf32>
    %508 = arith.mulf %505, %418 : vector<2x32xf32>
    %509 = arith.mulf %504, %506 : vector<2x32xf32>
    %510 = arith.addf %508, %509 : vector<2x32xf32>
    %511 = math.tanh %510 : vector<2x32xf32>
    %512 = arith.mulf %507, %511 : vector<2x32xf32>
    %513 = vector.extract_strided_slice %83 {offsets = [0, 0], sizes = [2, 128], strides = [1, 1]} : vector<2x256xf32> to vector<2x128xf32>
    %514 = arith.addf %513, %473 : vector<2x128xf32>
    %cst_99 = arith.constant 0.000000e+00 : f32
    %515 = vector.broadcast %cst_99 : f32 to vector<2x128xf32>
    %516 = arith.subf %515, %514 : vector<2x128xf32>
    %517 = math.exp %516 : vector<2x128xf32>
    %cst_100 = arith.constant 1.000000e+00 : f32
    %518 = vector.broadcast %cst_100 : f32 to vector<2x128xf32>
    %519 = arith.addf %518, %517 : vector<2x128xf32>
    %cst_101 = arith.constant 1.000000e+00 : f32
    %520 = vector.broadcast %cst_101 : f32 to vector<2x128xf32>
    %521 = arith.divf %520, %519 : vector<2x128xf32>
    %522 = math.tanh %514 : vector<2x128xf32>
    %523 = vector.extract_strided_slice %521 {offsets = [0, 0], sizes = [2, 32], strides = [1, 1]} : vector<2x128xf32> to vector<2x32xf32>
    %524 = vector.extract_strided_slice %521 {offsets = [0, 32], sizes = [2, 32], strides = [1, 1]} : vector<2x128xf32> to vector<2x32xf32>
    %525 = vector.extract_strided_slice %522 {offsets = [0, 64], sizes = [2, 32], strides = [1, 1]} : vector<2x128xf32> to vector<2x32xf32>
    %526 = vector.extract_strided_slice %521 {offsets = [0, 96], sizes = [2, 32], strides = [1, 1]} : vector<2x128xf32> to vector<2x32xf32>
    %527 = arith.mulf %524, %437 : vector<2x32xf32>
    %528 = arith.mulf %523, %525 : vector<2x32xf32>
    %529 = arith.addf %527, %528 : vector<2x32xf32>
    %530 = math.tanh %529 : vector<2x32xf32>
    %531 = arith.mulf %526, %530 : vector<2x32xf32>
    %532 = vector.extract_strided_slice %77 {offsets = [0, 128], sizes = [2, 128], strides = [1, 1]} : vector<2x256xf32> to vector<2x128xf32>
    %533 = arith.addf %532, %474 : vector<2x128xf32>
    %cst_102 = arith.constant 0.000000e+00 : f32
    %534 = vector.broadcast %cst_102 : f32 to vector<2x128xf32>
    %535 = arith.subf %534, %533 : vector<2x128xf32>
    %536 = math.exp %535 : vector<2x128xf32>
    %cst_103 = arith.constant 1.000000e+00 : f32
    %537 = vector.broadcast %cst_103 : f32 to vector<2x128xf32>
    %538 = arith.addf %537, %536 : vector<2x128xf32>
    %cst_104 = arith.constant 1.000000e+00 : f32
    %539 = vector.broadcast %cst_104 : f32 to vector<2x128xf32>
    %540 = arith.divf %539, %538 : vector<2x128xf32>
    %541 = math.tanh %533 : vector<2x128xf32>
    %542 = vector.extract_strided_slice %540 {offsets = [0, 0], sizes = [2, 32], strides = [1, 1]} : vector<2x128xf32> to vector<2x32xf32>
    %543 = vector.extract_strided_slice %540 {offsets = [0, 32], sizes = [2, 32], strides = [1, 1]} : vector<2x128xf32> to vector<2x32xf32>
    %544 = vector.extract_strided_slice %541 {offsets = [0, 64], sizes = [2, 32], strides = [1, 1]} : vector<2x128xf32> to vector<2x32xf32>
    %545 = vector.extract_strided_slice %540 {offsets = [0, 96], sizes = [2, 32], strides = [1, 1]} : vector<2x128xf32> to vector<2x32xf32>
    %546 = arith.mulf %543, %456 : vector<2x32xf32>
    %547 = arith.mulf %542, %544 : vector<2x32xf32>
    %548 = arith.addf %546, %547 : vector<2x32xf32>
    %549 = math.tanh %548 : vector<2x32xf32>
    %550 = arith.mulf %545, %549 : vector<2x32xf32>
    %551 = arith.mulf %493, %531 : vector<2x32xf32>
    %552 = arith.addf %460, %551 : vector<2x32xf32>
    %553 = arith.mulf %512, %550 : vector<2x32xf32>
    %554 = arith.addf %462, %553 : vector<2x32xf32>
    %555 = arith.mulf %493, %493 : vector<2x32xf32>
    %556 = arith.addf %464, %555 : vector<2x32xf32>
    %557 = arith.mulf %512, %512 : vector<2x32xf32>
    %558 = arith.addf %466, %557 : vector<2x32xf32>
    %559 = arith.mulf %531, %531 : vector<2x32xf32>
    %560 = arith.addf %468, %559 : vector<2x32xf32>
    %561 = arith.mulf %550, %550 : vector<2x32xf32>
    %562 = arith.addf %470, %561 : vector<2x32xf32>
    %cst_105 = arith.constant dense<0.000000e+00> : vector<2x128xf32>
    %563 = tpu.matmul %493, %1, %cst_105 {dimension_numbers = #tpu.dot_dimension_numbers<[1], [0], [0], [1], [0, 0, 1, 1], [], []>} : vector<2x32xf32>, vector<32x128xf32>, vector<2x128xf32> -> vector<2x128xf32>
    %cst_106 = arith.constant dense<0.000000e+00> : vector<2x128xf32>
    %564 = tpu.matmul %512, %2, %cst_106 {dimension_numbers = #tpu.dot_dimension_numbers<[1], [0], [0], [1], [0, 0, 1, 1], [], []>} : vector<2x32xf32>, vector<32x128xf32>, vector<2x128xf32> -> vector<2x128xf32>
    %cst_107 = arith.constant dense<0.000000e+00> : vector<2x128xf32>
    %565 = tpu.matmul %531, %1, %cst_107 {dimension_numbers = #tpu.dot_dimension_numbers<[1], [0], [0], [1], [0, 0, 1, 1], [], []>} : vector<2x32xf32>, vector<32x128xf32>, vector<2x128xf32> -> vector<2x128xf32>
    %cst_108 = arith.constant dense<0.000000e+00> : vector<2x128xf32>
    %566 = tpu.matmul %550, %2, %cst_108 {dimension_numbers = #tpu.dot_dimension_numbers<[1], [0], [0], [1], [0, 0, 1, 1], [], []>} : vector<2x32xf32>, vector<32x128xf32>, vector<2x128xf32> -> vector<2x128xf32>
    %567 = vector.extract_strided_slice %41 {offsets = [0, 0], sizes = [2, 128], strides = [1, 1]} : vector<2x256xf32> to vector<2x128xf32>
    %568 = arith.addf %567, %563 : vector<2x128xf32>
    %cst_109 = arith.constant 0.000000e+00 : f32
    %569 = vector.broadcast %cst_109 : f32 to vector<2x128xf32>
    %570 = arith.subf %569, %568 : vector<2x128xf32>
    %571 = math.exp %570 : vector<2x128xf32>
    %cst_110 = arith.constant 1.000000e+00 : f32
    %572 = vector.broadcast %cst_110 : f32 to vector<2x128xf32>
    %573 = arith.addf %572, %571 : vector<2x128xf32>
    %cst_111 = arith.constant 1.000000e+00 : f32
    %574 = vector.broadcast %cst_111 : f32 to vector<2x128xf32>
    %575 = arith.divf %574, %573 : vector<2x128xf32>
    %576 = math.tanh %568 : vector<2x128xf32>
    %577 = vector.extract_strided_slice %575 {offsets = [0, 0], sizes = [2, 32], strides = [1, 1]} : vector<2x128xf32> to vector<2x32xf32>
    %578 = vector.extract_strided_slice %575 {offsets = [0, 32], sizes = [2, 32], strides = [1, 1]} : vector<2x128xf32> to vector<2x32xf32>
    %579 = vector.extract_strided_slice %576 {offsets = [0, 64], sizes = [2, 32], strides = [1, 1]} : vector<2x128xf32> to vector<2x32xf32>
    %580 = vector.extract_strided_slice %575 {offsets = [0, 96], sizes = [2, 32], strides = [1, 1]} : vector<2x128xf32> to vector<2x32xf32>
    %581 = arith.mulf %578, %491 : vector<2x32xf32>
    %582 = arith.mulf %577, %579 : vector<2x32xf32>
    %583 = arith.addf %581, %582 : vector<2x32xf32>
    %584 = math.tanh %583 : vector<2x32xf32>
    %585 = arith.mulf %580, %584 : vector<2x32xf32>
    %586 = vector.extract_strided_slice %23 {offsets = [0, 128], sizes = [2, 128], strides = [1, 1]} : vector<2x256xf32> to vector<2x128xf32>
    %587 = arith.addf %586, %564 : vector<2x128xf32>
    %cst_112 = arith.constant 0.000000e+00 : f32
    %588 = vector.broadcast %cst_112 : f32 to vector<2x128xf32>
    %589 = arith.subf %588, %587 : vector<2x128xf32>
    %590 = math.exp %589 : vector<2x128xf32>
    %cst_113 = arith.constant 1.000000e+00 : f32
    %591 = vector.broadcast %cst_113 : f32 to vector<2x128xf32>
    %592 = arith.addf %591, %590 : vector<2x128xf32>
    %cst_114 = arith.constant 1.000000e+00 : f32
    %593 = vector.broadcast %cst_114 : f32 to vector<2x128xf32>
    %594 = arith.divf %593, %592 : vector<2x128xf32>
    %595 = math.tanh %587 : vector<2x128xf32>
    %596 = vector.extract_strided_slice %594 {offsets = [0, 0], sizes = [2, 32], strides = [1, 1]} : vector<2x128xf32> to vector<2x32xf32>
    %597 = vector.extract_strided_slice %594 {offsets = [0, 32], sizes = [2, 32], strides = [1, 1]} : vector<2x128xf32> to vector<2x32xf32>
    %598 = vector.extract_strided_slice %595 {offsets = [0, 64], sizes = [2, 32], strides = [1, 1]} : vector<2x128xf32> to vector<2x32xf32>
    %599 = vector.extract_strided_slice %594 {offsets = [0, 96], sizes = [2, 32], strides = [1, 1]} : vector<2x128xf32> to vector<2x32xf32>
    %600 = arith.mulf %597, %510 : vector<2x32xf32>
    %601 = arith.mulf %596, %598 : vector<2x32xf32>
    %602 = arith.addf %600, %601 : vector<2x32xf32>
    %603 = math.tanh %602 : vector<2x32xf32>
    %604 = arith.mulf %599, %603 : vector<2x32xf32>
    %605 = vector.extract_strided_slice %89 {offsets = [0, 0], sizes = [2, 128], strides = [1, 1]} : vector<2x256xf32> to vector<2x128xf32>
    %606 = arith.addf %605, %565 : vector<2x128xf32>
    %cst_115 = arith.constant 0.000000e+00 : f32
    %607 = vector.broadcast %cst_115 : f32 to vector<2x128xf32>
    %608 = arith.subf %607, %606 : vector<2x128xf32>
    %609 = math.exp %608 : vector<2x128xf32>
    %cst_116 = arith.constant 1.000000e+00 : f32
    %610 = vector.broadcast %cst_116 : f32 to vector<2x128xf32>
    %611 = arith.addf %610, %609 : vector<2x128xf32>
    %cst_117 = arith.constant 1.000000e+00 : f32
    %612 = vector.broadcast %cst_117 : f32 to vector<2x128xf32>
    %613 = arith.divf %612, %611 : vector<2x128xf32>
    %614 = math.tanh %606 : vector<2x128xf32>
    %615 = vector.extract_strided_slice %613 {offsets = [0, 0], sizes = [2, 32], strides = [1, 1]} : vector<2x128xf32> to vector<2x32xf32>
    %616 = vector.extract_strided_slice %613 {offsets = [0, 32], sizes = [2, 32], strides = [1, 1]} : vector<2x128xf32> to vector<2x32xf32>
    %617 = vector.extract_strided_slice %614 {offsets = [0, 64], sizes = [2, 32], strides = [1, 1]} : vector<2x128xf32> to vector<2x32xf32>
    %618 = vector.extract_strided_slice %613 {offsets = [0, 96], sizes = [2, 32], strides = [1, 1]} : vector<2x128xf32> to vector<2x32xf32>
    %619 = arith.mulf %616, %529 : vector<2x32xf32>
    %620 = arith.mulf %615, %617 : vector<2x32xf32>
    %621 = arith.addf %619, %620 : vector<2x32xf32>
    %622 = math.tanh %621 : vector<2x32xf32>
    %623 = arith.mulf %618, %622 : vector<2x32xf32>
    %624 = vector.extract_strided_slice %71 {offsets = [0, 128], sizes = [2, 128], strides = [1, 1]} : vector<2x256xf32> to vector<2x128xf32>
    %625 = arith.addf %624, %566 : vector<2x128xf32>
    %cst_118 = arith.constant 0.000000e+00 : f32
    %626 = vector.broadcast %cst_118 : f32 to vector<2x128xf32>
    %627 = arith.subf %626, %625 : vector<2x128xf32>
    %628 = math.exp %627 : vector<2x128xf32>
    %cst_119 = arith.constant 1.000000e+00 : f32
    %629 = vector.broadcast %cst_119 : f32 to vector<2x128xf32>
    %630 = arith.addf %629, %628 : vector<2x128xf32>
    %cst_120 = arith.constant 1.000000e+00 : f32
    %631 = vector.broadcast %cst_120 : f32 to vector<2x128xf32>
    %632 = arith.divf %631, %630 : vector<2x128xf32>
    %633 = math.tanh %625 : vector<2x128xf32>
    %634 = vector.extract_strided_slice %632 {offsets = [0, 0], sizes = [2, 32], strides = [1, 1]} : vector<2x128xf32> to vector<2x32xf32>
    %635 = vector.extract_strided_slice %632 {offsets = [0, 32], sizes = [2, 32], strides = [1, 1]} : vector<2x128xf32> to vector<2x32xf32>
    %636 = vector.extract_strided_slice %633 {offsets = [0, 64], sizes = [2, 32], strides = [1, 1]} : vector<2x128xf32> to vector<2x32xf32>
    %637 = vector.extract_strided_slice %632 {offsets = [0, 96], sizes = [2, 32], strides = [1, 1]} : vector<2x128xf32> to vector<2x32xf32>
    %638 = arith.mulf %635, %548 : vector<2x32xf32>
    %639 = arith.mulf %634, %636 : vector<2x32xf32>
    %640 = arith.addf %638, %639 : vector<2x32xf32>
    %641 = math.tanh %640 : vector<2x32xf32>
    %642 = arith.mulf %637, %641 : vector<2x32xf32>
    %643 = arith.mulf %585, %623 : vector<2x32xf32>
    %644 = arith.addf %552, %643 : vector<2x32xf32>
    %645 = arith.mulf %604, %642 : vector<2x32xf32>
    %646 = arith.addf %554, %645 : vector<2x32xf32>
    %647 = arith.mulf %585, %585 : vector<2x32xf32>
    %648 = arith.addf %556, %647 : vector<2x32xf32>
    %649 = arith.mulf %604, %604 : vector<2x32xf32>
    %650 = arith.addf %558, %649 : vector<2x32xf32>
    %651 = arith.mulf %623, %623 : vector<2x32xf32>
    %652 = arith.addf %560, %651 : vector<2x32xf32>
    %653 = arith.mulf %642, %642 : vector<2x32xf32>
    %654 = arith.addf %562, %653 : vector<2x32xf32>
    %cst_121 = arith.constant dense<0.000000e+00> : vector<2x128xf32>
    %655 = tpu.matmul %585, %1, %cst_121 {dimension_numbers = #tpu.dot_dimension_numbers<[1], [0], [0], [1], [0, 0, 1, 1], [], []>} : vector<2x32xf32>, vector<32x128xf32>, vector<2x128xf32> -> vector<2x128xf32>
    %cst_122 = arith.constant dense<0.000000e+00> : vector<2x128xf32>
    %656 = tpu.matmul %604, %2, %cst_122 {dimension_numbers = #tpu.dot_dimension_numbers<[1], [0], [0], [1], [0, 0, 1, 1], [], []>} : vector<2x32xf32>, vector<32x128xf32>, vector<2x128xf32> -> vector<2x128xf32>
    %cst_123 = arith.constant dense<0.000000e+00> : vector<2x128xf32>
    %657 = tpu.matmul %623, %1, %cst_123 {dimension_numbers = #tpu.dot_dimension_numbers<[1], [0], [0], [1], [0, 0, 1, 1], [], []>} : vector<2x32xf32>, vector<32x128xf32>, vector<2x128xf32> -> vector<2x128xf32>
    %cst_124 = arith.constant dense<0.000000e+00> : vector<2x128xf32>
    %658 = tpu.matmul %642, %2, %cst_124 {dimension_numbers = #tpu.dot_dimension_numbers<[1], [0], [0], [1], [0, 0, 1, 1], [], []>} : vector<2x32xf32>, vector<32x128xf32>, vector<2x128xf32> -> vector<2x128xf32>
    %659 = vector.extract_strided_slice %47 {offsets = [0, 0], sizes = [2, 128], strides = [1, 1]} : vector<2x256xf32> to vector<2x128xf32>
    %660 = arith.addf %659, %655 : vector<2x128xf32>
    %cst_125 = arith.constant 0.000000e+00 : f32
    %661 = vector.broadcast %cst_125 : f32 to vector<2x128xf32>
    %662 = arith.subf %661, %660 : vector<2x128xf32>
    %663 = math.exp %662 : vector<2x128xf32>
    %cst_126 = arith.constant 1.000000e+00 : f32
    %664 = vector.broadcast %cst_126 : f32 to vector<2x128xf32>
    %665 = arith.addf %664, %663 : vector<2x128xf32>
    %cst_127 = arith.constant 1.000000e+00 : f32
    %666 = vector.broadcast %cst_127 : f32 to vector<2x128xf32>
    %667 = arith.divf %666, %665 : vector<2x128xf32>
    %668 = math.tanh %660 : vector<2x128xf32>
    %669 = vector.extract_strided_slice %667 {offsets = [0, 0], sizes = [2, 32], strides = [1, 1]} : vector<2x128xf32> to vector<2x32xf32>
    %670 = vector.extract_strided_slice %667 {offsets = [0, 32], sizes = [2, 32], strides = [1, 1]} : vector<2x128xf32> to vector<2x32xf32>
    %671 = vector.extract_strided_slice %668 {offsets = [0, 64], sizes = [2, 32], strides = [1, 1]} : vector<2x128xf32> to vector<2x32xf32>
    %672 = vector.extract_strided_slice %667 {offsets = [0, 96], sizes = [2, 32], strides = [1, 1]} : vector<2x128xf32> to vector<2x32xf32>
    %673 = arith.mulf %670, %583 : vector<2x32xf32>
    %674 = arith.mulf %669, %671 : vector<2x32xf32>
    %675 = arith.addf %673, %674 : vector<2x32xf32>
    %676 = math.tanh %675 : vector<2x32xf32>
    %677 = arith.mulf %672, %676 : vector<2x32xf32>
    %678 = vector.extract_strided_slice %17 {offsets = [0, 128], sizes = [2, 128], strides = [1, 1]} : vector<2x256xf32> to vector<2x128xf32>
    %679 = arith.addf %678, %656 : vector<2x128xf32>
    %cst_128 = arith.constant 0.000000e+00 : f32
    %680 = vector.broadcast %cst_128 : f32 to vector<2x128xf32>
    %681 = arith.subf %680, %679 : vector<2x128xf32>
    %682 = math.exp %681 : vector<2x128xf32>
    %cst_129 = arith.constant 1.000000e+00 : f32
    %683 = vector.broadcast %cst_129 : f32 to vector<2x128xf32>
    %684 = arith.addf %683, %682 : vector<2x128xf32>
    %cst_130 = arith.constant 1.000000e+00 : f32
    %685 = vector.broadcast %cst_130 : f32 to vector<2x128xf32>
    %686 = arith.divf %685, %684 : vector<2x128xf32>
    %687 = math.tanh %679 : vector<2x128xf32>
    %688 = vector.extract_strided_slice %686 {offsets = [0, 0], sizes = [2, 32], strides = [1, 1]} : vector<2x128xf32> to vector<2x32xf32>
    %689 = vector.extract_strided_slice %686 {offsets = [0, 32], sizes = [2, 32], strides = [1, 1]} : vector<2x128xf32> to vector<2x32xf32>
    %690 = vector.extract_strided_slice %687 {offsets = [0, 64], sizes = [2, 32], strides = [1, 1]} : vector<2x128xf32> to vector<2x32xf32>
    %691 = vector.extract_strided_slice %686 {offsets = [0, 96], sizes = [2, 32], strides = [1, 1]} : vector<2x128xf32> to vector<2x32xf32>
    %692 = arith.mulf %689, %602 : vector<2x32xf32>
    %693 = arith.mulf %688, %690 : vector<2x32xf32>
    %694 = arith.addf %692, %693 : vector<2x32xf32>
    %695 = math.tanh %694 : vector<2x32xf32>
    %696 = arith.mulf %691, %695 : vector<2x32xf32>
    %697 = vector.extract_strided_slice %95 {offsets = [0, 0], sizes = [2, 128], strides = [1, 1]} : vector<2x256xf32> to vector<2x128xf32>
    %698 = arith.addf %697, %657 : vector<2x128xf32>
    %cst_131 = arith.constant 0.000000e+00 : f32
    %699 = vector.broadcast %cst_131 : f32 to vector<2x128xf32>
    %700 = arith.subf %699, %698 : vector<2x128xf32>
    %701 = math.exp %700 : vector<2x128xf32>
    %cst_132 = arith.constant 1.000000e+00 : f32
    %702 = vector.broadcast %cst_132 : f32 to vector<2x128xf32>
    %703 = arith.addf %702, %701 : vector<2x128xf32>
    %cst_133 = arith.constant 1.000000e+00 : f32
    %704 = vector.broadcast %cst_133 : f32 to vector<2x128xf32>
    %705 = arith.divf %704, %703 : vector<2x128xf32>
    %706 = math.tanh %698 : vector<2x128xf32>
    %707 = vector.extract_strided_slice %705 {offsets = [0, 0], sizes = [2, 32], strides = [1, 1]} : vector<2x128xf32> to vector<2x32xf32>
    %708 = vector.extract_strided_slice %705 {offsets = [0, 32], sizes = [2, 32], strides = [1, 1]} : vector<2x128xf32> to vector<2x32xf32>
    %709 = vector.extract_strided_slice %706 {offsets = [0, 64], sizes = [2, 32], strides = [1, 1]} : vector<2x128xf32> to vector<2x32xf32>
    %710 = vector.extract_strided_slice %705 {offsets = [0, 96], sizes = [2, 32], strides = [1, 1]} : vector<2x128xf32> to vector<2x32xf32>
    %711 = arith.mulf %708, %621 : vector<2x32xf32>
    %712 = arith.mulf %707, %709 : vector<2x32xf32>
    %713 = arith.addf %711, %712 : vector<2x32xf32>
    %714 = math.tanh %713 : vector<2x32xf32>
    %715 = arith.mulf %710, %714 : vector<2x32xf32>
    %716 = vector.extract_strided_slice %65 {offsets = [0, 128], sizes = [2, 128], strides = [1, 1]} : vector<2x256xf32> to vector<2x128xf32>
    %717 = arith.addf %716, %658 : vector<2x128xf32>
    %cst_134 = arith.constant 0.000000e+00 : f32
    %718 = vector.broadcast %cst_134 : f32 to vector<2x128xf32>
    %719 = arith.subf %718, %717 : vector<2x128xf32>
    %720 = math.exp %719 : vector<2x128xf32>
    %cst_135 = arith.constant 1.000000e+00 : f32
    %721 = vector.broadcast %cst_135 : f32 to vector<2x128xf32>
    %722 = arith.addf %721, %720 : vector<2x128xf32>
    %cst_136 = arith.constant 1.000000e+00 : f32
    %723 = vector.broadcast %cst_136 : f32 to vector<2x128xf32>
    %724 = arith.divf %723, %722 : vector<2x128xf32>
    %725 = math.tanh %717 : vector<2x128xf32>
    %726 = vector.extract_strided_slice %724 {offsets = [0, 0], sizes = [2, 32], strides = [1, 1]} : vector<2x128xf32> to vector<2x32xf32>
    %727 = vector.extract_strided_slice %724 {offsets = [0, 32], sizes = [2, 32], strides = [1, 1]} : vector<2x128xf32> to vector<2x32xf32>
    %728 = vector.extract_strided_slice %725 {offsets = [0, 64], sizes = [2, 32], strides = [1, 1]} : vector<2x128xf32> to vector<2x32xf32>
    %729 = vector.extract_strided_slice %724 {offsets = [0, 96], sizes = [2, 32], strides = [1, 1]} : vector<2x128xf32> to vector<2x32xf32>
    %730 = arith.mulf %727, %640 : vector<2x32xf32>
    %731 = arith.mulf %726, %728 : vector<2x32xf32>
    %732 = arith.addf %730, %731 : vector<2x32xf32>
    %733 = math.tanh %732 : vector<2x32xf32>
    %734 = arith.mulf %729, %733 : vector<2x32xf32>
    %735 = arith.mulf %677, %715 : vector<2x32xf32>
    %736 = arith.addf %644, %735 : vector<2x32xf32>
    %737 = arith.mulf %696, %734 : vector<2x32xf32>
    %738 = arith.addf %646, %737 : vector<2x32xf32>
    %739 = arith.mulf %677, %677 : vector<2x32xf32>
    %740 = arith.addf %648, %739 : vector<2x32xf32>
    %741 = arith.mulf %696, %696 : vector<2x32xf32>
    %742 = arith.addf %650, %741 : vector<2x32xf32>
    %743 = arith.mulf %715, %715 : vector<2x32xf32>
    %744 = arith.addf %652, %743 : vector<2x32xf32>
    %745 = arith.mulf %734, %734 : vector<2x32xf32>
    %746 = arith.addf %654, %745 : vector<2x32xf32>
    %cst_137 = arith.constant dense<0.000000e+00> : vector<2x128xf32>
    %747 = tpu.matmul %677, %1, %cst_137 {dimension_numbers = #tpu.dot_dimension_numbers<[1], [0], [0], [1], [0, 0, 1, 1], [], []>} : vector<2x32xf32>, vector<32x128xf32>, vector<2x128xf32> -> vector<2x128xf32>
    %cst_138 = arith.constant dense<0.000000e+00> : vector<2x128xf32>
    %748 = tpu.matmul %696, %2, %cst_138 {dimension_numbers = #tpu.dot_dimension_numbers<[1], [0], [0], [1], [0, 0, 1, 1], [], []>} : vector<2x32xf32>, vector<32x128xf32>, vector<2x128xf32> -> vector<2x128xf32>
    %cst_139 = arith.constant dense<0.000000e+00> : vector<2x128xf32>
    %749 = tpu.matmul %715, %1, %cst_139 {dimension_numbers = #tpu.dot_dimension_numbers<[1], [0], [0], [1], [0, 0, 1, 1], [], []>} : vector<2x32xf32>, vector<32x128xf32>, vector<2x128xf32> -> vector<2x128xf32>
    %cst_140 = arith.constant dense<0.000000e+00> : vector<2x128xf32>
    %750 = tpu.matmul %734, %2, %cst_140 {dimension_numbers = #tpu.dot_dimension_numbers<[1], [0], [0], [1], [0, 0, 1, 1], [], []>} : vector<2x32xf32>, vector<32x128xf32>, vector<2x128xf32> -> vector<2x128xf32>
    %751 = vector.extract_strided_slice %53 {offsets = [0, 0], sizes = [2, 128], strides = [1, 1]} : vector<2x256xf32> to vector<2x128xf32>
    %752 = arith.addf %751, %747 : vector<2x128xf32>
    %cst_141 = arith.constant 0.000000e+00 : f32
    %753 = vector.broadcast %cst_141 : f32 to vector<2x128xf32>
    %754 = arith.subf %753, %752 : vector<2x128xf32>
    %755 = math.exp %754 : vector<2x128xf32>
    %cst_142 = arith.constant 1.000000e+00 : f32
    %756 = vector.broadcast %cst_142 : f32 to vector<2x128xf32>
    %757 = arith.addf %756, %755 : vector<2x128xf32>
    %cst_143 = arith.constant 1.000000e+00 : f32
    %758 = vector.broadcast %cst_143 : f32 to vector<2x128xf32>
    %759 = arith.divf %758, %757 : vector<2x128xf32>
    %760 = math.tanh %752 : vector<2x128xf32>
    %761 = vector.extract_strided_slice %759 {offsets = [0, 0], sizes = [2, 32], strides = [1, 1]} : vector<2x128xf32> to vector<2x32xf32>
    %762 = vector.extract_strided_slice %759 {offsets = [0, 32], sizes = [2, 32], strides = [1, 1]} : vector<2x128xf32> to vector<2x32xf32>
    %763 = vector.extract_strided_slice %760 {offsets = [0, 64], sizes = [2, 32], strides = [1, 1]} : vector<2x128xf32> to vector<2x32xf32>
    %764 = vector.extract_strided_slice %759 {offsets = [0, 96], sizes = [2, 32], strides = [1, 1]} : vector<2x128xf32> to vector<2x32xf32>
    %765 = arith.mulf %762, %675 : vector<2x32xf32>
    %766 = arith.mulf %761, %763 : vector<2x32xf32>
    %767 = arith.addf %765, %766 : vector<2x32xf32>
    %768 = math.tanh %767 : vector<2x32xf32>
    %769 = arith.mulf %764, %768 : vector<2x32xf32>
    %770 = vector.extract_strided_slice %11 {offsets = [0, 128], sizes = [2, 128], strides = [1, 1]} : vector<2x256xf32> to vector<2x128xf32>
    %771 = arith.addf %770, %748 : vector<2x128xf32>
    %cst_144 = arith.constant 0.000000e+00 : f32
    %772 = vector.broadcast %cst_144 : f32 to vector<2x128xf32>
    %773 = arith.subf %772, %771 : vector<2x128xf32>
    %774 = math.exp %773 : vector<2x128xf32>
    %cst_145 = arith.constant 1.000000e+00 : f32
    %775 = vector.broadcast %cst_145 : f32 to vector<2x128xf32>
    %776 = arith.addf %775, %774 : vector<2x128xf32>
    %cst_146 = arith.constant 1.000000e+00 : f32
    %777 = vector.broadcast %cst_146 : f32 to vector<2x128xf32>
    %778 = arith.divf %777, %776 : vector<2x128xf32>
    %779 = math.tanh %771 : vector<2x128xf32>
    %780 = vector.extract_strided_slice %778 {offsets = [0, 0], sizes = [2, 32], strides = [1, 1]} : vector<2x128xf32> to vector<2x32xf32>
    %781 = vector.extract_strided_slice %778 {offsets = [0, 32], sizes = [2, 32], strides = [1, 1]} : vector<2x128xf32> to vector<2x32xf32>
    %782 = vector.extract_strided_slice %779 {offsets = [0, 64], sizes = [2, 32], strides = [1, 1]} : vector<2x128xf32> to vector<2x32xf32>
    %783 = vector.extract_strided_slice %778 {offsets = [0, 96], sizes = [2, 32], strides = [1, 1]} : vector<2x128xf32> to vector<2x32xf32>
    %784 = arith.mulf %781, %694 : vector<2x32xf32>
    %785 = arith.mulf %780, %782 : vector<2x32xf32>
    %786 = arith.addf %784, %785 : vector<2x32xf32>
    %787 = math.tanh %786 : vector<2x32xf32>
    %788 = arith.mulf %783, %787 : vector<2x32xf32>
    %789 = vector.extract_strided_slice %101 {offsets = [0, 0], sizes = [2, 128], strides = [1, 1]} : vector<2x256xf32> to vector<2x128xf32>
    %790 = arith.addf %789, %749 : vector<2x128xf32>
    %cst_147 = arith.constant 0.000000e+00 : f32
    %791 = vector.broadcast %cst_147 : f32 to vector<2x128xf32>
    %792 = arith.subf %791, %790 : vector<2x128xf32>
    %793 = math.exp %792 : vector<2x128xf32>
    %cst_148 = arith.constant 1.000000e+00 : f32
    %794 = vector.broadcast %cst_148 : f32 to vector<2x128xf32>
    %795 = arith.addf %794, %793 : vector<2x128xf32>
    %cst_149 = arith.constant 1.000000e+00 : f32
    %796 = vector.broadcast %cst_149 : f32 to vector<2x128xf32>
    %797 = arith.divf %796, %795 : vector<2x128xf32>
    %798 = math.tanh %790 : vector<2x128xf32>
    %799 = vector.extract_strided_slice %797 {offsets = [0, 0], sizes = [2, 32], strides = [1, 1]} : vector<2x128xf32> to vector<2x32xf32>
    %800 = vector.extract_strided_slice %797 {offsets = [0, 32], sizes = [2, 32], strides = [1, 1]} : vector<2x128xf32> to vector<2x32xf32>
    %801 = vector.extract_strided_slice %798 {offsets = [0, 64], sizes = [2, 32], strides = [1, 1]} : vector<2x128xf32> to vector<2x32xf32>
    %802 = vector.extract_strided_slice %797 {offsets = [0, 96], sizes = [2, 32], strides = [1, 1]} : vector<2x128xf32> to vector<2x32xf32>
    %803 = arith.mulf %800, %713 : vector<2x32xf32>
    %804 = arith.mulf %799, %801 : vector<2x32xf32>
    %805 = arith.addf %803, %804 : vector<2x32xf32>
    %806 = math.tanh %805 : vector<2x32xf32>
    %807 = arith.mulf %802, %806 : vector<2x32xf32>
    %808 = vector.extract_strided_slice %59 {offsets = [0, 128], sizes = [2, 128], strides = [1, 1]} : vector<2x256xf32> to vector<2x128xf32>
    %809 = arith.addf %808, %750 : vector<2x128xf32>
    %cst_150 = arith.constant 0.000000e+00 : f32
    %810 = vector.broadcast %cst_150 : f32 to vector<2x128xf32>
    %811 = arith.subf %810, %809 : vector<2x128xf32>
    %812 = math.exp %811 : vector<2x128xf32>
    %cst_151 = arith.constant 1.000000e+00 : f32
    %813 = vector.broadcast %cst_151 : f32 to vector<2x128xf32>
    %814 = arith.addf %813, %812 : vector<2x128xf32>
    %cst_152 = arith.constant 1.000000e+00 : f32
    %815 = vector.broadcast %cst_152 : f32 to vector<2x128xf32>
    %816 = arith.divf %815, %814 : vector<2x128xf32>
    %817 = math.tanh %809 : vector<2x128xf32>
    %818 = vector.extract_strided_slice %816 {offsets = [0, 0], sizes = [2, 32], strides = [1, 1]} : vector<2x128xf32> to vector<2x32xf32>
    %819 = vector.extract_strided_slice %816 {offsets = [0, 32], sizes = [2, 32], strides = [1, 1]} : vector<2x128xf32> to vector<2x32xf32>
    %820 = vector.extract_strided_slice %817 {offsets = [0, 64], sizes = [2, 32], strides = [1, 1]} : vector<2x128xf32> to vector<2x32xf32>
    %821 = vector.extract_strided_slice %816 {offsets = [0, 96], sizes = [2, 32], strides = [1, 1]} : vector<2x128xf32> to vector<2x32xf32>
    %822 = arith.mulf %819, %732 : vector<2x32xf32>
    %823 = arith.mulf %818, %820 : vector<2x32xf32>
    %824 = arith.addf %822, %823 : vector<2x32xf32>
    %825 = math.tanh %824 : vector<2x32xf32>
    %826 = arith.mulf %821, %825 : vector<2x32xf32>
    %827 = arith.mulf %769, %807 : vector<2x32xf32>
    %828 = arith.addf %736, %827 : vector<2x32xf32>
    %829 = arith.mulf %788, %826 : vector<2x32xf32>
    %830 = arith.addf %738, %829 : vector<2x32xf32>
    %831 = arith.mulf %769, %769 : vector<2x32xf32>
    %832 = arith.addf %740, %831 : vector<2x32xf32>
    %833 = arith.mulf %788, %788 : vector<2x32xf32>
    %834 = arith.addf %742, %833 : vector<2x32xf32>
    %835 = arith.mulf %807, %807 : vector<2x32xf32>
    %836 = arith.addf %744, %835 : vector<2x32xf32>
    %837 = arith.mulf %826, %826 : vector<2x32xf32>
    %838 = arith.addf %746, %837 : vector<2x32xf32>
    %839 = tpu.concatenate %828, %830 in 1 : vector<2x32xf32>, vector<2x32xf32> -> vector<2x64xf32>
    %840 = tpu.concatenate %832, %834 in 1 : vector<2x32xf32>, vector<2x32xf32> -> vector<2x64xf32>
    %841 = tpu.concatenate %836, %838 in 1 : vector<2x32xf32>, vector<2x32xf32> -> vector<2x64xf32>
    %842 = arith.mulf %840, %841 : vector<2x64xf32>
    %cst_153 = arith.constant 1.000000e-16 : f32
    %843 = vector.broadcast %cst_153 : f32 to vector<2x64xf32>
    %844 = arith.maximumf %842, %843 : vector<2x64xf32>
    %845 = math.rsqrt %844 : vector<2x64xf32>
    %846 = arith.mulf %839, %845 : vector<2x64xf32>
    %c0_154 = arith.constant 0 : index
    %c0_155 = arith.constant 0 : index
    %847 = vector.load %arg5[%c0_154, %c0_155] : memref<64x64xf32, #tpu.memory_space<vmem>>, vector<64x64xf32>
    %cst_156 = arith.constant dense<0.000000e+00> : vector<2x64xf32>
    %848 = tpu.matmul %846, %847, %cst_156 {dimension_numbers = #tpu.dot_dimension_numbers<[1], [0], [0], [1], [0, 0, 1, 1], [], []>} : vector<2x64xf32>, vector<64x64xf32>, vector<2x64xf32> -> vector<2x64xf32>
    %c0_157 = arith.constant 0 : index
    %c0_158 = arith.constant 0 : index
    %849 = vector.load %arg6[%c0_157, %c0_158] : memref<1x64xf32, #tpu.memory_space<vmem>>, vector<1x64xf32>
    %850 = vector.broadcast %849 : vector<1x64xf32> to vector<2x64xf32>
    %851 = arith.addf %848, %850 : vector<2x64xf32>
    %c0_159 = arith.constant 0 : index
    %c0_160 = arith.constant 0 : index
    %852 = vector.load %arg7[%c0_159, %c0_160] : memref<64x3xf32, #tpu.memory_space<vmem>>, vector<64x3xf32>
    %cst_161 = arith.constant dense<0.000000e+00> : vector<2x3xf32>
    %853 = tpu.matmul %851, %852, %cst_161 {dimension_numbers = #tpu.dot_dimension_numbers<[1], [0], [0], [1], [0, 0, 1, 1], [], []>} : vector<2x64xf32>, vector<64x3xf32>, vector<2x3xf32> -> vector<2x3xf32>
    %c0_162 = arith.constant 0 : index
    %c0_163 = arith.constant 0 : index
    %854 = vector.load %arg8[%c0_162, %c0_163] : memref<1x3xf32, #tpu.memory_space<vmem>>, vector<1x3xf32>
    %855 = vector.broadcast %854 : vector<1x3xf32> to vector<2x3xf32>
    %856 = arith.addf %853, %855 : vector<2x3xf32>
    %cst_164 = arith.constant 0.000000e+00 : f32
    %857 = vector.broadcast %cst_164 : f32 to vector<2x3xf32>
    %858 = arith.subf %857, %856 : vector<2x3xf32>
    %859 = math.exp %858 : vector<2x3xf32>
    %cst_165 = arith.constant 1.000000e+00 : f32
    %860 = vector.broadcast %cst_165 : f32 to vector<2x3xf32>
    %861 = arith.addf %860, %859 : vector<2x3xf32>
    %cst_166 = arith.constant 1.000000e+00 : f32
    %862 = vector.broadcast %cst_166 : f32 to vector<2x3xf32>
    %863 = arith.divf %862, %861 : vector<2x3xf32>
    %c0_167 = arith.constant 0 : index
    %c0_168 = arith.constant 0 : index
    %864 = vector.load %arg9[%c0_167, %c0_168] : memref<2x3xf32, #tpu.memory_space<vmem>>, vector<2x3xf32>
    tpu.vector_store %arg9[%c0_167, %c0_168], %863 {strides = array<i32>} : memref<2x3xf32, #tpu.memory_space<vmem>>, vector<2x3xf32>,
    return
  }
}

</mosaic_0001>

<llo_original>
// kernel: lstm_qa_forward.1
$region0: #{lstm_qa_forward.1}
  #allocation0 [shape = 'u32[]', space=smem, size = 0x4, offset = 0x4, fixed_abs, tag = 'smem constant byte address 0x4 - core index']
  #allocation1 [shape = 'u32[144,128]{1,0:T(1,128)}', space=vmem, size = 0x12000, scoped, tag = 'internal scratch']
  %s0 = inlined_call_operand.vmem [shape: s32[2,8], index: 0, kind: input, shape index: {}]
  %s1 = inlined_call_operand.vmem [shape: s32[2,8], index: 1, kind: input, shape index: {}]
  %s2 = inlined_call_operand.hbm [shape: f32[128,256], index: 2, kind: input, shape index: {}]
  %s3 = inlined_call_operand.hbm [shape: f32[32,128], index: 3, kind: input, shape index: {}]
  %s4 = inlined_call_operand.hbm [shape: f32[32,128], index: 4, kind: input, shape index: {}]
  %s5 = inlined_call_operand.vmem [shape: f32[64,64], index: 5, kind: input, shape index: {}]
  %s6 = inlined_call_operand.vmem [shape: f32[1,64], index: 6, kind: input, shape index: {}]
  %s7 = inlined_call_operand.vmem [shape: f32[64,3], index: 7, kind: input, shape index: {}]
  %s8 = inlined_call_operand.vmem [shape: f32[1,3], index: 8, kind: input, shape index: {}]
  %s9 = inlined_call_operand.hbm [shape: f32[2,3], index: 9, kind: output, shape index: {}]
  %s10 = sld [smem:[#allocation0]]
  $region58: #{lstm_qa_forward.1} parent=0
    _
  %s12 = ssub.s32 1, %s10
  %s13 = scalar_select 0, %s12, %s10
  $region1: #{lstm_qa_forward.1} parent=0
    #allocation2 [shape = 'u8[131072]{0}', space=vmem, size = 0x20000, scoped, tag = 'input window, operand 2, single buffered']
    #allocation3 [shape = 's32[1]{0}', space=sflag, size = 0x4, scoped, tag = 'scoped memory for lstm_qa_forward.1']
    #allocation4 [shape = 's32[1]{0}', space=sflag, size = 0x4, scoped, tag = 'scoped memory for lstm_qa_forward.1']
    #allocation5 [shape = 'u8[16384]{0}', space=vmem, size = 0x4000, scoped, tag = 'input window, operand 3, single buffered']
    #allocation6 [shape = 's32[1]{0}', space=sflag, size = 0x4, scoped, tag = 'scoped memory for lstm_qa_forward.1']
    #allocation7 [shape = 'u8[16384]{0}', space=vmem, size = 0x4000, scoped, tag = 'input window, operand 4, single buffered']
    #allocation8 [shape = 'u8[1024]{0}', space=vmem, size = 0x400, scoped, tag = 'output window, operand 0, single buffered']
    %14 = vsyncpa [#allocation3], 0
    %15 = vsyncpa [#allocation6], 0
    %16 = vsyncpa [#allocation4], 0
    // Predicated region
    $region2: #{lstm_qa_forward.1} parent=1 // pred_check
      _
    $region3: #{lstm_qa_forward.1} parent=1 // pred_check_branch
      %18 = sbr.rel (0) target = $region5
    $region4: #{lstm_qa_forward.1} parent=1 // pred_region
      _
    $region5: #{lstm_qa_forward.1} parent=1 // pred_fallthru
      _
    // Predicated region
    $region6: #{lstm_qa_forward.1} parent=1 // pred_check
      _
    $region7: #{lstm_qa_forward.1} parent=1 // pred_check_branch
      %20 = sbr.rel (0) target = $region9
    $region8: #{lstm_qa_forward.1} parent=1 // pred_region
      _
    $region9: #{lstm_qa_forward.1} parent=1 // pred_fallthru
      _
    // Predicated region
    $region10: #{lstm_qa_forward.1} parent=1 // pred_check
      _
    $region11: #{lstm_qa_forward.1} parent=1 // pred_check_branch
      %22 = sbr.rel (0) target = $region13
    $region12: #{lstm_qa_forward.1} parent=1 // pred_region
      %s24 = ssub.s32 4096, 4096
      %25 = vsyncadd [#allocation3], %s24
      %s26 = sshll.u32 [#allocation2], 4
      %s27 = int_to_ptr.vmem [resolvable:$true] %s26
      %32 = dma.hbm_to_vmem [thread:$0]  %s2, 4096, %s27, [#allocation3], 256, 256, 16
    $region13: #{lstm_qa_forward.1} parent=1 // pred_fallthru
      _
    // Predicated region
    $region14: #{lstm_qa_forward.1} parent=1 // pred_check
      _
    $region15: #{lstm_qa_forward.1} parent=1 // pred_check_branch
      %34 = sbr.rel (0) target = $region17
    $region16: #{lstm_qa_forward.1} parent=1 // pred_region
      %s36 = ssub.s32 512, 512
      %37 = vsyncadd [#allocation6], %s36
      %s38 = sshll.u32 [#allocation5], 4
      %s39 = int_to_ptr.vmem [resolvable:$true] %s38
      %44 = dma.hbm_to_vmem [thread:$0]  %s3, 512, %s39, [#allocation6], 128, 128, 8
    $region17: #{lstm_qa_forward.1} parent=1 // pred_fallthru
      _
    // Predicated region
    $region18: #{lstm_qa_forward.1} parent=1 // pred_check
      _
    $region19: #{lstm_qa_forward.1} parent=1 // pred_check_branch
      %46 = sbr.rel (0) target = $region21
    $region20: #{lstm_qa_forward.1} parent=1 // pred_region
      %s48 = ssub.s32 512, 512
      %49 = vsyncadd [#allocation6], %s48
      %s50 = sshll.u32 [#allocation7], 4
      %s51 = int_to_ptr.vmem [resolvable:$true] %s50
      %56 = dma.hbm_to_vmem [thread:$0]  %s4, 512, %s51, [#allocation6], 128, 128, 8
    $region21: #{lstm_qa_forward.1} parent=1 // pred_fallthru
      _
    // Predicated region
    $region22: #{lstm_qa_forward.1} parent=1 // pred_check
      _
    $region23: #{lstm_qa_forward.1} parent=1 // pred_check_branch
      %58 = sbr.rel (0) target = $region25
    $region24: #{lstm_qa_forward.1} parent=1 // pred_region
      _
    $region25: #{lstm_qa_forward.1} parent=1 // pred_fallthru
      _
    // Predicated region
    $region26: #{lstm_qa_forward.1} parent=1 // pred_check
      _
    $region27: #{lstm_qa_forward.1} parent=1 // pred_check_branch
      %60 = sbr.rel (0) target = $region29
    $region28: #{lstm_qa_forward.1} parent=1 // pred_region
      _
    $region29: #{lstm_qa_forward.1} parent=1 // pred_fallthru
      _
    // Predicated region
    $region30: #{lstm_qa_forward.1} parent=1 // pred_check
      _
    $region31: #{lstm_qa_forward.1} parent=1 // pred_check_branch
      %62 = sbr.rel (0) target = $region33
    $region32: #{lstm_qa_forward.1} parent=1 // pred_region
      _
    $region33: #{lstm_qa_forward.1} parent=1 // pred_fallthru
      _
    // Predicated region
    $region34: #{lstm_qa_forward.1} parent=1 // pred_check
      _
    $region35: #{lstm_qa_forward.1} parent=1 // pred_check_branch
      %64 = sbr.rel (0) target = $region37
    $region36: #{lstm_qa_forward.1} parent=1 // pred_region
      _
    $region37: #{lstm_qa_forward.1} parent=1 // pred_fallthru
      _
    // Predicated region
    $region38: #{lstm_qa_forward.1} parent=1 // pred_check
      _
    $region39: #{lstm_qa_forward.1} parent=1 // pred_check_branch
      %66 = sbr.rel (0) target = $region41
    $region40: #{lstm_qa_forward.1} parent=1 // pred_region
      %67 = dma.done [#allocation3], 4096
    $region41: #{lstm_qa_forward.1} parent=1 // pred_fallthru
      _
    // Predicated region
    $region42: #{lstm_qa_forward.1} parent=1 // pred_check
      _
    $region43: #{lstm_qa_forward.1} parent=1 // pred_check_branch
      %69 = sbr.rel (0) target = $region45
    $region44: #{lstm_qa_forward.1} parent=1 // pred_region
      %70 = dma.done [#allocation6], 512
    $region45: #{lstm_qa_forward.1} parent=1 // pred_fallthru
      _
    // Predicated region
    $region46: #{lstm_qa_forward.1} parent=1 // pred_check
      _
    $region47: #{lstm_qa_forward.1} parent=1 // pred_check_branch
      %72 = sbr.rel (0) target = $region49
    $region48: #{lstm_qa_forward.1} parent=1 // pred_region
      %73 = dma.done [#allocation6], 512
    $region49: #{lstm_qa_forward.1} parent=1 // pred_fallthru
      _
    %v74 = vld [vmem:[#allocation2] sm:$0xff]
    %v75 = vld [vmem:[#allocation2 + $0x8] sm:$0xff]
    %v76 = vld [vmem:[#allocation2 + $0x10] sm:$0xff]
    %v77 = vld [vmem:[#allocation2 + $0x18] sm:$0xff]
    %v78 = vld [vmem:[#allocation2 + $0x20] sm:$0xff]
    %v79 = vld [vmem:[#allocation2 + $0x28] sm:$0xff]
    %v80 = vld [vmem:[#allocation2 + $0x30] sm:$0xff]
    %v81 = vld [vmem:[#allocation2 + $0x38] sm:$0xff]
    %v82 = vld [vmem:[#allocation2 + $0x40] sm:$0xff]
    %v83 = vld [vmem:[#allocation2 + $0x48] sm:$0xff]
    %v84 = vld [vmem:[#allocation2 + $0x50] sm:$0xff]
    %v85 = vld [vmem:[#allocation2 + $0x58] sm:$0xff]
    %v86 = vld [vmem:[#allocation2 + $0x60] sm:$0xff]
    %v87 = vld [vmem:[#allocation2 + $0x68] sm:$0xff]
    %v88 = vld [vmem:[#allocation2 + $0x70] sm:$0xff]
    %v89 = vld [vmem:[#allocation2 + $0x78] sm:$0xff]
    %v90 = vld [vmem:[#allocation2 + $0x80] sm:$0xff]
    %v91 = vld [vmem:[#allocation2 + $0x88] sm:$0xff]
    %v92 = vld [vmem:[#allocation2 + $0x90] sm:$0xff]
    %v93 = vld [vmem:[#allocation2 + $0x98] sm:$0xff]
    %v94 = vld [vmem:[#allocation2 + $0xa0] sm:$0xff]
    %v95 = vld [vmem:[#allocation2 + $0xa8] sm:$0xff]
    %v96 = vld [vmem:[#allocation2 + $0xb0] sm:$0xff]
    %v97 = vld [vmem:[#allocation2 + $0xb8] sm:$0xff]
    %v98 = vld [vmem:[#allocation2 + $0xc0] sm:$0xff]
    %v99 = vld [vmem:[#allocation2 + $0xc8] sm:$0xff]
    %v100 = vld [vmem:[#allocation2 + $0xd0] sm:$0xff]
    %v101 = vld [vmem:[#allocation2 + $0xd8] sm:$0xff]
    %v102 = vld [vmem:[#allocation2 + $0xe0] sm:$0xff]
    %v103 = vld [vmem:[#allocation2 + $0xe8] sm:$0xff]
    %v104 = vld [vmem:[#allocation2 + $0xf0] sm:$0xff]
    %v105 = vld [vmem:[#allocation2 + $0xf8] sm:$0xff]
    %v106 = vld [vmem:[#allocation5] sm:$0xff]
    %v107 = vld [vmem:[#allocation5 + $0x8] sm:$0xff]
    %v108 = vld [vmem:[#allocation5 + $0x10] sm:$0xff]
    %v109 = vld [vmem:[#allocation5 + $0x18] sm:$0xff]
    %v110 = vld [vmem:[#allocation7] sm:$0xff]
    %v111 = vld [vmem:[#allocation7 + $0x8] sm:$0xff]
    %v112 = vld [vmem:[#allocation7 + $0x10] sm:$0xff]
    %v113 = vld [vmem:[#allocation7 + $0x18] sm:$0xff]
    %v114 = vld [vmem:[%s0] sm:$0x3]
    %v115 = vld [vmem:[%s1] sm:$0x3]
    %v116 = vlaneseq
    %v117 = vand.u32 %v116, 127
    %118 = vset.pattern.permute.xlu0 0
    %119 = vperm.xlu0 %118, %v114
    %v120 = vpop.permute.xlu0 %119
    %vm121 = vcmp.eq.s32.totalorder %v117, %v120
    %v122 = vsel %vm121, 1, 0
    %v123 = vcvt.s32.f32 %v122
    %124 = vmatprep.subr.mxu0 %v75
    %125 = vmatpush1.msra.mxu0 %v74
    %126 = vmatprep.subr.mxu0 %v77
    %127 = vmatpush1.msra.mxu0 %v76
    %128 = vmatprep.subr.mxu0 %v79
    %129 = vmatpush1.msra.mxu0 %v78
    %130 = vmatprep.subr.mxu0 %v81
    %131 = vmatpush1.msra.mxu0 %v80
    %132 = vmatprep.subr.mxu0 %v83
    %133 = vmatpush1.msra.mxu0 %v82
    %134 = vmatprep.subr.mxu0 %v85
    %135 = vmatpush1.msra.mxu0 %v84
    %136 = vmatprep.subr.mxu0 %v87
    %137 = vmatpush1.msra.mxu0 %v86
    %138 = vmatprep.subr.mxu0 %v89
    %139 = vmatpush1.msra.mxu0 %v88
    %140 = vmatprep.subr.mxu0 %v91
    %141 = vmatpush1.msra.mxu0 %v90
    %142 = vmatprep.subr.mxu0 %v93
    %143 = vmatpush1.msra.mxu0 %v92
    %144 = vmatprep.subr.mxu0 %v95
    %145 = vmatpush1.msra.mxu0 %v94
    %146 = vmatprep.subr.mxu0 %v97
    %147 = vmatpush1.msra.mxu0 %v96
    %148 = vmatprep.subr.mxu0 %v99
    %149 = vmatpush1.msra.mxu0 %v98
    %150 = vmatprep.subr.mxu0 %v101
    %151 = vmatpush1.msra.mxu0 %v100
    %152 = vmatprep.subr.mxu0 %v103
    %153 = vmatpush1.msra.mxu0 %v102
    %154 = vmatprep.subr.mxu0 %v105
    %155 = vmatpush1.msra.mxu0 %v104
    %156 = vmatprep.subr.mxu0 0.0
    %157 = vmatpush1.msra.mxu0 0.0
    %158 = vmatprep.subr.mxu0 0.0
    %159 = vmatpush1.msra.mxu0 0.0
    %160 = vmatprep.subr.mxu0 0.0
    %161 = vmatpush1.msra.mxu0 0.0
    %162 = vmatprep.subr.mxu0 0.0
    %163 = vmatpush1.msra.mxu0 0.0
    %164 = vmatprep.subr.mxu0 0.0
    %165 = vmatpush1.msra.mxu0 0.0
    %166 = vmatprep.subr.mxu0 0.0
    %167 = vmatpush1.msra.mxu0 0.0
    %168 = vmatprep.subr.mxu0 0.0
    %169 = vmatpush1.msra.mxu0 0.0
    %170 = vmatprep.subr.mxu0 0.0
    %171 = vmatpush1.msra.mxu0 0.0
    %172 = vmatprep.subr.mxu0 0.0
    %173 = vmatpush1.msra.mxu0 0.0
    %174 = vmatprep.subr.mxu0 0.0
    %175 = vmatpush1.msra.mxu0 0.0
    %176 = vmatprep.subr.mxu0 0.0
    %177 = vmatpush1.msra.mxu0 0.0
    %178 = vmatprep.subr.mxu0 0.0
    %179 = vmatpush1.msra.mxu0 0.0
    %180 = vmatprep.subr.mxu0 0.0
    %181 = vmatpush1.msra.mxu0 0.0
    %182 = vmatprep.subr.mxu0 0.0
    %183 = vmatpush1.msra.mxu0 0.0
    %184 = vmatprep.subr.mxu0 0.0
    %185 = vmatpush1.msra.mxu0 0.0
    %186 = vmatprep.subr.mxu0 0.0
    %187 = vmatpush1.msra.mxu0 0.0
    %188 = vmatprep.mubr.f32.mxu0 0.0
    %189 = vmatmul.mubr.f32.gmra.mrb[0].mxu0 %v123
    %v190 = vpop.f32.mrb[0].mxu0
    %v191 = vadd.f32 0.0, %v190
    %v192 = vpop.f32.mrb[0].mxu0
    %v193 = vadd.f32 0.0, %v192
    %194 = vdwg.mxu0
    %195 = vset.pattern.permute.xlu0 1
    %196 = vperm.xlu0 %195, %v114
    %v197 = vpop.permute.xlu0 %196
    %vm198 = vcmp.eq.s32.totalorder %v117, %v197
    %v199 = vsel %vm198, 1, 0
    %v200 = vcvt.s32.f32 %v199
    %201 = vmatprep.subr.mxu0 %v75
    %202 = vmatpush1.msra.mxu0 %v74
    %203 = vmatprep.subr.mxu0 %v77
    %204 = vmatpush1.msra.mxu0 %v76
    %205 = vmatprep.subr.mxu0 %v79
    %206 = vmatpush1.msra.mxu0 %v78
    %207 = vmatprep.subr.mxu0 %v81
    %208 = vmatpush1.msra.mxu0 %v80
    %209 = vmatprep.subr.mxu0 %v83
    %210 = vmatpush1.msra.mxu0 %v82
    %211 = vmatprep.subr.mxu0 %v85
    %212 = vmatpush1.msra.mxu0 %v84
    %213 = vmatprep.subr.mxu0 %v87
    %214 = vmatpush1.msra.mxu0 %v86
    %215 = vmatprep.subr.mxu0 %v89
    %216 = vmatpush1.msra.mxu0 %v88
    %217 = vmatprep.subr.mxu0 %v91
    %218 = vmatpush1.msra.mxu0 %v90
    %219 = vmatprep.subr.mxu0 %v93
    %220 = vmatpush1.msra.mxu0 %v92
    %221 = vmatprep.subr.mxu0 %v95
    %222 = vmatpush1.msra.mxu0 %v94
    %223 = vmatprep.subr.mxu0 %v97
    %224 = vmatpush1.msra.mxu0 %v96
    %225 = vmatprep.subr.mxu0 %v99
    %226 = vmatpush1.msra.mxu0 %v98
    %227 = vmatprep.subr.mxu0 %v101
    %228 = vmatpush1.msra.mxu0 %v100
    %229 = vmatprep.subr.mxu0 %v103
    %230 = vmatpush1.msra.mxu0 %v102
    %231 = vmatprep.subr.mxu0 %v105
    %232 = vmatpush1.msra.mxu0 %v104
    %233 = vmatprep.subr.mxu0 0.0
    %234 = vmatpush1.msra.mxu0 0.0
    %235 = vmatprep.subr.mxu0 0.0
    %236 = vmatpush1.msra.mxu0 0.0
    %237 = vmatprep.subr.mxu0 0.0
    %238 = vmatpush1.msra.mxu0 0.0
    %239 = vmatprep.subr.mxu0 0.0
    %240 = vmatpush1.msra.mxu0 0.0
    %241 = vmatprep.subr.mxu0 0.0
    %242 = vmatpush1.msra.mxu0 0.0
    %243 = vmatprep.subr.mxu0 0.0
    %244 = vmatpush1.msra.mxu0 0.0
    %245 = vmatprep.subr.mxu0 0.0
    %246 = vmatpush1.msra.mxu0 0.0
    %247 = vmatprep.subr.mxu0 0.0
    %248 = vmatpush1.msra.mxu0 0.0
    %249 = vmatprep.subr.mxu0 0.0
    %250 = vmatpush1.msra.mxu0 0.0
    %251 = vmatprep.subr.mxu0 0.0
    %252 = vmatpush1.msra.mxu0 0.0
    %253 = vmatprep.subr.mxu0 0.0
    %254 = vmatpush1.msra.mxu0 0.0
    %255 = vmatprep.subr.mxu0 0.0
    %256 = vmatpush1.msra.mxu0 0.0
    %257 = vmatprep.subr.mxu0 0.0
    %258 = vmatpush1.msra.mxu0 0.0
    %259 = vmatprep.subr.mxu0 0.0
    %260 = vmatpush1.msra.mxu0 0.0
    %261 = vmatprep.subr.mxu0 0.0
    %262 = vmatpush1.msra.mxu0 0.0
    %263 = vmatprep.subr.mxu0 0.0
    %264 = vmatpush1.msra.mxu0 0.0
    %265 = vmatprep.mubr.f32.mxu0 0.0
    %266 = vmatmul.mubr.f32.gmra.mrb[0].mxu0 %v200
    %v267 = vpop.f32.mrb[0].mxu0
    %v268 = vadd.f32 0.0, %v267
    %v269 = vpop.f32.mrb[0].mxu0
    %v270 = vadd.f32 0.0, %v269
    %271 = vdwg.mxu0
    %272 = vset.pattern.permute.xlu0 2
    %273 = vperm.xlu0 %272, %v114
    %v274 = vpop.permute.xlu0 %273
    %vm275 = vcmp.eq.s32.totalorder %v117, %v274
    %v276 = vsel %vm275, 1, 0
    %v277 = vcvt.s32.f32 %v276
    %278 = vmatprep.subr.mxu0 %v75
    %279 = vmatpush1.msra.mxu0 %v74
    %280 = vmatprep.subr.mxu0 %v77
    %281 = vmatpush1.msra.mxu0 %v76
    %282 = vmatprep.subr.mxu0 %v79
    %283 = vmatpush1.msra.mxu0 %v78
    %284 = vmatprep.subr.mxu0 %v81
    %285 = vmatpush1.msra.mxu0 %v80
    %286 = vmatprep.subr.mxu0 %v83
    %287 = vmatpush1.msra.mxu0 %v82
    %288 = vmatprep.subr.mxu0 %v85
    %289 = vmatpush1.msra.mxu0 %v84
    %290 = vmatprep.subr.mxu0 %v87
    %291 = vmatpush1.msra.mxu0 %v86
    %292 = vmatprep.subr.mxu0 %v89
    %293 = vmatpush1.msra.mxu0 %v88
    %294 = vmatprep.subr.mxu0 %v91
    %295 = vmatpush1.msra.mxu0 %v90
    %296 = vmatprep.subr.mxu0 %v93
    %297 = vmatpush1.msra.mxu0 %v92
    %298 = vmatprep.subr.mxu0 %v95
    %299 = vmatpush1.msra.mxu0 %v94
    %300 = vmatprep.subr.mxu0 %v97
    %301 = vmatpush1.msra.mxu0 %v96
    %302 = vmatprep.subr.mxu0 %v99
    %303 = vmatpush1.msra.mxu0 %v98
    %304 = vmatprep.subr.mxu0 %v101
    %305 = vmatpush1.msra.mxu0 %v100
    %306 = vmatprep.subr.mxu0 %v103
    %307 = vmatpush1.msra.mxu0 %v102
    %308 = vmatprep.subr.mxu0 %v105
    %309 = vmatpush1.msra.mxu0 %v104
    %310 = vmatprep.subr.mxu0 0.0
    %311 = vmatpush1.msra.mxu0 0.0
    %312 = vmatprep.subr.mxu0 0.0
    %313 = vmatpush1.msra.mxu0 0.0
    %314 = vmatprep.subr.mxu0 0.0
    %315 = vmatpush1.msra.mxu0 0.0
    %316 = vmatprep.subr.mxu0 0.0
    %317 = vmatpush1.msra.mxu0 0.0
    %318 = vmatprep.subr.mxu0 0.0
    %319 = vmatpush1.msra.mxu0 0.0
    %320 = vmatprep.subr.mxu0 0.0
    %321 = vmatpush1.msra.mxu0 0.0
    %322 = vmatprep.subr.mxu0 0.0
    %323 = vmatpush1.msra.mxu0 0.0
    %324 = vmatprep.subr.mxu0 0.0
    %325 = vmatpush1.msra.mxu0 0.0
    %326 = vmatprep.subr.mxu0 0.0
    %327 = vmatpush1.msra.mxu0 0.0
    %328 = vmatprep.subr.mxu0 0.0
    %329 = vmatpush1.msra.mxu0 0.0
    %330 = vmatprep.subr.mxu0 0.0
    %331 = vmatpush1.msra.mxu0 0.0
    %332 = vmatprep.subr.mxu0 0.0
    %333 = vmatpush1.msra.mxu0 0.0
    %334 = vmatprep.subr.mxu0 0.0
    %335 = vmatpush1.msra.mxu0 0.0
    %336 = vmatprep.subr.mxu0 0.0
    %337 = vmatpush1.msra.mxu0 0.0
    %338 = vmatprep.subr.mxu0 0.0
    %339 = vmatpush1.msra.mxu0 0.0
    %340 = vmatprep.subr.mxu0 0.0
    %341 = vmatpush1.msra.mxu0 0.0
    %342 = vmatprep.mubr.f32.mxu0 0.0
    %343 = vmatmul.mubr.f32.gmra.mrb[0].mxu0 %v277
    %v344 = vpop.f32.mrb[0].mxu0
    %v345 = vadd.f32 0.0, %v344
    %v346 = vpop.f32.mrb[0].mxu0
    %v347 = vadd.f32 0.0, %v346
    %348 = vdwg.mxu0
    %349 = vset.pattern.permute.xlu0 3
    %350 = vperm.xlu0 %349, %v114
    %v351 = vpop.permute.xlu0 %350
    %vm352 = vcmp.eq.s32.totalorder %v117, %v351
    %v353 = vsel %vm352, 1, 0
    %v354 = vcvt.s32.f32 %v353
    %355 = vmatprep.subr.mxu0 %v75
    %356 = vmatpush1.msra.mxu0 %v74
    %357 = vmatprep.subr.mxu0 %v77
    %358 = vmatpush1.msra.mxu0 %v76
    %359 = vmatprep.subr.mxu0 %v79
    %360 = vmatpush1.msra.mxu0 %v78
    %361 = vmatprep.subr.mxu0 %v81
    %362 = vmatpush1.msra.mxu0 %v80
    %363 = vmatprep.subr.mxu0 %v83
    %364 = vmatpush1.msra.mxu0 %v82
    %365 = vmatprep.subr.mxu0 %v85
    %366 = vmatpush1.msra.mxu0 %v84
    %367 = vmatprep.subr.mxu0 %v87
    %368 = vmatpush1.msra.mxu0 %v86
    %369 = vmatprep.subr.mxu0 %v89
    %370 = vmatpush1.msra.mxu0 %v88
    %371 = vmatprep.subr.mxu0 %v91
    %372 = vmatpush1.msra.mxu0 %v90
    %373 = vmatprep.subr.mxu0 %v93
    %374 = vmatpush1.msra.mxu0 %v92
    %375 = vmatprep.subr.mxu0 %v95
    %376 = vmatpush1.msra.mxu0 %v94
    %377 = vmatprep.subr.mxu0 %v97
    %378 = vmatpush1.msra.mxu0 %v96
    %379 = vmatprep.subr.mxu0 %v99
    %380 = vmatpush1.msra.mxu0 %v98
    %381 = vmatprep.subr.mxu0 %v101
    %382 = vmatpush1.msra.mxu0 %v100
    %383 = vmatprep.subr.mxu0 %v103
    %384 = vmatpush1.msra.mxu0 %v102
    %385 = vmatprep.subr.mxu0 %v105
    %386 = vmatpush1.msra.mxu0 %v104
    %387 = vmatprep.subr.mxu0 0.0
    %388 = vmatpush1.msra.mxu0 0.0
    %389 = vmatprep.subr.mxu0 0.0
    %390 = vmatpush1.msra.mxu0 0.0
    %391 = vmatprep.subr.mxu0 0.0
    %392 = vmatpush1.msra.mxu0 0.0
    %393 = vmatprep.subr.mxu0 0.0
    %394 = vmatpush1.msra.mxu0 0.0
    %395 = vmatprep.subr.mxu0 0.0
    %396 = vmatpush1.msra.mxu0 0.0
    %397 = vmatprep.subr.mxu0 0.0
    %398 = vmatpush1.msra.mxu0 0.0
    %399 = vmatprep.subr.mxu0 0.0
    %400 = vmatpush1.msra.mxu0 0.0
    %401 = vmatprep.subr.mxu0 0.0
    %402 = vmatpush1.msra.mxu0 0.0
    %403 = vmatprep.subr.mxu0 0.0
    %404 = vmatpush1.msra.mxu0 0.0
    %405 = vmatprep.subr.mxu0 0.0
    %406 = vmatpush1.msra.mxu0 0.0
    %407 = vmatprep.subr.mxu0 0.0
    %408 = vmatpush1.msra.mxu0 0.0
    %409 = vmatprep.subr.mxu0 0.0
    %410 = vmatpush1.msra.mxu0 0.0
    %411 = vmatprep.subr.mxu0 0.0
    %412 = vmatpush1.msra.mxu0 0.0
    %413 = vmatprep.subr.mxu0 0.0
    %414 = vmatpush1.msra.mxu0 0.0
    %415 = vmatprep.subr.mxu0 0.0
    %416 = vmatpush1.msra.mxu0 0.0
    %417 = vmatprep.subr.mxu0 0.0
    %418 = vmatpush1.msra.mxu0 0.0
    %419 = vmatprep.mubr.f32.mxu0 0.0
    %420 = vmatmul.mubr.f32.gmra.mrb[0].mxu0 %v354
    %v421 = vpop.f32.mrb[0].mxu0
    %v422 = vadd.f32 0.0, %v421
    %v423 = vpop.f32.mrb[0].mxu0
    %v424 = vadd.f32 0.0, %v423
    %425 = vdwg.mxu0
    %426 = vset.pattern.permute.xlu0 4
    %427 = vperm.xlu0 %426, %v114
    %v428 = vpop.permute.xlu0 %427
    %vm429 = vcmp.eq.s32.totalorder %v117, %v428
    %v430 = vsel %vm429, 1, 0
    %v431 = vcvt.s32.f32 %v430
    %432 = vmatprep.subr.mxu0 %v75
    %433 = vmatpush1.msra.mxu0 %v74
    %434 = vmatprep.subr.mxu0 %v77
    %435 = vmatpush1.msra.mxu0 %v76
    %436 = vmatprep.subr.mxu0 %v79
    %437 = vmatpush1.msra.mxu0 %v78
    %438 = vmatprep.subr.mxu0 %v81
    %439 = vmatpush1.msra.mxu0 %v80
    %440 = vmatprep.subr.mxu0 %v83
    %441 = vmatpush1.msra.mxu0 %v82
    %442 = vmatprep.subr.mxu0 %v85
    %443 = vmatpush1.msra.mxu0 %v84
    %444 = vmatprep.subr.mxu0 %v87
    %445 = vmatpush1.msra.mxu0 %v86
    %446 = vmatprep.subr.mxu0 %v89
    %447 = vmatpush1.msra.mxu0 %v88
    %448 = vmatprep.subr.mxu0 %v91
    %449 = vmatpush1.msra.mxu0 %v90
    %450 = vmatprep.subr.mxu0 %v93
    %451 = vmatpush1.msra.mxu0 %v92
    %452 = vmatprep.subr.mxu0 %v95
    %453 = vmatpush1.msra.mxu0 %v94
    %454 = vmatprep.subr.mxu0 %v97
    %455 = vmatpush1.msra.mxu0 %v96
    %456 = vmatprep.subr.mxu0 %v99
    %457 = vmatpush1.msra.mxu0 %v98
    %458 = vmatprep.subr.mxu0 %v101
    %459 = vmatpush1.msra.mxu0 %v100
    %460 = vmatprep.subr.mxu0 %v103
    %461 = vmatpush1.msra.mxu0 %v102
    %462 = vmatprep.subr.mxu0 %v105
    %463 = vmatpush1.msra.mxu0 %v104
    %464 = vmatprep.subr.mxu0 0.0
    %465 = vmatpush1.msra.mxu0 0.0
    %466 = vmatprep.subr.mxu0 0.0
    %467 = vmatpush1.msra.mxu0 0.0
    %468 = vmatprep.subr.mxu0 0.0
    %469 = vmatpush1.msra.mxu0 0.0
    %470 = vmatprep.subr.mxu0 0.0
    %471 = vmatpush1.msra.mxu0 0.0
    %472 = vmatprep.subr.mxu0 0.0
    %473 = vmatpush1.msra.mxu0 0.0
    %474 = vmatprep.subr.mxu0 0.0
    %475 = vmatpush1.msra.mxu0 0.0
    %476 = vmatprep.subr.mxu0 0.0
    %477 = vmatpush1.msra.mxu0 0.0
    %478 = vmatprep.subr.mxu0 0.0
    %479 = vmatpush1.msra.mxu0 0.0
    %480 = vmatprep.subr.mxu0 0.0
    %481 = vmatpush1.msra.mxu0 0.0
    %482 = vmatprep.subr.mxu0 0.0
    %483 = vmatpush1.msra.mxu0 0.0
    %484 = vmatprep.subr.mxu0 0.0
    %485 = vmatpush1.msra.mxu0 0.0
    %486 = vmatprep.subr.mxu0 0.0
    %487 = vmatpush1.msra.mxu0 0.0
    %488 = vmatprep.subr.mxu0 0.0
    %489 = vmatpush1.msra.mxu0 0.0
    %490 = vmatprep.subr.mxu0 0.0
    %491 = vmatpush1.msra.mxu0 0.0
    %492 = vmatprep.subr.mxu0 0.0
    %493 = vmatpush1.msra.mxu0 0.0
    %494 = vmatprep.subr.mxu0 0.0
    %495 = vmatpush1.msra.mxu0 0.0
    %496 = vmatprep.mubr.f32.mxu0 0.0
    %497 = vmatmul.mubr.f32.gmra.mrb[0].mxu0 %v431
    %v498 = vpop.f32.mrb[0].mxu0
    %v499 = vadd.f32 0.0, %v498
    %v500 = vpop.f32.mrb[0].mxu0
    %v501 = vadd.f32 0.0, %v500
    %502 = vdwg.mxu0
    %503 = vset.pattern.permute.xlu0 5
    %504 = vperm.xlu0 %503, %v114
    %v505 = vpop.permute.xlu0 %504
    %vm506 = vcmp.eq.s32.totalorder %v117, %v505
    %v507 = vsel %vm506, 1, 0
    %v508 = vcvt.s32.f32 %v507
    %509 = vmatprep.subr.mxu0 %v75
    %510 = vmatpush1.msra.mxu0 %v74
    %511 = vmatprep.subr.mxu0 %v77
    %512 = vmatpush1.msra.mxu0 %v76
    %513 = vmatprep.subr.mxu0 %v79
    %514 = vmatpush1.msra.mxu0 %v78
    %515 = vmatprep.subr.mxu0 %v81
    %516 = vmatpush1.msra.mxu0 %v80
    %517 = vmatprep.subr.mxu0 %v83
    %518 = vmatpush1.msra.mxu0 %v82
    %519 = vmatprep.subr.mxu0 %v85
    %520 = vmatpush1.msra.mxu0 %v84
    %521 = vmatprep.subr.mxu0 %v87
    %522 = vmatpush1.msra.mxu0 %v86
    %523 = vmatprep.subr.mxu0 %v89
    %524 = vmatpush1.msra.mxu0 %v88
    %525 = vmatprep.subr.mxu0 %v91
    %526 = vmatpush1.msra.mxu0 %v90
    %527 = vmatprep.subr.mxu0 %v93
    %528 = vmatpush1.msra.mxu0 %v92
    %529 = vmatprep.subr.mxu0 %v95
    %530 = vmatpush1.msra.mxu0 %v94
    %531 = vmatprep.subr.mxu0 %v97
    %532 = vmatpush1.msra.mxu0 %v96
    %533 = vmatprep.subr.mxu0 %v99
    %534 = vmatpush1.msra.mxu0 %v98
    %535 = vmatprep.subr.mxu0 %v101
    %536 = vmatpush1.msra.mxu0 %v100
    %537 = vmatprep.subr.mxu0 %v103
    %538 = vmatpush1.msra.mxu0 %v102
    %539 = vmatprep.subr.mxu0 %v105
    %540 = vmatpush1.msra.mxu0 %v104
    %541 = vmatprep.subr.mxu0 0.0
    %542 = vmatpush1.msra.mxu0 0.0
    %543 = vmatprep.subr.mxu0 0.0
    %544 = vmatpush1.msra.mxu0 0.0
    %545 = vmatprep.subr.mxu0 0.0
    %546 = vmatpush1.msra.mxu0 0.0
    %547 = vmatprep.subr.mxu0 0.0
    %548 = vmatpush1.msra.mxu0 0.0
    %549 = vmatprep.subr.mxu0 0.0
    %550 = vmatpush1.msra.mxu0 0.0
    %551 = vmatprep.subr.mxu0 0.0
    %552 = vmatpush1.msra.mxu0 0.0
    %553 = vmatprep.subr.mxu0 0.0
    %554 = vmatpush1.msra.mxu0 0.0
    %555 = vmatprep.subr.mxu0 0.0
    %556 = vmatpush1.msra.mxu0 0.0
    %557 = vmatprep.subr.mxu0 0.0
    %558 = vmatpush1.msra.mxu0 0.0
    %559 = vmatprep.subr.mxu0 0.0
    %560 = vmatpush1.msra.mxu0 0.0
    %561 = vmatprep.subr.mxu0 0.0
    %562 = vmatpush1.msra.mxu0 0.0
    %563 = vmatprep.subr.mxu0 0.0
    %564 = vmatpush1.msra.mxu0 0.0
    %565 = vmatprep.subr.mxu0 0.0
    %566 = vmatpush1.msra.mxu0 0.0
    %567 = vmatprep.subr.mxu0 0.0
    %568 = vmatpush1.msra.mxu0 0.0
    %569 = vmatprep.subr.mxu0 0.0
    %570 = vmatpush1.msra.mxu0 0.0
    %571 = vmatprep.subr.mxu0 0.0
    %572 = vmatpush1.msra.mxu0 0.0
    %573 = vmatprep.mubr.f32.mxu0 0.0
    %574 = vmatmul.mubr.f32.gmra.mrb[0].mxu0 %v508
    %v575 = vpop.f32.mrb[0].mxu0
    %v576 = vadd.f32 0.0, %v575
    %v577 = vpop.f32.mrb[0].mxu0
    %v578 = vadd.f32 0.0, %v577
    %579 = vdwg.mxu0
    %580 = vset.pattern.permute.xlu0 6
    %581 = vperm.xlu0 %580, %v114
    %v582 = vpop.permute.xlu0 %581
    %vm583 = vcmp.eq.s32.totalorder %v117, %v582
    %v584 = vsel %vm583, 1, 0
    %v585 = vcvt.s32.f32 %v584
    %586 = vmatprep.subr.mxu0 %v75
    %587 = vmatpush1.msra.mxu0 %v74
    %588 = vmatprep.subr.mxu0 %v77
    %589 = vmatpush1.msra.mxu0 %v76
    %590 = vmatprep.subr.mxu0 %v79
    %591 = vmatpush1.msra.mxu0 %v78
    %592 = vmatprep.subr.mxu0 %v81
    %593 = vmatpush1.msra.mxu0 %v80
    %594 = vmatprep.subr.mxu0 %v83
    %595 = vmatpush1.msra.mxu0 %v82
    %596 = vmatprep.subr.mxu0 %v85
    %597 = vmatpush1.msra.mxu0 %v84
    %598 = vmatprep.subr.mxu0 %v87
    %599 = vmatpush1.msra.mxu0 %v86
    %600 = vmatprep.subr.mxu0 %v89
    %601 = vmatpush1.msra.mxu0 %v88
    %602 = vmatprep.subr.mxu0 %v91
    %603 = vmatpush1.msra.mxu0 %v90
    %604 = vmatprep.subr.mxu0 %v93
    %605 = vmatpush1.msra.mxu0 %v92
    %606 = vmatprep.subr.mxu0 %v95
    %607 = vmatpush1.msra.mxu0 %v94
    %608 = vmatprep.subr.mxu0 %v97
    %609 = vmatpush1.msra.mxu0 %v96
    %610 = vmatprep.subr.mxu0 %v99
    %611 = vmatpush1.msra.mxu0 %v98
    %612 = vmatprep.subr.mxu0 %v101
    %613 = vmatpush1.msra.mxu0 %v100
    %614 = vmatprep.subr.mxu0 %v103
    %615 = vmatpush1.msra.mxu0 %v102
    %616 = vmatprep.subr.mxu0 %v105
    %617 = vmatpush1.msra.mxu0 %v104
    %618 = vmatprep.subr.mxu0 0.0
    %619 = vmatpush1.msra.mxu0 0.0
    %620 = vmatprep.subr.mxu0 0.0
    %621 = vmatpush1.msra.mxu0 0.0
    %622 = vmatprep.subr.mxu0 0.0
    %623 = vmatpush1.msra.mxu0 0.0
    %624 = vmatprep.subr.mxu0 0.0
    %625 = vmatpush1.msra.mxu0 0.0
    %626 = vmatprep.subr.mxu0 0.0
    %627 = vmatpush1.msra.mxu0 0.0
    %628 = vmatprep.subr.mxu0 0.0
    %629 = vmatpush1.msra.mxu0 0.0
    %630 = vmatprep.subr.mxu0 0.0
    %631 = vmatpush1.msra.mxu0 0.0
    %632 = vmatprep.subr.mxu0 0.0
    %633 = vmatpush1.msra.mxu0 0.0
    %634 = vmatprep.subr.mxu0 0.0
    %635 = vmatpush1.msra.mxu0 0.0
    %636 = vmatprep.subr.mxu0 0.0
    %637 = vmatpush1.msra.mxu0 0.0
    %638 = vmatprep.subr.mxu0 0.0
    %639 = vmatpush1.msra.mxu0 0.0
    %640 = vmatprep.subr.mxu0 0.0
    %641 = vmatpush1.msra.mxu0 0.0
    %642 = vmatprep.subr.mxu0 0.0
    %643 = vmatpush1.msra.mxu0 0.0
    %644 = vmatprep.subr.mxu0 0.0
    %645 = vmatpush1.msra.mxu0 0.0
    %646 = vmatprep.subr.mxu0 0.0
    %647 = vmatpush1.msra.mxu0 0.0
    %648 = vmatprep.subr.mxu0 0.0
    %649 = vmatpush1.msra.mxu0 0.0
    %650 = vmatprep.mubr.f32.mxu0 0.0
    %651 = vmatmul.mubr.f32.gmra.mrb[0].mxu0 %v585
    %v652 = vpop.f32.mrb[0].mxu0
    %v653 = vadd.f32 0.0, %v652
    %v654 = vpop.f32.mrb[0].mxu0
    %v655 = vadd.f32 0.0, %v654
    %656 = vdwg.mxu0
    %657 = vset.pattern.permute.xlu0 7
    %658 = vperm.xlu0 %657, %v114
    %v659 = vpop.permute.xlu0 %658
    %vm660 = vcmp.eq.s32.totalorder %v117, %v659
    %v661 = vsel %vm660, 1, 0
    %v662 = vcvt.s32.f32 %v661
    %663 = vmatprep.subr.mxu0 %v75
    %664 = vmatpush1.msra.mxu0 %v74
    %665 = vmatprep.subr.mxu0 %v77
    %666 = vmatpush1.msra.mxu0 %v76
    %667 = vmatprep.subr.mxu0 %v79
    %668 = vmatpush1.msra.mxu0 %v78
    %669 = vmatprep.subr.mxu0 %v81
    %670 = vmatpush1.msra.mxu0 %v80
    %671 = vmatprep.subr.mxu0 %v83
    %672 = vmatpush1.msra.mxu0 %v82
    %673 = vmatprep.subr.mxu0 %v85
    %674 = vmatpush1.msra.mxu0 %v84
    %675 = vmatprep.subr.mxu0 %v87
    %676 = vmatpush1.msra.mxu0 %v86
    %677 = vmatprep.subr.mxu0 %v89
    %678 = vmatpush1.msra.mxu0 %v88
    %679 = vmatprep.subr.mxu0 %v91
    %680 = vmatpush1.msra.mxu0 %v90
    %681 = vmatprep.subr.mxu0 %v93
    %682 = vmatpush1.msra.mxu0 %v92
    %683 = vmatprep.subr.mxu0 %v95
    %684 = vmatpush1.msra.mxu0 %v94
    %685 = vmatprep.subr.mxu0 %v97
    %686 = vmatpush1.msra.mxu0 %v96
    %687 = vmatprep.subr.mxu0 %v99
    %688 = vmatpush1.msra.mxu0 %v98
    %689 = vmatprep.subr.mxu0 %v101
    %690 = vmatpush1.msra.mxu0 %v100
    %691 = vmatprep.subr.mxu0 %v103
    %692 = vmatpush1.msra.mxu0 %v102
    %693 = vmatprep.subr.mxu0 %v105
    %694 = vmatpush1.msra.mxu0 %v104
    %695 = vmatprep.subr.mxu0 0.0
    %696 = vmatpush1.msra.mxu0 0.0
    %697 = vmatprep.subr.mxu0 0.0
    %698 = vmatpush1.msra.mxu0 0.0
    %699 = vmatprep.subr.mxu0 0.0
    %700 = vmatpush1.msra.mxu0 0.0
    %701 = vmatprep.subr.mxu0 0.0
    %702 = vmatpush1.msra.mxu0 0.0
    %703 = vmatprep.subr.mxu0 0.0
    %704 = vmatpush1.msra.mxu0 0.0
    %705 = vmatprep.subr.mxu0 0.0
    %706 = vmatpush1.msra.mxu0 0.0
    %707 = vmatprep.subr.mxu0 0.0
    %708 = vmatpush1.msra.mxu0 0.0
    %709 = vmatprep.subr.mxu0 0.0
    %710 = vmatpush1.msra.mxu0 0.0
    %711 = vmatprep.subr.mxu0 0.0
    %712 = vmatpush1.msra.mxu0 0.0
    %713 = vmatprep.subr.mxu0 0.0
    %714 = vmatpush1.msra.mxu0 0.0
    %715 = vmatprep.subr.mxu0 0.0
    %716 = vmatpush1.msra.mxu0 0.0
    %717 = vmatprep.subr.mxu0 0.0
    %718 = vmatpush1.msra.mxu0 0.0
    %719 = vmatprep.subr.mxu0 0.0
    %720 = vmatpush1.msra.mxu0 0.0
    %721 = vmatprep.subr.mxu0 0.0
    %722 = vmatpush1.msra.mxu0 0.0
    %723 = vmatprep.subr.mxu0 0.0
    %724 = vmatpush1.msra.mxu0 0.0
    %725 = vmatprep.subr.mxu0 0.0
    %726 = vmatpush1.msra.mxu0 0.0
    %727 = vmatprep.mubr.f32.mxu0 0.0
    %728 = vmatmul.mubr.f32.gmra.mrb[0].mxu0 %v662
    %v729 = vpop.f32.mrb[0].mxu0
    %v730 = vadd.f32 0.0, %v729
    %v731 = vpop.f32.mrb[0].mxu0
    %v732 = vadd.f32 0.0, %v731
    %733 = vdwg.mxu0
    %734 = vset.pattern.permute.xlu0 0
    %735 = vperm.xlu0 %734, %v115
    %v736 = vpop.permute.xlu0 %735
    %vm737 = vcmp.eq.s32.totalorder %v117, %v736
    %v738 = vsel %vm737, 1, 0
    %v739 = vcvt.s32.f32 %v738
    %740 = vmatprep.subr.mxu0 %v75
    %741 = vmatpush1.msra.mxu0 %v74
    %742 = vmatprep.subr.mxu0 %v77
    %743 = vmatpush1.msra.mxu0 %v76
    %744 = vmatprep.subr.mxu0 %v79
    %745 = vmatpush1.msra.mxu0 %v78
    %746 = vmatprep.subr.mxu0 %v81
    %747 = vmatpush1.msra.mxu0 %v80
    %748 = vmatprep.subr.mxu0 %v83
    %749 = vmatpush1.msra.mxu0 %v82
    %750 = vmatprep.subr.mxu0 %v85
    %751 = vmatpush1.msra.mxu0 %v84
    %752 = vmatprep.subr.mxu0 %v87
    %753 = vmatpush1.msra.mxu0 %v86
    %754 = vmatprep.subr.mxu0 %v89
    %755 = vmatpush1.msra.mxu0 %v88
    %756 = vmatprep.subr.mxu0 %v91
    %757 = vmatpush1.msra.mxu0 %v90
    %758 = vmatprep.subr.mxu0 %v93
    %759 = vmatpush1.msra.mxu0 %v92
    %760 = vmatprep.subr.mxu0 %v95
    %761 = vmatpush1.msra.mxu0 %v94
    %762 = vmatprep.subr.mxu0 %v97
    %763 = vmatpush1.msra.mxu0 %v96
    %764 = vmatprep.subr.mxu0 %v99
    %765 = vmatpush1.msra.mxu0 %v98
    %766 = vmatprep.subr.mxu0 %v101
    %767 = vmatpush1.msra.mxu0 %v100
    %768 = vmatprep.subr.mxu0 %v103
    %769 = vmatpush1.msra.mxu0 %v102
    %770 = vmatprep.subr.mxu0 %v105
    %771 = vmatpush1.msra.mxu0 %v104
    %772 = vmatprep.subr.mxu0 0.0
    %773 = vmatpush1.msra.mxu0 0.0
    %774 = vmatprep.subr.mxu0 0.0
    %775 = vmatpush1.msra.mxu0 0.0
    %776 = vmatprep.subr.mxu0 0.0
    %777 = vmatpush1.msra.mxu0 0.0
    %778 = vmatprep.subr.mxu0 0.0
    %779 = vmatpush1.msra.mxu0 0.0
    %780 = vmatprep.subr.mxu0 0.0
    %781 = vmatpush1.msra.mxu0 0.0
    %782 = vmatprep.subr.mxu0 0.0
    %783 = vmatpush1.msra.mxu0 0.0
    %784 = vmatprep.subr.mxu0 0.0
    %785 = vmatpush1.msra.mxu0 0.0
    %786 = vmatprep.subr.mxu0 0.0
    %787 = vmatpush1.msra.mxu0 0.0
    %788 = vmatprep.subr.mxu0 0.0
    %789 = vmatpush1.msra.mxu0 0.0
    %790 = vmatprep.subr.mxu0 0.0
    %791 = vmatpush1.msra.mxu0 0.0
    %792 = vmatprep.subr.mxu0 0.0
    %793 = vmatpush1.msra.mxu0 0.0
    %794 = vmatprep.subr.mxu0 0.0
    %795 = vmatpush1.msra.mxu0 0.0
    %796 = vmatprep.subr.mxu0 0.0
    %797 = vmatpush1.msra.mxu0 0.0
    %798 = vmatprep.subr.mxu0 0.0
    %799 = vmatpush1.msra.mxu0 0.0
    %800 = vmatprep.subr.mxu0 0.0
    %801 = vmatpush1.msra.mxu0 0.0
    %802 = vmatprep.subr.mxu0 0.0
    %803 = vmatpush1.msra.mxu0 0.0
    %804 = vmatprep.mubr.f32.mxu0 0.0
    %805 = vmatmul.mubr.f32.gmra.mrb[0].mxu0 %v739
    %v806 = vpop.f32.mrb[0].mxu0
    %v807 = vadd.f32 0.0, %v806
    %v808 = vpop.f32.mrb[0].mxu0
    %v809 = vadd.f32 0.0, %v808
    %810 = vdwg.mxu0
    %811 = vset.pattern.permute.xlu0 1
    %812 = vperm.xlu0 %811, %v115
    %v813 = vpop.permute.xlu0 %812
    %vm814 = vcmp.eq.s32.totalorder %v117, %v813
    %v815 = vsel %vm814, 1, 0
    %v816 = vcvt.s32.f32 %v815
    %817 = vmatprep.subr.mxu0 %v75
    %818 = vmatpush1.msra.mxu0 %v74
    %819 = vmatprep.subr.mxu0 %v77
    %820 = vmatpush1.msra.mxu0 %v76
    %821 = vmatprep.subr.mxu0 %v79
    %822 = vmatpush1.msra.mxu0 %v78
    %823 = vmatprep.subr.mxu0 %v81
    %824 = vmatpush1.msra.mxu0 %v80
    %825 = vmatprep.subr.mxu0 %v83
    %826 = vmatpush1.msra.mxu0 %v82
    %827 = vmatprep.subr.mxu0 %v85
    %828 = vmatpush1.msra.mxu0 %v84
    %829 = vmatprep.subr.mxu0 %v87
    %830 = vmatpush1.msra.mxu0 %v86
    %831 = vmatprep.subr.mxu0 %v89
    %832 = vmatpush1.msra.mxu0 %v88
    %833 = vmatprep.subr.mxu0 %v91
    %834 = vmatpush1.msra.mxu0 %v90
    %835 = vmatprep.subr.mxu0 %v93
    %836 = vmatpush1.msra.mxu0 %v92
    %837 = vmatprep.subr.mxu0 %v95
    %838 = vmatpush1.msra.mxu0 %v94
    %839 = vmatprep.subr.mxu0 %v97
    %840 = vmatpush1.msra.mxu0 %v96
    %841 = vmatprep.subr.mxu0 %v99
    %842 = vmatpush1.msra.mxu0 %v98
    %843 = vmatprep.subr.mxu0 %v101
    %844 = vmatpush1.msra.mxu0 %v100
    %845 = vmatprep.subr.mxu0 %v103
    %846 = vmatpush1.msra.mxu0 %v102
    %847 = vmatprep.subr.mxu0 %v105
    %848 = vmatpush1.msra.mxu0 %v104
    %849 = vmatprep.subr.mxu0 0.0
    %850 = vmatpush1.msra.mxu0 0.0
    %851 = vmatprep.subr.mxu0 0.0
    %852 = vmatpush1.msra.mxu0 0.0
    %853 = vmatprep.subr.mxu0 0.0
    %854 = vmatpush1.msra.mxu0 0.0
    %855 = vmatprep.subr.mxu0 0.0
    %856 = vmatpush1.msra.mxu0 0.0
    %857 = vmatprep.subr.mxu0 0.0
    %858 = vmatpush1.msra.mxu0 0.0
    %859 = vmatprep.subr.mxu0 0.0
    %860 = vmatpush1.msra.mxu0 0.0
    %861 = vmatprep.subr.mxu0 0.0
    %862 = vmatpush1.msra.mxu0 0.0
    %863 = vmatprep.subr.mxu0 0.0
    %864 = vmatpush1.msra.mxu0 0.0
    %865 = vmatprep.subr.mxu0 0.0
    %866 = vmatpush1.msra.mxu0 0.0
    %867 = vmatprep.subr.mxu0 0.0
    %868 = vmatpush1.msra.mxu0 0.0
    %869 = vmatprep.subr.mxu0 0.0
    %870 = vmatpush1.msra.mxu0 0.0
    %871 = vmatprep.subr.mxu0 0.0
    %872 = vmatpush1.msra.mxu0 0.0
    %873 = vmatprep.subr.mxu0 0.0
    %874 = vmatpush1.msra.mxu0 0.0
    %875 = vmatprep.subr.mxu0 0.0
    %876 = vmatpush1.msra.mxu0 0.0
    %877 = vmatprep.subr.mxu0 0.0
    %878 = vmatpush1.msra.mxu0 0.0
    %879 = vmatprep.subr.mxu0 0.0
    %880 = vmatpush1.msra.mxu0 0.0
    %881 = vmatprep.mubr.f32.mxu0 0.0
    %882 = vmatmul.mubr.f32.gmra.mrb[0].mxu0 %v816
    %v883 = vpop.f32.mrb[0].mxu0
    %v884 = vadd.f32 0.0, %v883
    %v885 = vpop.f32.mrb[0].mxu0
    %v886 = vadd.f32 0.0, %v885
    %887 = vdwg.mxu0
    %888 = vset.pattern.permute.xlu0 2
    %889 = vperm.xlu0 %888, %v115
    %v890 = vpop.permute.xlu0 %889
    %vm891 = vcmp.eq.s32.totalorder %v117, %v890
    %v892 = vsel %vm891, 1, 0
    %v893 = vcvt.s32.f32 %v892
    %894 = vmatprep.subr.mxu0 %v75
    %895 = vmatpush1.msra.mxu0 %v74
    %896 = vmatprep.subr.mxu0 %v77
    %897 = vmatpush1.msra.mxu0 %v76
    %898 = vmatprep.subr.mxu0 %v79
    %899 = vmatpush1.msra.mxu0 %v78
    %900 = vmatprep.subr.mxu0 %v81
    %901 = vmatpush1.msra.mxu0 %v80
    %902 = vmatprep.subr.mxu0 %v83
    %903 = vmatpush1.msra.mxu0 %v82
    %904 = vmatprep.subr.mxu0 %v85
    %905 = vmatpush1.msra.mxu0 %v84
    %906 = vmatprep.subr.mxu0 %v87
    %907 = vmatpush1.msra.mxu0 %v86
    %908 = vmatprep.subr.mxu0 %v89
    %909 = vmatpush1.msra.mxu0 %v88
    %910 = vmatprep.subr.mxu0 %v91
    %911 = vmatpush1.msra.mxu0 %v90
    %912 = vmatprep.subr.mxu0 %v93
    %913 = vmatpush1.msra.mxu0 %v92
    %914 = vmatprep.subr.mxu0 %v95
    %915 = vmatpush1.msra.mxu0 %v94
    %916 = vmatprep.subr.mxu0 %v97
    %917 = vmatpush1.msra.mxu0 %v96
    %918 = vmatprep.subr.mxu0 %v99
    %919 = vmatpush1.msra.mxu0 %v98
    %920 = vmatprep.subr.mxu0 %v101
    %921 = vmatpush1.msra.mxu0 %v100
    %922 = vmatprep.subr.mxu0 %v103
    %923 = vmatpush1.msra.mxu0 %v102
    %924 = vmatprep.subr.mxu0 %v105
    %925 = vmatpush1.msra.mxu0 %v104
    %926 = vmatprep.subr.mxu0 0.0
    %927 = vmatpush1.msra.mxu0 0.0
    %928 = vmatprep.subr.mxu0 0.0
    %929 = vmatpush1.msra.mxu0 0.0
    %930 = vmatprep.subr.mxu0 0.0
    %931 = vmatpush1.msra.mxu0 0.0
    %932 = vmatprep.subr.mxu0 0.0
    %933 = vmatpush1.msra.mxu0 0.0
    %934 = vmatprep.subr.mxu0 0.0
    %935 = vmatpush1.msra.mxu0 0.0
    %936 = vmatprep.subr.mxu0 0.0
    %937 = vmatpush1.msra.mxu0 0.0
    %938 = vmatprep.subr.mxu0 0.0
    %939 = vmatpush1.msra.mxu0 0.0
    %940 = vmatprep.subr.mxu0 0.0
    %941 = vmatpush1.msra.mxu0 0.0
    %942 = vmatprep.subr.mxu0 0.0
    %943 = vmatpush1.msra.mxu0 0.0
    %944 = vmatprep.subr.mxu0 0.0
    %945 = vmatpush1.msra.mxu0 0.0
    %946 = vmatprep.subr.mxu0 0.0
    %947 = vmatpush1.msra.mxu0 0.0
    %948 = vmatprep.subr.mxu0 0.0
    %949 = vmatpush1.msra.mxu0 0.0
    %950 = vmatprep.subr.mxu0 0.0
    %951 = vmatpush1.msra.mxu0 0.0
    %952 = vmatprep.subr.mxu0 0.0
    %953 = vmatpush1.msra.mxu0 0.0
    %954 = vmatprep.subr.mxu0 0.0
    %955 = vmatpush1.msra.mxu0 0.0
    %956 = vmatprep.subr.mxu0 0.0
    %957 = vmatpush1.msra.mxu0 0.0
    %958 = vmatprep.mubr.f32.mxu0 0.0
    %959 = vmatmul.mubr.f32.gmra.mrb[0].mxu0 %v893
    %v960 = vpop.f32.mrb[0].mxu0
    %v961 = vadd.f32 0.0, %v960
    %v962 = vpop.f32.mrb[0].mxu0
    %v963 = vadd.f32 0.0, %v962
    %964 = vdwg.mxu0
    %965 = vset.pattern.permute.xlu0 3
    %966 = vperm.xlu0 %965, %v115
    %v967 = vpop.permute.xlu0 %966
    %vm968 = vcmp.eq.s32.totalorder %v117, %v967
    %v969 = vsel %vm968, 1, 0
    %v970 = vcvt.s32.f32 %v969
    %971 = vmatprep.subr.mxu0 %v75
    %972 = vmatpush1.msra.mxu0 %v74
    %973 = vmatprep.subr.mxu0 %v77
    %974 = vmatpush1.msra.mxu0 %v76
    %975 = vmatprep.subr.mxu0 %v79
    %976 = vmatpush1.msra.mxu0 %v78
    %977 = vmatprep.subr.mxu0 %v81
    %978 = vmatpush1.msra.mxu0 %v80
    %979 = vmatprep.subr.mxu0 %v83
    %980 = vmatpush1.msra.mxu0 %v82
    %981 = vmatprep.subr.mxu0 %v85
    %982 = vmatpush1.msra.mxu0 %v84
    %983 = vmatprep.subr.mxu0 %v87
    %984 = vmatpush1.msra.mxu0 %v86
    %985 = vmatprep.subr.mxu0 %v89
    %986 = vmatpush1.msra.mxu0 %v88
    %987 = vmatprep.subr.mxu0 %v91
    %988 = vmatpush1.msra.mxu0 %v90
    %989 = vmatprep.subr.mxu0 %v93
    %990 = vmatpush1.msra.mxu0 %v92
    %991 = vmatprep.subr.mxu0 %v95
    %992 = vmatpush1.msra.mxu0 %v94
    %993 = vmatprep.subr.mxu0 %v97
    %994 = vmatpush1.msra.mxu0 %v96
    %995 = vmatprep.subr.mxu0 %v99
    %996 = vmatpush1.msra.mxu0 %v98
    %997 = vmatprep.subr.mxu0 %v101
    %998 = vmatpush1.msra.mxu0 %v100
    %999 = vmatprep.subr.mxu0 %v103
    %1000 = vmatpush1.msra.mxu0 %v102
    %1001 = vmatprep.subr.mxu0 %v105
    %1002 = vmatpush1.msra.mxu0 %v104
    %1003 = vmatprep.subr.mxu0 0.0
    %1004 = vmatpush1.msra.mxu0 0.0
    %1005 = vmatprep.subr.mxu0 0.0
    %1006 = vmatpush1.msra.mxu0 0.0
    %1007 = vmatprep.subr.mxu0 0.0
    %1008 = vmatpush1.msra.mxu0 0.0
    %1009 = vmatprep.subr.mxu0 0.0
    %1010 = vmatpush1.msra.mxu0 0.0
    %1011 = vmatprep.subr.mxu0 0.0
    %1012 = vmatpush1.msra.mxu0 0.0
    %1013 = vmatprep.subr.mxu0 0.0
    %1014 = vmatpush1.msra.mxu0 0.0
    %1015 = vmatprep.subr.mxu0 0.0
    %1016 = vmatpush1.msra.mxu0 0.0
    %1017 = vmatprep.subr.mxu0 0.0
    %1018 = vmatpush1.msra.mxu0 0.0
    %1019 = vmatprep.subr.mxu0 0.0
    %1020 = vmatpush1.msra.mxu0 0.0
    %1021 = vmatprep.subr.mxu0 0.0
    %1022 = vmatpush1.msra.mxu0 0.0
    %1023 = vmatprep.subr.mxu0 0.0
    %1024 = vmatpush1.msra.mxu0 0.0
    %1025 = vmatprep.subr.mxu0 0.0
    %1026 = vmatpush1.msra.mxu0 0.0
    %1027 = vmatprep.subr.mxu0 0.0
    %1028 = vmatpush1.msra.mxu0 0.0
    %1029 = vmatprep.subr.mxu0 0.0
    %1030 = vmatpush1.msra.mxu0 0.0
    %1031 = vmatprep.subr.mxu0 0.0
    %1032 = vmatpush1.msra.mxu0 0.0
    %1033 = vmatprep.subr.mxu0 0.0
    %1034 = vmatpush1.msra.mxu0 0.0
    %1035 = vmatprep.mubr.f32.mxu0 0.0
    %1036 = vmatmul.mubr.f32.gmra.mrb[0].mxu0 %v970
    %v1037 = vpop.f32.mrb[0].mxu0
    %v1038 = vadd.f32 0.0, %v1037
    %v1039 = vpop.f32.mrb[0].mxu0
    %v1040 = vadd.f32 0.0, %v1039
    %1041 = vdwg.mxu0
    %1042 = vset.pattern.permute.xlu0 4
    %1043 = vperm.xlu0 %1042, %v115
    %v1044 = vpop.permute.xlu0 %1043
    %vm1045 = vcmp.eq.s32.totalorder %v117, %v1044
    %v1046 = vsel %vm1045, 1, 0
    %v1047 = vcvt.s32.f32 %v1046
    %1048 = vmatprep.subr.mxu0 %v75
    %1049 = vmatpush1.msra.mxu0 %v74
    %1050 = vmatprep.subr.mxu0 %v77
    %1051 = vmatpush1.msra.mxu0 %v76
    %1052 = vmatprep.subr.mxu0 %v79
    %1053 = vmatpush1.msra.mxu0 %v78
    %1054 = vmatprep.subr.mxu0 %v81
    %1055 = vmatpush1.msra.mxu0 %v80
    %1056 = vmatprep.subr.mxu0 %v83
    %1057 = vmatpush1.msra.mxu0 %v82
    %1058 = vmatprep.subr.mxu0 %v85
    %1059 = vmatpush1.msra.mxu0 %v84
    %1060 = vmatprep.subr.mxu0 %v87
    %1061 = vmatpush1.msra.mxu0 %v86
    %1062 = vmatprep.subr.mxu0 %v89
    %1063 = vmatpush1.msra.mxu0 %v88
    %1064 = vmatprep.subr.mxu0 %v91
    %1065 = vmatpush1.msra.mxu0 %v90
    %1066 = vmatprep.subr.mxu0 %v93
    %1067 = vmatpush1.msra.mxu0 %v92
    %1068 = vmatprep.subr.mxu0 %v95
    %1069 = vmatpush1.msra.mxu0 %v94
    %1070 = vmatprep.subr.mxu0 %v97
    %1071 = vmatpush1.msra.mxu0 %v96
    %1072 = vmatprep.subr.mxu0 %v99
    %1073 = vmatpush1.msra.mxu0 %v98
    %1074 = vmatprep.subr.mxu0 %v101
    %1075 = vmatpush1.msra.mxu0 %v100
    %1076 = vmatprep.subr.mxu0 %v103
    %1077 = vmatpush1.msra.mxu0 %v102
    %1078 = vmatprep.subr.mxu0 %v105
    %1079 = vmatpush1.msra.mxu0 %v104
    %1080 = vmatprep.subr.mxu0 0.0
    %1081 = vmatpush1.msra.mxu0 0.0
    %1082 = vmatprep.subr.mxu0 0.0
    %1083 = vmatpush1.msra.mxu0 0.0
    %1084 = vmatprep.subr.mxu0 0.0
    %1085 = vmatpush1.msra.mxu0 0.0
    %1086 = vmatprep.subr.mxu0 0.0
    %1087 = vmatpush1.msra.mxu0 0.0
    %1088 = vmatprep.subr.mxu0 0.0
    %1089 = vmatpush1.msra.mxu0 0.0
    %1090 = vmatprep.subr.mxu0 0.0
    %1091 = vmatpush1.msra.mxu0 0.0
    %1092 = vmatprep.subr.mxu0 0.0
    %1093 = vmatpush1.msra.mxu0 0.0
    %1094 = vmatprep.subr.mxu0 0.0
    %1095 = vmatpush1.msra.mxu0 0.0
    %1096 = vmatprep.subr.mxu0 0.0
    %1097 = vmatpush1.msra.mxu0 0.0
    %1098 = vmatprep.subr.mxu0 0.0
    %1099 = vmatpush1.msra.mxu0 0.0
    %1100 = vmatprep.subr.mxu0 0.0
    %1101 = vmatpush1.msra.mxu0 0.0
    %1102 = vmatprep.subr.mxu0 0.0
    %1103 = vmatpush1.msra.mxu0 0.0
    %1104 = vmatprep.subr.mxu0 0.0
    %1105 = vmatpush1.msra.mxu0 0.0
    %1106 = vmatprep.subr.mxu0 0.0
    %1107 = vmatpush1.msra.mxu0 0.0
    %1108 = vmatprep.subr.mxu0 0.0
    %1109 = vmatpush1.msra.mxu0 0.0
    %1110 = vmatprep.subr.mxu0 0.0
    %1111 = vmatpush1.msra.mxu0 0.0
    %1112 = vmatprep.mubr.f32.mxu0 0.0
    %1113 = vmatmul.mubr.f32.gmra.mrb[0].mxu0 %v1047
    %v1114 = vpop.f32.mrb[0].mxu0
    %v1115 = vadd.f32 0.0, %v1114
    %v1116 = vpop.f32.mrb[0].mxu0
    %v1117 = vadd.f32 0.0, %v1116
    %1118 = vdwg.mxu0
    %1119 = vset.pattern.permute.xlu0 5
    %1120 = vperm.xlu0 %1119, %v115
    %v1121 = vpop.permute.xlu0 %1120
    %vm1122 = vcmp.eq.s32.totalorder %v117, %v1121
    %v1123 = vsel %vm1122, 1, 0
    %v1124 = vcvt.s32.f32 %v1123
    %1125 = vmatprep.subr.mxu0 %v75
    %1126 = vmatpush1.msra.mxu0 %v74
    %1127 = vmatprep.subr.mxu0 %v77
    %1128 = vmatpush1.msra.mxu0 %v76
    %1129 = vmatprep.subr.mxu0 %v79
    %1130 = vmatpush1.msra.mxu0 %v78
    %1131 = vmatprep.subr.mxu0 %v81
    %1132 = vmatpush1.msra.mxu0 %v80
    %1133 = vmatprep.subr.mxu0 %v83
    %1134 = vmatpush1.msra.mxu0 %v82
    %1135 = vmatprep.subr.mxu0 %v85
    %1136 = vmatpush1.msra.mxu0 %v84
    %1137 = vmatprep.subr.mxu0 %v87
    %1138 = vmatpush1.msra.mxu0 %v86
    %1139 = vmatprep.subr.mxu0 %v89
    %1140 = vmatpush1.msra.mxu0 %v88
    %1141 = vmatprep.subr.mxu0 %v91
    %1142 = vmatpush1.msra.mxu0 %v90
    %1143 = vmatprep.subr.mxu0 %v93
    %1144 = vmatpush1.msra.mxu0 %v92
    %1145 = vmatprep.subr.mxu0 %v95
    %1146 = vmatpush1.msra.mxu0 %v94
    %1147 = vmatprep.subr.mxu0 %v97
    %1148 = vmatpush1.msra.mxu0 %v96
    %1149 = vmatprep.subr.mxu0 %v99
    %1150 = vmatpush1.msra.mxu0 %v98
    %1151 = vmatprep.subr.mxu0 %v101
    %1152 = vmatpush1.msra.mxu0 %v100
    %1153 = vmatprep.subr.mxu0 %v103
    %1154 = vmatpush1.msra.mxu0 %v102
    %1155 = vmatprep.subr.mxu0 %v105
    %1156 = vmatpush1.msra.mxu0 %v104
    %1157 = vmatprep.subr.mxu0 0.0
    %1158 = vmatpush1.msra.mxu0 0.0
    %1159 = vmatprep.subr.mxu0 0.0
    %1160 = vmatpush1.msra.mxu0 0.0
    %1161 = vmatprep.subr.mxu0 0.0
    %1162 = vmatpush1.msra.mxu0 0.0
    %1163 = vmatprep.subr.mxu0 0.0
    %1164 = vmatpush1.msra.mxu0 0.0
    %1165 = vmatprep.subr.mxu0 0.0
    %1166 = vmatpush1.msra.mxu0 0.0
    %1167 = vmatprep.subr.mxu0 0.0
    %1168 = vmatpush1.msra.mxu0 0.0
    %1169 = vmatprep.subr.mxu0 0.0
    %1170 = vmatpush1.msra.mxu0 0.0
    %1171 = vmatprep.subr.mxu0 0.0
    %1172 = vmatpush1.msra.mxu0 0.0
    %1173 = vmatprep.subr.mxu0 0.0
    %1174 = vmatpush1.msra.mxu0 0.0
    %1175 = vmatprep.subr.mxu0 0.0
    %1176 = vmatpush1.msra.mxu0 0.0
    %1177 = vmatprep.subr.mxu0 0.0
    %1178 = vmatpush1.msra.mxu0 0.0
    %1179 = vmatprep.subr.mxu0 0.0
    %1180 = vmatpush1.msra.mxu0 0.0
    %1181 = vmatprep.subr.mxu0 0.0
    %1182 = vmatpush1.msra.mxu0 0.0
    %1183 = vmatprep.subr.mxu0 0.0
    %1184 = vmatpush1.msra.mxu0 0.0
    %1185 = vmatprep.subr.mxu0 0.0
    %1186 = vmatpush1.msra.mxu0 0.0
    %1187 = vmatprep.subr.mxu0 0.0
    %1188 = vmatpush1.msra.mxu0 0.0
    %1189 = vmatprep.mubr.f32.mxu0 0.0
    %1190 = vmatmul.mubr.f32.gmra.mrb[0].mxu0 %v1124
    %v1191 = vpop.f32.mrb[0].mxu0
    %v1192 = vadd.f32 0.0, %v1191
    %v1193 = vpop.f32.mrb[0].mxu0
    %v1194 = vadd.f32 0.0, %v1193
    %1195 = vdwg.mxu0
    %1196 = vset.pattern.permute.xlu0 6
    %1197 = vperm.xlu0 %1196, %v115
    %v1198 = vpop.permute.xlu0 %1197
    %vm1199 = vcmp.eq.s32.totalorder %v117, %v1198
    %v1200 = vsel %vm1199, 1, 0
    %v1201 = vcvt.s32.f32 %v1200
    %1202 = vmatprep.subr.mxu0 %v75
    %1203 = vmatpush1.msra.mxu0 %v74
    %1204 = vmatprep.subr.mxu0 %v77
    %1205 = vmatpush1.msra.mxu0 %v76
    %1206 = vmatprep.subr.mxu0 %v79
    %1207 = vmatpush1.msra.mxu0 %v78
    %1208 = vmatprep.subr.mxu0 %v81
    %1209 = vmatpush1.msra.mxu0 %v80
    %1210 = vmatprep.subr.mxu0 %v83
    %1211 = vmatpush1.msra.mxu0 %v82
    %1212 = vmatprep.subr.mxu0 %v85
    %1213 = vmatpush1.msra.mxu0 %v84
    %1214 = vmatprep.subr.mxu0 %v87
    %1215 = vmatpush1.msra.mxu0 %v86
    %1216 = vmatprep.subr.mxu0 %v89
    %1217 = vmatpush1.msra.mxu0 %v88
    %1218 = vmatprep.subr.mxu0 %v91
    %1219 = vmatpush1.msra.mxu0 %v90
    %1220 = vmatprep.subr.mxu0 %v93
    %1221 = vmatpush1.msra.mxu0 %v92
    %1222 = vmatprep.subr.mxu0 %v95
    %1223 = vmatpush1.msra.mxu0 %v94
    %1224 = vmatprep.subr.mxu0 %v97
    %1225 = vmatpush1.msra.mxu0 %v96
    %1226 = vmatprep.subr.mxu0 %v99
    %1227 = vmatpush1.msra.mxu0 %v98
    %1228 = vmatprep.subr.mxu0 %v101
    %1229 = vmatpush1.msra.mxu0 %v100
    %1230 = vmatprep.subr.mxu0 %v103
    %1231 = vmatpush1.msra.mxu0 %v102
    %1232 = vmatprep.subr.mxu0 %v105
    %1233 = vmatpush1.msra.mxu0 %v104
    %1234 = vmatprep.subr.mxu0 0.0
    %1235 = vmatpush1.msra.mxu0 0.0
    %1236 = vmatprep.subr.mxu0 0.0
    %1237 = vmatpush1.msra.mxu0 0.0
    %1238 = vmatprep.subr.mxu0 0.0
    %1239 = vmatpush1.msra.mxu0 0.0
    %1240 = vmatprep.subr.mxu0 0.0
    %1241 = vmatpush1.msra.mxu0 0.0
    %1242 = vmatprep.subr.mxu0 0.0
    %1243 = vmatpush1.msra.mxu0 0.0
    %1244 = vmatprep.subr.mxu0 0.0
    %1245 = vmatpush1.msra.mxu0 0.0
    %1246 = vmatprep.subr.mxu0 0.0
    %1247 = vmatpush1.msra.mxu0 0.0
    %1248 = vmatprep.subr.mxu0 0.0
    %1249 = vmatpush1.msra.mxu0 0.0
    %1250 = vmatprep.subr.mxu0 0.0
    %1251 = vmatpush1.msra.mxu0 0.0
    %1252 = vmatprep.subr.mxu0 0.0
    %1253 = vmatpush1.msra.mxu0 0.0
    %1254 = vmatprep.subr.mxu0 0.0
    %1255 = vmatpush1.msra.mxu0 0.0
    %1256 = vmatprep.subr.mxu0 0.0
    %1257 = vmatpush1.msra.mxu0 0.0
    %1258 = vmatprep.subr.mxu0 0.0
    %1259 = vmatpush1.msra.mxu0 0.0
    %1260 = vmatprep.subr.mxu0 0.0
    %1261 = vmatpush1.msra.mxu0 0.0
    %1262 = vmatprep.subr.mxu0 0.0
    %1263 = vmatpush1.msra.mxu0 0.0
    %1264 = vmatprep.subr.mxu0 0.0
    %1265 = vmatpush1.msra.mxu0 0.0
    %1266 = vmatprep.mubr.f32.mxu0 0.0
    %1267 = vmatmul.mubr.f32.gmra.mrb[0].mxu0 %v1201
    %v1268 = vpop.f32.mrb[0].mxu0
    %v1269 = vadd.f32 0.0, %v1268
    %v1270 = vpop.f32.mrb[0].mxu0
    %v1271 = vadd.f32 0.0, %v1270
    %1272 = vdwg.mxu0
    %1273 = vset.pattern.permute.xlu0 7
    %1274 = vperm.xlu0 %1273, %v115
    %v1275 = vpop.permute.xlu0 %1274
    %vm1276 = vcmp.eq.s32.totalorder %v117, %v1275
    %v1277 = vsel %vm1276, 1, 0
    %v1278 = vcvt.s32.f32 %v1277
    %1279 = vmatprep.subr.mxu0 %v75
    %1280 = vmatpush1.msra.mxu0 %v74
    %1281 = vmatprep.subr.mxu0 %v77
    %1282 = vmatpush1.msra.mxu0 %v76
    %1283 = vmatprep.subr.mxu0 %v79
    %1284 = vmatpush1.msra.mxu0 %v78
    %1285 = vmatprep.subr.mxu0 %v81
    %1286 = vmatpush1.msra.mxu0 %v80
    %1287 = vmatprep.subr.mxu0 %v83
    %1288 = vmatpush1.msra.mxu0 %v82
    %1289 = vmatprep.subr.mxu0 %v85
    %1290 = vmatpush1.msra.mxu0 %v84
    %1291 = vmatprep.subr.mxu0 %v87
    %1292 = vmatpush1.msra.mxu0 %v86
    %1293 = vmatprep.subr.mxu0 %v89
    %1294 = vmatpush1.msra.mxu0 %v88
    %1295 = vmatprep.subr.mxu0 %v91
    %1296 = vmatpush1.msra.mxu0 %v90
    %1297 = vmatprep.subr.mxu0 %v93
    %1298 = vmatpush1.msra.mxu0 %v92
    %1299 = vmatprep.subr.mxu0 %v95
    %1300 = vmatpush1.msra.mxu0 %v94
    %1301 = vmatprep.subr.mxu0 %v97
    %1302 = vmatpush1.msra.mxu0 %v96
    %1303 = vmatprep.subr.mxu0 %v99
    %1304 = vmatpush1.msra.mxu0 %v98
    %1305 = vmatprep.subr.mxu0 %v101
    %1306 = vmatpush1.msra.mxu0 %v100
    %1307 = vmatprep.subr.mxu0 %v103
    %1308 = vmatpush1.msra.mxu0 %v102
    %1309 = vmatprep.subr.mxu0 %v105
    %1310 = vmatpush1.msra.mxu0 %v104
    %1311 = vmatprep.subr.mxu0 0.0
    %1312 = vmatpush1.msra.mxu0 0.0
    %1313 = vmatprep.subr.mxu0 0.0
    %1314 = vmatpush1.msra.mxu0 0.0
    %1315 = vmatprep.subr.mxu0 0.0
    %1316 = vmatpush1.msra.mxu0 0.0
    %1317 = vmatprep.subr.mxu0 0.0
    %1318 = vmatpush1.msra.mxu0 0.0
    %1319 = vmatprep.subr.mxu0 0.0
    %1320 = vmatpush1.msra.mxu0 0.0
    %1321 = vmatprep.subr.mxu0 0.0
    %1322 = vmatpush1.msra.mxu0 0.0
    %1323 = vmatprep.subr.mxu0 0.0
    %1324 = vmatpush1.msra.mxu0 0.0
    %1325 = vmatprep.subr.mxu0 0.0
    %1326 = vmatpush1.msra.mxu0 0.0
    %1327 = vmatprep.subr.mxu0 0.0
    %1328 = vmatpush1.msra.mxu0 0.0
    %1329 = vmatprep.subr.mxu0 0.0
    %1330 = vmatpush1.msra.mxu0 0.0
    %1331 = vmatprep.subr.mxu0 0.0
    %1332 = vmatpush1.msra.mxu0 0.0
    %1333 = vmatprep.subr.mxu0 0.0
    %1334 = vmatpush1.msra.mxu0 0.0
    %1335 = vmatprep.subr.mxu0 0.0
    %1336 = vmatpush1.msra.mxu0 0.0
    %1337 = vmatprep.subr.mxu0 0.0
    %1338 = vmatpush1.msra.mxu0 0.0
    %1339 = vmatprep.subr.mxu0 0.0
    %1340 = vmatpush1.msra.mxu0 0.0
    %1341 = vmatprep.subr.mxu0 0.0
    %1342 = vmatpush1.msra.mxu0 0.0
    %1343 = vmatprep.mubr.f32.mxu0 0.0
    %1344 = vmatmul.mubr.f32.gmra.mrb[0].mxu0 %v1278
    %v1345 = vpop.f32.mrb[0].mxu0
    %v1346 = vadd.f32 0.0, %v1345
    %v1347 = vpop.f32.mrb[0].mxu0
    %v1348 = vadd.f32 0.0, %v1347
    %1349 = vdwg.mxu0
    %vm1350 = vcmask 261120
    %v1352 = vsel %vm1350, 0.0, 0
    %1354 = vmatprep.subr.mxu0 0.0
    %1355 = vmatpush1.msra.mxu0 %v106
    %1356 = vmatprep.subr.mxu0 0.0
    %1357 = vmatpush1.msra.mxu0 %v107
    %1358 = vmatprep.subr.mxu0 0.0
    %1359 = vmatpush1.msra.mxu0 %v108
    %1360 = vmatprep.subr.mxu0 0.0
    %1361 = vmatpush1.msra.mxu0 %v109
    %1362 = vmatprep.subr.mxu0 0.0
    %1363 = vmatpush1.msra.mxu0 0.0
    %1364 = vmatprep.subr.mxu0 0.0
    %1365 = vmatpush1.msra.mxu0 0.0
    %1366 = vmatprep.subr.mxu0 0.0
    %1367 = vmatpush1.msra.mxu0 0.0
    %1368 = vmatprep.subr.mxu0 0.0
    %1369 = vmatpush1.msra.mxu0 0.0
    %1370 = vmatprep.subr.mxu0 0.0
    %1371 = vmatpush1.msra.mxu0 0.0
    %1372 = vmatprep.subr.mxu0 0.0
    %1373 = vmatpush1.msra.mxu0 0.0
    %1374 = vmatprep.subr.mxu0 0.0
    %1375 = vmatpush1.msra.mxu0 0.0
    %1376 = vmatprep.subr.mxu0 0.0
    %1377 = vmatpush1.msra.mxu0 0.0
    %1378 = vmatprep.subr.mxu0 0.0
    %1379 = vmatpush1.msra.mxu0 0.0
    %1380 = vmatprep.subr.mxu0 0.0
    %1381 = vmatpush1.msra.mxu0 0.0
    %1382 = vmatprep.subr.mxu0 0.0
    %1383 = vmatpush1.msra.mxu0 0.0
    %1384 = vmatprep.subr.mxu0 0.0
    %1385 = vmatpush1.msra.mxu0 0.0
    %1386 = vmatprep.subr.mxu0 0.0
    %1387 = vmatpush1.msra.mxu0 0.0
    %1388 = vmatprep.subr.mxu0 0.0
    %1389 = vmatpush1.msra.mxu0 0.0
    %1390 = vmatprep.subr.mxu0 0.0
    %1391 = vmatpush1.msra.mxu0 0.0
    %1392 = vmatprep.subr.mxu0 0.0
    %1393 = vmatpush1.msra.mxu0 0.0
    %1394 = vmatprep.subr.mxu0 0.0
    %1395 = vmatpush1.msra.mxu0 0.0
    %1396 = vmatprep.subr.mxu0 0.0
    %1397 = vmatpush1.msra.mxu0 0.0
    %1398 = vmatprep.subr.mxu0 0.0
    %1399 = vmatpush1.msra.mxu0 0.0
    %1400 = vmatprep.subr.mxu0 0.0
    %1401 = vmatpush1.msra.mxu0 0.0
    %1402 = vmatprep.subr.mxu0 0.0
    %1403 = vmatpush1.msra.mxu0 0.0
    %1404 = vmatprep.subr.mxu0 0.0
    %1405 = vmatpush1.msra.mxu0 0.0
    %1406 = vmatprep.subr.mxu0 0.0
    %1407 = vmatpush1.msra.mxu0 0.0
    %1408 = vmatprep.subr.mxu0 0.0
    %1409 = vmatpush1.msra.mxu0 0.0
    %1410 = vmatprep.subr.mxu0 0.0
    %1411 = vmatpush1.msra.mxu0 0.0
    %1412 = vmatprep.subr.mxu0 0.0
    %1413 = vmatpush1.msra.mxu0 0.0
    %1414 = vmatprep.subr.mxu0 0.0
    %1415 = vmatpush1.msra.mxu0 0.0
    %1416 = vmatprep.subr.mxu0 0.0
    %1417 = vmatpush1.msra.mxu0 0.0
    %1418 = vmatprep.mubr.f32.mxu0 0.0
    %1419 = vmatmul.mubr.f32.gmra.mrb[0].mxu0 %v1352
    %v1420 = vpop.f32.mrb[0].mxu0
    %v1421 = vadd.f32 0.0, %v1420
    %v1422 = vpop.f32.mrb[0].mxu0
    %1423 = vdwg.mxu0
    %1424 = vmatprep.subr.mxu0 0.0
    %1425 = vmatpush1.msra.mxu0 %v110
    %1426 = vmatprep.subr.mxu0 0.0
    %1427 = vmatpush1.msra.mxu0 %v111
    %1428 = vmatprep.subr.mxu0 0.0
    %1429 = vmatpush1.msra.mxu0 %v112
    %1430 = vmatprep.subr.mxu0 0.0
    %1431 = vmatpush1.msra.mxu0 %v113
    %1432 = vmatprep.subr.mxu0 0.0
    %1433 = vmatpush1.msra.mxu0 0.0
    %1434 = vmatprep.subr.mxu0 0.0
    %1435 = vmatpush1.msra.mxu0 0.0
    %1436 = vmatprep.subr.mxu0 0.0
    %1437 = vmatpush1.msra.mxu0 0.0
    %1438 = vmatprep.subr.mxu0 0.0
    %1439 = vmatpush1.msra.mxu0 0.0
    %1440 = vmatprep.subr.mxu0 0.0
    %1441 = vmatpush1.msra.mxu0 0.0
    %1442 = vmatprep.subr.mxu0 0.0
    %1443 = vmatpush1.msra.mxu0 0.0
    %1444 = vmatprep.subr.mxu0 0.0
    %1445 = vmatpush1.msra.mxu0 0.0
    %1446 = vmatprep.subr.mxu0 0.0
    %1447 = vmatpush1.msra.mxu0 0.0
    %1448 = vmatprep.subr.mxu0 0.0
    %1449 = vmatpush1.msra.mxu0 0.0
    %1450 = vmatprep.subr.mxu0 0.0
    %1451 = vmatpush1.msra.mxu0 0.0
    %1452 = vmatprep.subr.mxu0 0.0
    %1453 = vmatpush1.msra.mxu0 0.0
    %1454 = vmatprep.subr.mxu0 0.0
    %1455 = vmatpush1.msra.mxu0 0.0
    %1456 = vmatprep.subr.mxu0 0.0
    %1457 = vmatpush1.msra.mxu0 0.0
    %1458 = vmatprep.subr.mxu0 0.0
    %1459 = vmatpush1.msra.mxu0 0.0
    %1460 = vmatprep.subr.mxu0 0.0
    %1461 = vmatpush1.msra.mxu0 0.0
    %1462 = vmatprep.subr.mxu0 0.0
    %1463 = vmatpush1.msra.mxu0 0.0
    %1464 = vmatprep.subr.mxu0 0.0
    %1465 = vmatpush1.msra.mxu0 0.0
    %1466 = vmatprep.subr.mxu0 0.0
    %1467 = vmatpush1.msra.mxu0 0.0
    %1468 = vmatprep.subr.mxu0 0.0
    %1469 = vmatpush1.msra.mxu0 0.0
    %1470 = vmatprep.subr.mxu0 0.0
    %1471 = vmatpush1.msra.mxu0 0.0
    %1472 = vmatprep.subr.mxu0 0.0
    %1473 = vmatpush1.msra.mxu0 0.0
    %1474 = vmatprep.subr.mxu0 0.0
    %1475 = vmatpush1.msra.mxu0 0.0
    %1476 = vmatprep.subr.mxu0 0.0
    %1477 = vmatpush1.msra.mxu0 0.0
    %1478 = vmatprep.subr.mxu0 0.0
    %1479 = vmatpush1.msra.mxu0 0.0
    %1480 = vmatprep.subr.mxu0 0.0
    %1481 = vmatpush1.msra.mxu0 0.0
    %1482 = vmatprep.subr.mxu0 0.0
    %1483 = vmatpush1.msra.mxu0 0.0
    %1484 = vmatprep.subr.mxu0 0.0
    %1485 = vmatpush1.msra.mxu0 0.0
    %1486 = vmatprep.subr.mxu0 0.0
    %1487 = vmatpush1.msra.mxu0 0.0
    %1488 = vmatprep.mubr.f32.mxu0 0.0
    %1489 = vmatmul.mubr.f32.gmra.mrb[0].mxu0 %v1352
    %v1490 = vpop.f32.mrb[0].mxu0
    %v1491 = vadd.f32 0.0, %v1490
    %v1492 = vpop.f32.mrb[0].mxu0
    %1493 = vdwg.mxu0
    %v1494 = vadd.f32 %v191, %v1421
    %v1495 = vsub.f32 0.0, %v1494
    %v1496 = vmul.f32 %v1495, 1.442695
    %v1497 = vpow.pop %v1496
    %v1498 = vadd.f32 %v1497, 1.0
    %v1499 = vrcp.pop %v1498
    %v1500 = vmul.f32 1.0, %v1499
    %v1501 = vtanh.pop %v1494
    %v1502 = vmul.f32 %v1500, 0.0
    %1504 = vrot.lane.b32.xlu0 %v1501, 64
    %v1505 = vpop.permute.xlu0 %1504
    %v1507 = vmul.f32 %v1500, %v1505
    %1509 = vrot.lane.b32.xlu0 %v1507, 32
    %v1510 = vpop.permute.xlu0 %1509
    %v1512 = vadd.f32 %v1502, %v1510
    %v1513 = vtanh.pop %v1512
    %1515 = vrot.lane.b32.xlu0 %v1513, 64
    %v1516 = vpop.permute.xlu0 %1515
    %v1518 = vmul.f32 %v1500, %v1516
    %v1519 = vadd.f32 %v732, %v1491
    %v1520 = vsub.f32 0.0, %v1519
    %v1521 = vmul.f32 %v1520, 1.442695
    %v1522 = vpow.pop %v1521
    %v1523 = vadd.f32 %v1522, 1.0
    %v1524 = vrcp.pop %v1523
    %v1525 = vmul.f32 1.0, %v1524
    %v1526 = vtanh.pop %v1519
    %v1527 = vmul.f32 %v1525, 0.0
    %1529 = vrot.lane.b32.xlu0 %v1526, 64
    %v1530 = vpop.permute.xlu0 %1529
    %v1532 = vmul.f32 %v1525, %v1530
    %1534 = vrot.lane.b32.xlu0 %v1532, 32
    %v1535 = vpop.permute.xlu0 %1534
    %v1537 = vadd.f32 %v1527, %v1535
    %v1538 = vtanh.pop %v1537
    %1540 = vrot.lane.b32.xlu0 %v1538, 64
    %v1541 = vpop.permute.xlu0 %1540
    %v1543 = vmul.f32 %v1525, %v1541
    %v1544 = vadd.f32 %v807, %v1421
    %v1545 = vsub.f32 0.0, %v1544
    %v1546 = vmul.f32 %v1545, 1.442695
    %v1547 = vpow.pop %v1546
    %v1548 = vadd.f32 %v1547, 1.0
    %v1549 = vrcp.pop %v1548
    %v1550 = vmul.f32 1.0, %v1549
    %v1551 = vtanh.pop %v1544
    %v1552 = vmul.f32 %v1550, 0.0
    %1554 = vrot.lane.b32.xlu0 %v1551, 64
    %v1555 = vpop.permute.xlu0 %1554
    %v1557 = vmul.f32 %v1550, %v1555
    %1559 = vrot.lane.b32.xlu0 %v1557, 32
    %v1560 = vpop.permute.xlu0 %1559
    %v1562 = vadd.f32 %v1552, %v1560
    %v1563 = vtanh.pop %v1562
    %1565 = vrot.lane.b32.xlu0 %v1563, 64
    %v1566 = vpop.permute.xlu0 %1565
    %v1568 = vmul.f32 %v1550, %v1566
    %v1569 = vadd.f32 %v1348, %v1491
    %v1570 = vsub.f32 0.0, %v1569
    %v1571 = vmul.f32 %v1570, 1.442695
    %v1572 = vpow.pop %v1571
    %v1573 = vadd.f32 %v1572, 1.0
    %v1574 = vrcp.pop %v1573
    %v1575 = vmul.f32 1.0, %v1574
    %v1576 = vtanh.pop %v1569
    %v1577 = vmul.f32 %v1575, 0.0
    %1579 = vrot.lane.b32.xlu0 %v1576, 64
    %v1580 = vpop.permute.xlu0 %1579
    %v1582 = vmul.f32 %v1575, %v1580
    %1584 = vrot.lane.b32.xlu0 %v1582, 32
    %v1585 = vpop.permute.xlu0 %1584
    %v1587 = vadd.f32 %v1577, %v1585
    %v1588 = vtanh.pop %v1587
    %1590 = vrot.lane.b32.xlu0 %v1588, 64
    %v1591 = vpop.permute.xlu0 %1590
    %v1593 = vmul.f32 %v1575, %v1591
    %v1594 = vmul.f32 %v1518, %v1568
    %v1595 = vadd.f32 %v1594, 0.0
    %v1596 = vmul.f32 %v1543, %v1593
    %v1597 = vadd.f32 %v1596, 0.0
    %v1598 = vmul.f32 %v1518, %v1518
    %v1599 = vadd.f32 %v1598, 0.0
    %v1600 = vmul.f32 %v1543, %v1543
    %v1601 = vadd.f32 %v1600, 0.0
    %v1602 = vmul.f32 %v1568, %v1568
    %v1603 = vadd.f32 %v1602, 0.0
    %v1604 = vmul.f32 %v1593, %v1593
    %v1605 = vadd.f32 %v1604, 0.0
    %1607 = vrot.lane.b32.xlu0 %v1518, 32
    %v1608 = vpop.permute.xlu0 %1607
    %v1609 = vsel %vm1350, %v1608, 0
    %1611 = vmatprep.subr.mxu0 0.0
    %1612 = vmatpush1.msra.mxu0 %v106
    %1613 = vmatprep.subr.mxu0 0.0
    %1614 = vmatpush1.msra.mxu0 %v107
    %1615 = vmatprep.subr.mxu0 0.0
    %1616 = vmatpush1.msra.mxu0 %v108
    %1617 = vmatprep.subr.mxu0 0.0
    %1618 = vmatpush1.msra.mxu0 %v109
    %1619 = vmatprep.subr.mxu0 0.0
    %1620 = vmatpush1.msra.mxu0 0.0
    %1621 = vmatprep.subr.mxu0 0.0
    %1622 = vmatpush1.msra.mxu0 0.0
    %1623 = vmatprep.subr.mxu0 0.0
    %1624 = vmatpush1.msra.mxu0 0.0
    %1625 = vmatprep.subr.mxu0 0.0
    %1626 = vmatpush1.msra.mxu0 0.0
    %1627 = vmatprep.subr.mxu0 0.0
    %1628 = vmatpush1.msra.mxu0 0.0
    %1629 = vmatprep.subr.mxu0 0.0
    %1630 = vmatpush1.msra.mxu0 0.0
    %1631 = vmatprep.subr.mxu0 0.0
    %1632 = vmatpush1.msra.mxu0 0.0
    %1633 = vmatprep.subr.mxu0 0.0
    %1634 = vmatpush1.msra.mxu0 0.0
    %1635 = vmatprep.subr.mxu0 0.0
    %1636 = vmatpush1.msra.mxu0 0.0
    %1637 = vmatprep.subr.mxu0 0.0
    %1638 = vmatpush1.msra.mxu0 0.0
    %1639 = vmatprep.subr.mxu0 0.0
    %1640 = vmatpush1.msra.mxu0 0.0
    %1641 = vmatprep.subr.mxu0 0.0
    %1642 = vmatpush1.msra.mxu0 0.0
    %1643 = vmatprep.subr.mxu0 0.0
    %1644 = vmatpush1.msra.mxu0 0.0
    %1645 = vmatprep.subr.mxu0 0.0
    %1646 = vmatpush1.msra.mxu0 0.0
    %1647 = vmatprep.subr.mxu0 0.0
    %1648 = vmatpush1.msra.mxu0 0.0
    %1649 = vmatprep.subr.mxu0 0.0
    %1650 = vmatpush1.msra.mxu0 0.0
    %1651 = vmatprep.subr.mxu0 0.0
    %1652 = vmatpush1.msra.mxu0 0.0
    %1653 = vmatprep.subr.mxu0 0.0
    %1654 = vmatpush1.msra.mxu0 0.0
    %1655 = vmatprep.subr.mxu0 0.0
    %1656 = vmatpush1.msra.mxu0 0.0
    %1657 = vmatprep.subr.mxu0 0.0
    %1658 = vmatpush1.msra.mxu0 0.0
    %1659 = vmatprep.subr.mxu0 0.0
    %1660 = vmatpush1.msra.mxu0 0.0
    %1661 = vmatprep.subr.mxu0 0.0
    %1662 = vmatpush1.msra.mxu0 0.0
    %1663 = vmatprep.subr.mxu0 0.0
    %1664 = vmatpush1.msra.mxu0 0.0
    %1665 = vmatprep.subr.mxu0 0.0
    %1666 = vmatpush1.msra.mxu0 0.0
    %1667 = vmatprep.subr.mxu0 0.0
    %1668 = vmatpush1.msra.mxu0 0.0
    %1669 = vmatprep.subr.mxu0 0.0
    %1670 = vmatpush1.msra.mxu0 0.0
    %1671 = vmatprep.subr.mxu0 0.0
    %1672 = vmatpush1.msra.mxu0 0.0
    %1673 = vmatprep.subr.mxu0 0.0
    %1674 = vmatpush1.msra.mxu0 0.0
    %1675 = vmatprep.mubr.f32.mxu0 0.0
    %1676 = vmatmul.mubr.f32.gmra.mrb[0].mxu0 %v1609
    %v1677 = vpop.f32.mrb[0].mxu0
    %v1678 = vadd.f32 0.0, %v1677
    %v1679 = vpop.f32.mrb[0].mxu0
    %1680 = vdwg.mxu0
    %1682 = vrot.lane.b32.xlu0 %v1543, 32
    %v1683 = vpop.permute.xlu0 %1682
    %v1684 = vsel %vm1350, %v1683, 0
    %1686 = vmatprep.subr.mxu0 0.0
    %1687 = vmatpush1.msra.mxu0 %v110
    %1688 = vmatprep.subr.mxu0 0.0
    %1689 = vmatpush1.msra.mxu0 %v111
    %1690 = vmatprep.subr.mxu0 0.0
    %1691 = vmatpush1.msra.mxu0 %v112
    %1692 = vmatprep.subr.mxu0 0.0
    %1693 = vmatpush1.msra.mxu0 %v113
    %1694 = vmatprep.subr.mxu0 0.0
    %1695 = vmatpush1.msra.mxu0 0.0
    %1696 = vmatprep.subr.mxu0 0.0
    %1697 = vmatpush1.msra.mxu0 0.0
    %1698 = vmatprep.subr.mxu0 0.0
    %1699 = vmatpush1.msra.mxu0 0.0
    %1700 = vmatprep.subr.mxu0 0.0
    %1701 = vmatpush1.msra.mxu0 0.0
    %1702 = vmatprep.subr.mxu0 0.0
    %1703 = vmatpush1.msra.mxu0 0.0
    %1704 = vmatprep.subr.mxu0 0.0
    %1705 = vmatpush1.msra.mxu0 0.0
    %1706 = vmatprep.subr.mxu0 0.0
    %1707 = vmatpush1.msra.mxu0 0.0
    %1708 = vmatprep.subr.mxu0 0.0
    %1709 = vmatpush1.msra.mxu0 0.0
    %1710 = vmatprep.subr.mxu0 0.0
    %1711 = vmatpush1.msra.mxu0 0.0
    %1712 = vmatprep.subr.mxu0 0.0
    %1713 = vmatpush1.msra.mxu0 0.0
    %1714 = vmatprep.subr.mxu0 0.0
    %1715 = vmatpush1.msra.mxu0 0.0
    %1716 = vmatprep.subr.mxu0 0.0
    %1717 = vmatpush1.msra.mxu0 0.0
    %1718 = vmatprep.subr.mxu0 0.0
    %1719 = vmatpush1.msra.mxu0 0.0
    %1720 = vmatprep.subr.mxu0 0.0
    %1721 = vmatpush1.msra.mxu0 0.0
    %1722 = vmatprep.subr.mxu0 0.0
    %1723 = vmatpush1.msra.mxu0 0.0
    %1724 = vmatprep.subr.mxu0 0.0
    %1725 = vmatpush1.msra.mxu0 0.0
    %1726 = vmatprep.subr.mxu0 0.0
    %1727 = vmatpush1.msra.mxu0 0.0
    %1728 = vmatprep.subr.mxu0 0.0
    %1729 = vmatpush1.msra.mxu0 0.0
    %1730 = vmatprep.subr.mxu0 0.0
    %1731 = vmatpush1.msra.mxu0 0.0
    %1732 = vmatprep.subr.mxu0 0.0
    %1733 = vmatpush1.msra.mxu0 0.0
    %1734 = vmatprep.subr.mxu0 0.0
    %1735 = vmatpush1.msra.mxu0 0.0
    %1736 = vmatprep.subr.mxu0 0.0
    %1737 = vmatpush1.msra.mxu0 0.0
    %1738 = vmatprep.subr.mxu0 0.0
    %1739 = vmatpush1.msra.mxu0 0.0
    %1740 = vmatprep.subr.mxu0 0.0
    %1741 = vmatpush1.msra.mxu0 0.0
    %1742 = vmatprep.subr.mxu0 0.0
    %1743 = vmatpush1.msra.mxu0 0.0
    %1744 = vmatprep.subr.mxu0 0.0
    %1745 = vmatpush1.msra.mxu0 0.0
    %1746 = vmatprep.subr.mxu0 0.0
    %1747 = vmatpush1.msra.mxu0 0.0
    %1748 = vmatprep.subr.mxu0 0.0
    %1749 = vmatpush1.msra.mxu0 0.0
    %1750 = vmatprep.mubr.f32.mxu0 0.0
    %1751 = vmatmul.mubr.f32.gmra.mrb[0].mxu0 %v1684
    %v1752 = vpop.f32.mrb[0].mxu0
    %v1753 = vadd.f32 0.0, %v1752
    %v1754 = vpop.f32.mrb[0].mxu0
    %1755 = vdwg.mxu0
    %1757 = vrot.lane.b32.xlu0 %v1568, 32
    %v1758 = vpop.permute.xlu0 %1757
    %v1759 = vsel %vm1350, %v1758, 0
    %1761 = vmatprep.subr.mxu0 0.0
    %1762 = vmatpush1.msra.mxu0 %v106
    %1763 = vmatprep.subr.mxu0 0.0
    %1764 = vmatpush1.msra.mxu0 %v107
    %1765 = vmatprep.subr.mxu0 0.0
    %1766 = vmatpush1.msra.mxu0 %v108
    %1767 = vmatprep.subr.mxu0 0.0
    %1768 = vmatpush1.msra.mxu0 %v109
    %1769 = vmatprep.subr.mxu0 0.0
    %1770 = vmatpush1.msra.mxu0 0.0
    %1771 = vmatprep.subr.mxu0 0.0
    %1772 = vmatpush1.msra.mxu0 0.0
    %1773 = vmatprep.subr.mxu0 0.0
    %1774 = vmatpush1.msra.mxu0 0.0
    %1775 = vmatprep.subr.mxu0 0.0
    %1776 = vmatpush1.msra.mxu0 0.0
    %1777 = vmatprep.subr.mxu0 0.0
    %1778 = vmatpush1.msra.mxu0 0.0
    %1779 = vmatprep.subr.mxu0 0.0
    %1780 = vmatpush1.msra.mxu0 0.0
    %1781 = vmatprep.subr.mxu0 0.0
    %1782 = vmatpush1.msra.mxu0 0.0
    %1783 = vmatprep.subr.mxu0 0.0
    %1784 = vmatpush1.msra.mxu0 0.0
    %1785 = vmatprep.subr.mxu0 0.0
    %1786 = vmatpush1.msra.mxu0 0.0
    %1787 = vmatprep.subr.mxu0 0.0
    %1788 = vmatpush1.msra.mxu0 0.0
    %1789 = vmatprep.subr.mxu0 0.0
    %1790 = vmatpush1.msra.mxu0 0.0
    %1791 = vmatprep.subr.mxu0 0.0
    %1792 = vmatpush1.msra.mxu0 0.0
    %1793 = vmatprep.subr.mxu0 0.0
    %1794 = vmatpush1.msra.mxu0 0.0
    %1795 = vmatprep.subr.mxu0 0.0
    %1796 = vmatpush1.msra.mxu0 0.0
    %1797 = vmatprep.subr.mxu0 0.0
    %1798 = vmatpush1.msra.mxu0 0.0
    %1799 = vmatprep.subr.mxu0 0.0
    %1800 = vmatpush1.msra.mxu0 0.0
    %1801 = vmatprep.subr.mxu0 0.0
    %1802 = vmatpush1.msra.mxu0 0.0
    %1803 = vmatprep.subr.mxu0 0.0
    %1804 = vmatpush1.msra.mxu0 0.0
    %1805 = vmatprep.subr.mxu0 0.0
    %1806 = vmatpush1.msra.mxu0 0.0
    %1807 = vmatprep.subr.mxu0 0.0
    %1808 = vmatpush1.msra.mxu0 0.0
    %1809 = vmatprep.subr.mxu0 0.0
    %1810 = vmatpush1.msra.mxu0 0.0
    %1811 = vmatprep.subr.mxu0 0.0
    %1812 = vmatpush1.msra.mxu0 0.0
    %1813 = vmatprep.subr.mxu0 0.0
    %1814 = vmatpush1.msra.mxu0 0.0
    %1815 = vmatprep.subr.mxu0 0.0
    %1816 = vmatpush1.msra.mxu0 0.0
    %1817 = vmatprep.subr.mxu0 0.0
    %1818 = vmatpush1.msra.mxu0 0.0
    %1819 = vmatprep.subr.mxu0 0.0
    %1820 = vmatpush1.msra.mxu0 0.0
    %1821 = vmatprep.subr.mxu0 0.0
    %1822 = vmatpush1.msra.mxu0 0.0
    %1823 = vmatprep.subr.mxu0 0.0
    %1824 = vmatpush1.msra.mxu0 0.0
    %1825 = vmatprep.mubr.f32.mxu0 0.0
    %1826 = vmatmul.mubr.f32.gmra.mrb[0].mxu0 %v1759
    %v1827 = vpop.f32.mrb[0].mxu0
    %v1828 = vadd.f32 0.0, %v1827
    %v1829 = vpop.f32.mrb[0].mxu0
    %1830 = vdwg.mxu0
    %1832 = vrot.lane.b32.xlu0 %v1593, 32
    %v1833 = vpop.permute.xlu0 %1832
    %v1834 = vsel %vm1350, %v1833, 0
    %1836 = vmatprep.subr.mxu0 0.0
    %1837 = vmatpush1.msra.mxu0 %v110
    %1838 = vmatprep.subr.mxu0 0.0
    %1839 = vmatpush1.msra.mxu0 %v111
    %1840 = vmatprep.subr.mxu0 0.0
    %1841 = vmatpush1.msra.mxu0 %v112
    %1842 = vmatprep.subr.mxu0 0.0
    %1843 = vmatpush1.msra.mxu0 %v113
    %1844 = vmatprep.subr.mxu0 0.0
    %1845 = vmatpush1.msra.mxu0 0.0
    %1846 = vmatprep.subr.mxu0 0.0
    %1847 = vmatpush1.msra.mxu0 0.0
    %1848 = vmatprep.subr.mxu0 0.0
    %1849 = vmatpush1.msra.mxu0 0.0
    %1850 = vmatprep.subr.mxu0 0.0
    %1851 = vmatpush1.msra.mxu0 0.0
    %1852 = vmatprep.subr.mxu0 0.0
    %1853 = vmatpush1.msra.mxu0 0.0
    %1854 = vmatprep.subr.mxu0 0.0
    %1855 = vmatpush1.msra.mxu0 0.0
    %1856 = vmatprep.subr.mxu0 0.0
    %1857 = vmatpush1.msra.mxu0 0.0
    %1858 = vmatprep.subr.mxu0 0.0
    %1859 = vmatpush1.msra.mxu0 0.0
    %1860 = vmatprep.subr.mxu0 0.0
    %1861 = vmatpush1.msra.mxu0 0.0
    %1862 = vmatprep.subr.mxu0 0.0
    %1863 = vmatpush1.msra.mxu0 0.0
    %1864 = vmatprep.subr.mxu0 0.0
    %1865 = vmatpush1.msra.mxu0 0.0
    %1866 = vmatprep.subr.mxu0 0.0
    %1867 = vmatpush1.msra.mxu0 0.0
    %1868 = vmatprep.subr.mxu0 0.0
    %1869 = vmatpush1.msra.mxu0 0.0
    %1870 = vmatprep.subr.mxu0 0.0
    %1871 = vmatpush1.msra.mxu0 0.0
    %1872 = vmatprep.subr.mxu0 0.0
    %1873 = vmatpush1.msra.mxu0 0.0
    %1874 = vmatprep.subr.mxu0 0.0
    %1875 = vmatpush1.msra.mxu0 0.0
    %1876 = vmatprep.subr.mxu0 0.0
    %1877 = vmatpush1.msra.mxu0 0.0
    %1878 = vmatprep.subr.mxu0 0.0
    %1879 = vmatpush1.msra.mxu0 0.0
    %1880 = vmatprep.subr.mxu0 0.0
    %1881 = vmatpush1.msra.mxu0 0.0
    %1882 = vmatprep.subr.mxu0 0.0
    %1883 = vmatpush1.msra.mxu0 0.0
    %1884 = vmatprep.subr.mxu0 0.0
    %1885 = vmatpush1.msra.mxu0 0.0
    %1886 = vmatprep.subr.mxu0 0.0
    %1887 = vmatpush1.msra.mxu0 0.0
    %1888 = vmatprep.subr.mxu0 0.0
    %1889 = vmatpush1.msra.mxu0 0.0
    %1890 = vmatprep.subr.mxu0 0.0
    %1891 = vmatpush1.msra.mxu0 0.0
    %1892 = vmatprep.subr.mxu0 0.0
    %1893 = vmatpush1.msra.mxu0 0.0
    %1894 = vmatprep.subr.mxu0 0.0
    %1895 = vmatpush1.msra.mxu0 0.0
    %1896 = vmatprep.subr.mxu0 0.0
    %1897 = vmatpush1.msra.mxu0 0.0
    %1898 = vmatprep.subr.mxu0 0.0
    %1899 = vmatpush1.msra.mxu0 0.0
    %1900 = vmatprep.mubr.f32.mxu0 0.0
    %1901 = vmatmul.mubr.f32.gmra.mrb[0].mxu0 %v1834
    %v1902 = vpop.f32.mrb[0].mxu0
    %v1903 = vadd.f32 0.0, %v1902
    %v1904 = vpop.f32.mrb[0].mxu0
    %1905 = vdwg.mxu0
    %v1906 = vadd.f32 %v268, %v1678
    %v1907 = vsub.f32 0.0, %v1906
    %v1908 = vmul.f32 %v1907, 1.442695
    %v1909 = vpow.pop %v1908
    %v1910 = vadd.f32 %v1909, 1.0
    %v1911 = vrcp.pop %v1910
    %v1912 = vmul.f32 1.0, %v1911
    %v1913 = vtanh.pop %v1906
    %v1914 = vmul.f32 %v1912, %v1512
    %1916 = vrot.lane.b32.xlu0 %v1913, 64
    %v1917 = vpop.permute.xlu0 %1916
    %v1919 = vmul.f32 %v1912, %v1917
    %1921 = vrot.lane.b32.xlu0 %v1919, 32
    %v1922 = vpop.permute.xlu0 %1921
    %v1924 = vadd.f32 %v1914, %v1922
    %v1925 = vtanh.pop %v1924
    %1927 = vrot.lane.b32.xlu0 %v1925, 64
    %v1928 = vpop.permute.xlu0 %1927
    %v1930 = vmul.f32 %v1912, %v1928
    %v1931 = vadd.f32 %v655, %v1753
    %v1932 = vsub.f32 0.0, %v1931
    %v1933 = vmul.f32 %v1932, 1.442695
    %v1934 = vpow.pop %v1933
    %v1935 = vadd.f32 %v1934, 1.0
    %v1936 = vrcp.pop %v1935
    %v1937 = vmul.f32 1.0, %v1936
    %v1938 = vtanh.pop %v1931
    %v1939 = vmul.f32 %v1937, %v1537
    %1941 = vrot.lane.b32.xlu0 %v1938, 64
    %v1942 = vpop.permute.xlu0 %1941
    %v1944 = vmul.f32 %v1937, %v1942
    %1946 = vrot.lane.b32.xlu0 %v1944, 32
    %v1947 = vpop.permute.xlu0 %1946
    %v1949 = vadd.f32 %v1939, %v1947
    %v1950 = vtanh.pop %v1949
    %1952 = vrot.lane.b32.xlu0 %v1950, 64
    %v1953 = vpop.permute.xlu0 %1952
    %v1955 = vmul.f32 %v1937, %v1953
    %v1956 = vadd.f32 %v884, %v1828
    %v1957 = vsub.f32 0.0, %v1956
    %v1958 = vmul.f32 %v1957, 1.442695
    %v1959 = vpow.pop %v1958
    %v1960 = vadd.f32 %v1959, 1.0
    %v1961 = vrcp.pop %v1960
    %v1962 = vmul.f32 1.0, %v1961
    %v1963 = vtanh.pop %v1956
    %v1964 = vmul.f32 %v1962, %v1562
    %1966 = vrot.lane.b32.xlu0 %v1963, 64
    %v1967 = vpop.permute.xlu0 %1966
    %v1969 = vmul.f32 %v1962, %v1967
    %1971 = vrot.lane.b32.xlu0 %v1969, 32
    %v1972 = vpop.permute.xlu0 %1971
    %v1974 = vadd.f32 %v1964, %v1972
    %v1975 = vtanh.pop %v1974
    %1977 = vrot.lane.b32.xlu0 %v1975, 64
    %v1978 = vpop.permute.xlu0 %1977
    %v1980 = vmul.f32 %v1962, %v1978
    %v1981 = vadd.f32 %v1271, %v1903
    %v1982 = vsub.f32 0.0, %v1981
    %v1983 = vmul.f32 %v1982, 1.442695
    %v1984 = vpow.pop %v1983
    %v1985 = vadd.f32 %v1984, 1.0
    %v1986 = vrcp.pop %v1985
    %v1987 = vmul.f32 1.0, %v1986
    %v1988 = vtanh.pop %v1981
    %v1989 = vmul.f32 %v1987, %v1587
    %1991 = vrot.lane.b32.xlu0 %v1988, 64
    %v1992 = vpop.permute.xlu0 %1991
    %v1994 = vmul.f32 %v1987, %v1992
    %1996 = vrot.lane.b32.xlu0 %v1994, 32
    %v1997 = vpop.permute.xlu0 %1996
    %v1999 = vadd.f32 %v1989, %v1997
    %v2000 = vtanh.pop %v1999
    %2002 = vrot.lane.b32.xlu0 %v2000, 64
    %v2003 = vpop.permute.xlu0 %2002
    %v2005 = vmul.f32 %v1987, %v2003
    %v2006 = vmul.f32 %v1930, %v1980
    %v2007 = vadd.f32 %v1595, %v2006
    %v2008 = vmul.f32 %v1955, %v2005
    %v2009 = vadd.f32 %v1597, %v2008
    %v2010 = vmul.f32 %v1930, %v1930
    %v2011 = vadd.f32 %v1599, %v2010
    %v2012 = vmul.f32 %v1955, %v1955
    %v2013 = vadd.f32 %v1601, %v2012
    %v2014 = vmul.f32 %v1980, %v1980
    %v2015 = vadd.f32 %v1603, %v2014
    %v2016 = vmul.f32 %v2005, %v2005
    %v2017 = vadd.f32 %v1605, %v2016
    %2019 = vrot.lane.b32.xlu0 %v1930, 32
    %v2020 = vpop.permute.xlu0 %2019
    %v2021 = vsel %vm1350, %v2020, 0
    %2023 = vmatprep.subr.mxu0 0.0
    %2024 = vmatpush1.msra.mxu0 %v106
    %2025 = vmatprep.subr.mxu0 0.0
    %2026 = vmatpush1.msra.mxu0 %v107
    %2027 = vmatprep.subr.mxu0 0.0
    %2028 = vmatpush1.msra.mxu0 %v108
    %2029 = vmatprep.subr.mxu0 0.0
    %2030 = vmatpush1.msra.mxu0 %v109
    %2031 = vmatprep.subr.mxu0 0.0
    %2032 = vmatpush1.msra.mxu0 0.0
    %2033 = vmatprep.subr.mxu0 0.0
    %2034 = vmatpush1.msra.mxu0 0.0
    %2035 = vmatprep.subr.mxu0 0.0
    %2036 = vmatpush1.msra.mxu0 0.0
    %2037 = vmatprep.subr.mxu0 0.0
    %2038 = vmatpush1.msra.mxu0 0.0
    %2039 = vmatprep.subr.mxu0 0.0
    %2040 = vmatpush1.msra.mxu0 0.0
    %2041 = vmatprep.subr.mxu0 0.0
    %2042 = vmatpush1.msra.mxu0 0.0
    %2043 = vmatprep.subr.mxu0 0.0
    %2044 = vmatpush1.msra.mxu0 0.0
    %2045 = vmatprep.subr.mxu0 0.0
    %2046 = vmatpush1.msra.mxu0 0.0
    %2047 = vmatprep.subr.mxu0 0.0
    %2048 = vmatpush1.msra.mxu0 0.0
    %2049 = vmatprep.subr.mxu0 0.0
    %2050 = vmatpush1.msra.mxu0 0.0
    %2051 = vmatprep.subr.mxu0 0.0
    %2052 = vmatpush1.msra.mxu0 0.0
    %2053 = vmatprep.subr.mxu0 0.0
    %2054 = vmatpush1.msra.mxu0 0.0
    %2055 = vmatprep.subr.mxu0 0.0
    %2056 = vmatpush1.msra.mxu0 0.0
    %2057 = vmatprep.subr.mxu0 0.0
    %2058 = vmatpush1.msra.mxu0 0.0
    %2059 = vmatprep.subr.mxu0 0.0
    %2060 = vmatpush1.msra.mxu0 0.0
    %2061 = vmatprep.subr.mxu0 0.0
    %2062 = vmatpush1.msra.mxu0 0.0
    %2063 = vmatprep.subr.mxu0 0.0
    %2064 = vmatpush1.msra.mxu0 0.0
    %2065 = vmatprep.subr.mxu0 0.0
    %2066 = vmatpush1.msra.mxu0 0.0
    %2067 = vmatprep.subr.mxu0 0.0
    %2068 = vmatpush1.msra.mxu0 0.0
    %2069 = vmatprep.subr.mxu0 0.0
    %2070 = vmatpush1.msra.mxu0 0.0
    %2071 = vmatprep.subr.mxu0 0.0
    %2072 = vmatpush1.msra.mxu0 0.0
    %2073 = vmatprep.subr.mxu0 0.0
    %2074 = vmatpush1.msra.mxu0 0.0
    %2075 = vmatprep.subr.mxu0 0.0
    %2076 = vmatpush1.msra.mxu0 0.0
    %2077 = vmatprep.subr.mxu0 0.0
    %2078 = vmatpush1.msra.mxu0 0.0
    %2079 = vmatprep.subr.mxu0 0.0
    %2080 = vmatpush1.msra.mxu0 0.0
    %2081 = vmatprep.subr.mxu0 0.0
    %2082 = vmatpush1.msra.mxu0 0.0
    %2083 = vmatprep.subr.mxu0 0.0
    %2084 = vmatpush1.msra.mxu0 0.0
    %2085 = vmatprep.subr.mxu0 0.0
    %2086 = vmatpush1.msra.mxu0 0.0
    %2087 = vmatprep.mubr.f32.mxu0 0.0
    %2088 = vmatmul.mubr.f32.gmra.mrb[0].mxu0 %v2021
    %v2089 = vpop.f32.mrb[0].mxu0
    %v2090 = vadd.f32 0.0, %v2089
    %v2091 = vpop.f32.mrb[0].mxu0
    %2092 = vdwg.mxu0
    %2094 = vrot.lane.b32.xlu0 %v1955, 32
    %v2095 = vpop.permute.xlu0 %2094
    %v2096 = vsel %vm1350, %v2095, 0
    %2098 = vmatprep.subr.mxu0 0.0
    %2099 = vmatpush1.msra.mxu0 %v110
    %2100 = vmatprep.subr.mxu0 0.0
    %2101 = vmatpush1.msra.mxu0 %v111
    %2102 = vmatprep.subr.mxu0 0.0
    %2103 = vmatpush1.msra.mxu0 %v112
    %2104 = vmatprep.subr.mxu0 0.0
    %2105 = vmatpush1.msra.mxu0 %v113
    %2106 = vmatprep.subr.mxu0 0.0
    %2107 = vmatpush1.msra.mxu0 0.0
    %2108 = vmatprep.subr.mxu0 0.0
    %2109 = vmatpush1.msra.mxu0 0.0
    %2110 = vmatprep.subr.mxu0 0.0
    %2111 = vmatpush1.msra.mxu0 0.0
    %2112 = vmatprep.subr.mxu0 0.0
    %2113 = vmatpush1.msra.mxu0 0.0
    %2114 = vmatprep.subr.mxu0 0.0
    %2115 = vmatpush1.msra.mxu0 0.0
    %2116 = vmatprep.subr.mxu0 0.0
    %2117 = vmatpush1.msra.mxu0 0.0
    %2118 = vmatprep.subr.mxu0 0.0
    %2119 = vmatpush1.msra.mxu0 0.0
    %2120 = vmatprep.subr.mxu0 0.0
    %2121 = vmatpush1.msra.mxu0 0.0
    %2122 = vmatprep.subr.mxu0 0.0
    %2123 = vmatpush1.msra.mxu0 0.0
    %2124 = vmatprep.subr.mxu0 0.0
    %2125 = vmatpush1.msra.mxu0 0.0
    %2126 = vmatprep.subr.mxu0 0.0
    %2127 = vmatpush1.msra.mxu0 0.0
    %2128 = vmatprep.subr.mxu0 0.0
    %2129 = vmatpush1.msra.mxu0 0.0
    %2130 = vmatprep.subr.mxu0 0.0
    %2131 = vmatpush1.msra.mxu0 0.0
    %2132 = vmatprep.subr.mxu0 0.0
    %2133 = vmatpush1.msra.mxu0 0.0
    %2134 = vmatprep.subr.mxu0 0.0
    %2135 = vmatpush1.msra.mxu0 0.0
    %2136 = vmatprep.subr.mxu0 0.0
    %2137 = vmatpush1.msra.mxu0 0.0
    %2138 = vmatprep.subr.mxu0 0.0
    %2139 = vmatpush1.msra.mxu0 0.0
    %2140 = vmatprep.subr.mxu0 0.0
    %2141 = vmatpush1.msra.mxu0 0.0
    %2142 = vmatprep.subr.mxu0 0.0
    %2143 = vmatpush1.msra.mxu0 0.0
    %2144 = vmatprep.subr.mxu0 0.0
    %2145 = vmatpush1.msra.mxu0 0.0
    %2146 = vmatprep.subr.mxu0 0.0
    %2147 = vmatpush1.msra.mxu0 0.0
    %2148 = vmatprep.subr.mxu0 0.0
    %2149 = vmatpush1.msra.mxu0 0.0
    %2150 = vmatprep.subr.mxu0 0.0
    %2151 = vmatpush1.msra.mxu0 0.0
    %2152 = vmatprep.subr.mxu0 0.0
    %2153 = vmatpush1.msra.mxu0 0.0
    %2154 = vmatprep.subr.mxu0 0.0
    %2155 = vmatpush1.msra.mxu0 0.0
    %2156 = vmatprep.subr.mxu0 0.0
    %2157 = vmatpush1.msra.mxu0 0.0
    %2158 = vmatprep.subr.mxu0 0.0
    %2159 = vmatpush1.msra.mxu0 0.0
    %2160 = vmatprep.subr.mxu0 0.0
    %2161 = vmatpush1.msra.mxu0 0.0
    %2162 = vmatprep.mubr.f32.mxu0 0.0
    %2163 = vmatmul.mubr.f32.gmra.mrb[0].mxu0 %v2096
    %v2164 = vpop.f32.mrb[0].mxu0
    %v2165 = vadd.f32 0.0, %v2164
    %v2166 = vpop.f32.mrb[0].mxu0
    %2167 = vdwg.mxu0
    %2169 = vrot.lane.b32.xlu0 %v1980, 32
    %v2170 = vpop.permute.xlu0 %2169
    %v2171 = vsel %vm1350, %v2170, 0
    %2173 = vmatprep.subr.mxu0 0.0
    %2174 = vmatpush1.msra.mxu0 %v106
    %2175 = vmatprep.subr.mxu0 0.0
    %2176 = vmatpush1.msra.mxu0 %v107
    %2177 = vmatprep.subr.mxu0 0.0
    %2178 = vmatpush1.msra.mxu0 %v108
    %2179 = vmatprep.subr.mxu0 0.0
    %2180 = vmatpush1.msra.mxu0 %v109
    %2181 = vmatprep.subr.mxu0 0.0
    %2182 = vmatpush1.msra.mxu0 0.0
    %2183 = vmatprep.subr.mxu0 0.0
    %2184 = vmatpush1.msra.mxu0 0.0
    %2185 = vmatprep.subr.mxu0 0.0
    %2186 = vmatpush1.msra.mxu0 0.0
    %2187 = vmatprep.subr.mxu0 0.0
    %2188 = vmatpush1.msra.mxu0 0.0
    %2189 = vmatprep.subr.mxu0 0.0
    %2190 = vmatpush1.msra.mxu0 0.0
    %2191 = vmatprep.subr.mxu0 0.0
    %2192 = vmatpush1.msra.mxu0 0.0
    %2193 = vmatprep.subr.mxu0 0.0
    %2194 = vmatpush1.msra.mxu0 0.0
    %2195 = vmatprep.subr.mxu0 0.0
    %2196 = vmatpush1.msra.mxu0 0.0
    %2197 = vmatprep.subr.mxu0 0.0
    %2198 = vmatpush1.msra.mxu0 0.0
    %2199 = vmatprep.subr.mxu0 0.0
    %2200 = vmatpush1.msra.mxu0 0.0
    %2201 = vmatprep.subr.mxu0 0.0
    %2202 = vmatpush1.msra.mxu0 0.0
    %2203 = vmatprep.subr.mxu0 0.0
    %2204 = vmatpush1.msra.mxu0 0.0
    %2205 = vmatprep.subr.mxu0 0.0
    %2206 = vmatpush1.msra.mxu0 0.0
    %2207 = vmatprep.subr.mxu0 0.0
    %2208 = vmatpush1.msra.mxu0 0.0
    %2209 = vmatprep.subr.mxu0 0.0
    %2210 = vmatpush1.msra.mxu0 0.0
    %2211 = vmatprep.subr.mxu0 0.0
    %2212 = vmatpush1.msra.mxu0 0.0
    %2213 = vmatprep.subr.mxu0 0.0
    %2214 = vmatpush1.msra.mxu0 0.0
    %2215 = vmatprep.subr.mxu0 0.0
    %2216 = vmatpush1.msra.mxu0 0.0
    %2217 = vmatprep.subr.mxu0 0.0
    %2218 = vmatpush1.msra.mxu0 0.0
    %2219 = vmatprep.subr.mxu0 0.0
    %2220 = vmatpush1.msra.mxu0 0.0
    %2221 = vmatprep.subr.mxu0 0.0
    %2222 = vmatpush1.msra.mxu0 0.0
    %2223 = vmatprep.subr.mxu0 0.0
    %2224 = vmatpush1.msra.mxu0 0.0
    %2225 = vmatprep.subr.mxu0 0.0
    %2226 = vmatpush1.msra.mxu0 0.0
    %2227 = vmatprep.subr.mxu0 0.0
    %2228 = vmatpush1.msra.mxu0 0.0
    %2229 = vmatprep.subr.mxu0 0.0
    %2230 = vmatpush1.msra.mxu0 0.0
    %2231 = vmatprep.subr.mxu0 0.0
    %2232 = vmatpush1.msra.mxu0 0.0
    %2233 = vmatprep.subr.mxu0 0.0
    %2234 = vmatpush1.msra.mxu0 0.0
    %2235 = vmatprep.subr.mxu0 0.0
    %2236 = vmatpush1.msra.mxu0 0.0
    %2237 = vmatprep.mubr.f32.mxu0 0.0
    %2238 = vmatmul.mubr.f32.gmra.mrb[0].mxu0 %v2171
    %v2239 = vpop.f32.mrb[0].mxu0
    %v2240 = vadd.f32 0.0, %v2239
    %v2241 = vpop.f32.mrb[0].mxu0
    %2242 = vdwg.mxu0
    %2244 = vrot.lane.b32.xlu0 %v2005, 32
    %v2245 = vpop.permute.xlu0 %2244
    %v2246 = vsel %vm1350, %v2245, 0
    %2248 = vmatprep.subr.mxu0 0.0
    %2249 = vmatpush1.msra.mxu0 %v110
    %2250 = vmatprep.subr.mxu0 0.0
    %2251 = vmatpush1.msra.mxu0 %v111
    %2252 = vmatprep.subr.mxu0 0.0
    %2253 = vmatpush1.msra.mxu0 %v112
    %2254 = vmatprep.subr.mxu0 0.0
    %2255 = vmatpush1.msra.mxu0 %v113
    %2256 = vmatprep.subr.mxu0 0.0
    %2257 = vmatpush1.msra.mxu0 0.0
    %2258 = vmatprep.subr.mxu0 0.0
    %2259 = vmatpush1.msra.mxu0 0.0
    %2260 = vmatprep.subr.mxu0 0.0
    %2261 = vmatpush1.msra.mxu0 0.0
    %2262 = vmatprep.subr.mxu0 0.0
    %2263 = vmatpush1.msra.mxu0 0.0
    %2264 = vmatprep.subr.mxu0 0.0
    %2265 = vmatpush1.msra.mxu0 0.0
    %2266 = vmatprep.subr.mxu0 0.0
    %2267 = vmatpush1.msra.mxu0 0.0
    %2268 = vmatprep.subr.mxu0 0.0
    %2269 = vmatpush1.msra.mxu0 0.0
    %2270 = vmatprep.subr.mxu0 0.0
    %2271 = vmatpush1.msra.mxu0 0.0
    %2272 = vmatprep.subr.mxu0 0.0
    %2273 = vmatpush1.msra.mxu0 0.0
    %2274 = vmatprep.subr.mxu0 0.0
    %2275 = vmatpush1.msra.mxu0 0.0
    %2276 = vmatprep.subr.mxu0 0.0
    %2277 = vmatpush1.msra.mxu0 0.0
    %2278 = vmatprep.subr.mxu0 0.0
    %2279 = vmatpush1.msra.mxu0 0.0
    %2280 = vmatprep.subr.mxu0 0.0
    %2281 = vmatpush1.msra.mxu0 0.0
    %2282 = vmatprep.subr.mxu0 0.0
    %2283 = vmatpush1.msra.mxu0 0.0
    %2284 = vmatprep.subr.mxu0 0.0
    %2285 = vmatpush1.msra.mxu0 0.0
    %2286 = vmatprep.subr.mxu0 0.0
    %2287 = vmatpush1.msra.mxu0 0.0
    %2288 = vmatprep.subr.mxu0 0.0
    %2289 = vmatpush1.msra.mxu0 0.0
    %2290 = vmatprep.subr.mxu0 0.0
    %2291 = vmatpush1.msra.mxu0 0.0
    %2292 = vmatprep.subr.mxu0 0.0
    %2293 = vmatpush1.msra.mxu0 0.0
    %2294 = vmatprep.subr.mxu0 0.0
    %2295 = vmatpush1.msra.mxu0 0.0
    %2296 = vmatprep.subr.mxu0 0.0
    %2297 = vmatpush1.msra.mxu0 0.0
    %2298 = vmatprep.subr.mxu0 0.0
    %2299 = vmatpush1.msra.mxu0 0.0
    %2300 = vmatprep.subr.mxu0 0.0
    %2301 = vmatpush1.msra.mxu0 0.0
    %2302 = vmatprep.subr.mxu0 0.0
    %2303 = vmatpush1.msra.mxu0 0.0
    %2304 = vmatprep.subr.mxu0 0.0
    %2305 = vmatpush1.msra.mxu0 0.0
    %2306 = vmatprep.subr.mxu0 0.0
    %2307 = vmatpush1.msra.mxu0 0.0
    %2308 = vmatprep.subr.mxu0 0.0
    %2309 = vmatpush1.msra.mxu0 0.0
    %2310 = vmatprep.subr.mxu0 0.0
    %2311 = vmatpush1.msra.mxu0 0.0
    %2312 = vmatprep.mubr.f32.mxu0 0.0
    %2313 = vmatmul.mubr.f32.gmra.mrb[0].mxu0 %v2246
    %v2314 = vpop.f32.mrb[0].mxu0
    %v2315 = vadd.f32 0.0, %v2314
    %v2316 = vpop.f32.mrb[0].mxu0
    %2317 = vdwg.mxu0
    %v2318 = vadd.f32 %v345, %v2090
    %v2319 = vsub.f32 0.0, %v2318
    %v2320 = vmul.f32 %v2319, 1.442695
    %v2321 = vpow.pop %v2320
    %v2322 = vadd.f32 %v2321, 1.0
    %v2323 = vrcp.pop %v2322
    %v2324 = vmul.f32 1.0, %v2323
    %v2325 = vtanh.pop %v2318
    %v2326 = vmul.f32 %v2324, %v1924
    %2328 = vrot.lane.b32.xlu0 %v2325, 64
    %v2329 = vpop.permute.xlu0 %2328
    %v2331 = vmul.f32 %v2324, %v2329
    %2333 = vrot.lane.b32.xlu0 %v2331, 32
    %v2334 = vpop.permute.xlu0 %2333
    %v2336 = vadd.f32 %v2326, %v2334
    %v2337 = vtanh.pop %v2336
    %2339 = vrot.lane.b32.xlu0 %v2337, 64
    %v2340 = vpop.permute.xlu0 %2339
    %v2342 = vmul.f32 %v2324, %v2340
    %v2343 = vadd.f32 %v578, %v2165
    %v2344 = vsub.f32 0.0, %v2343
    %v2345 = vmul.f32 %v2344, 1.442695
    %v2346 = vpow.pop %v2345
    %v2347 = vadd.f32 %v2346, 1.0
    %v2348 = vrcp.pop %v2347
    %v2349 = vmul.f32 1.0, %v2348
    %v2350 = vtanh.pop %v2343
    %v2351 = vmul.f32 %v2349, %v1949
    %2353 = vrot.lane.b32.xlu0 %v2350, 64
    %v2354 = vpop.permute.xlu0 %2353
    %v2356 = vmul.f32 %v2349, %v2354
    %2358 = vrot.lane.b32.xlu0 %v2356, 32
    %v2359 = vpop.permute.xlu0 %2358
    %v2361 = vadd.f32 %v2351, %v2359
    %v2362 = vtanh.pop %v2361
    %2364 = vrot.lane.b32.xlu0 %v2362, 64
    %v2365 = vpop.permute.xlu0 %2364
    %v2367 = vmul.f32 %v2349, %v2365
    %v2368 = vadd.f32 %v961, %v2240
    %v2369 = vsub.f32 0.0, %v2368
    %v2370 = vmul.f32 %v2369, 1.442695
    %v2371 = vpow.pop %v2370
    %v2372 = vadd.f32 %v2371, 1.0
    %v2373 = vrcp.pop %v2372
    %v2374 = vmul.f32 1.0, %v2373
    %v2375 = vtanh.pop %v2368
    %v2376 = vmul.f32 %v2374, %v1974
    %2378 = vrot.lane.b32.xlu0 %v2375, 64
    %v2379 = vpop.permute.xlu0 %2378
    %v2381 = vmul.f32 %v2374, %v2379
    %2383 = vrot.lane.b32.xlu0 %v2381, 32
    %v2384 = vpop.permute.xlu0 %2383
    %v2386 = vadd.f32 %v2376, %v2384
    %v2387 = vtanh.pop %v2386
    %2389 = vrot.lane.b32.xlu0 %v2387, 64
    %v2390 = vpop.permute.xlu0 %2389
    %v2392 = vmul.f32 %v2374, %v2390
    %v2393 = vadd.f32 %v1194, %v2315
    %v2394 = vsub.f32 0.0, %v2393
    %v2395 = vmul.f32 %v2394, 1.442695
    %v2396 = vpow.pop %v2395
    %v2397 = vadd.f32 %v2396, 1.0
    %v2398 = vrcp.pop %v2397
    %v2399 = vmul.f32 1.0, %v2398
    %v2400 = vtanh.pop %v2393
    %v2401 = vmul.f32 %v2399, %v1999
    %2403 = vrot.lane.b32.xlu0 %v2400, 64
    %v2404 = vpop.permute.xlu0 %2403
    %v2406 = vmul.f32 %v2399, %v2404
    %2408 = vrot.lane.b32.xlu0 %v2406, 32
    %v2409 = vpop.permute.xlu0 %2408
    %v2411 = vadd.f32 %v2401, %v2409
    %v2412 = vtanh.pop %v2411
    %2414 = vrot.lane.b32.xlu0 %v2412, 64
    %v2415 = vpop.permute.xlu0 %2414
    %v2417 = vmul.f32 %v2399, %v2415
    %v2418 = vmul.f32 %v2342, %v2392
    %v2419 = vadd.f32 %v2007, %v2418
    %v2420 = vmul.f32 %v2367, %v2417
    %v2421 = vadd.f32 %v2009, %v2420
    %v2422 = vmul.f32 %v2342, %v2342
    %v2423 = vadd.f32 %v2011, %v2422
    %v2424 = vmul.f32 %v2367, %v2367
    %v2425 = vadd.f32 %v2013, %v2424
    %v2426 = vmul.f32 %v2392, %v2392
    %v2427 = vadd.f32 %v2015, %v2426
    %v2428 = vmul.f32 %v2417, %v2417
    %v2429 = vadd.f32 %v2017, %v2428
    %2431 = vrot.lane.b32.xlu0 %v2342, 32
    %v2432 = vpop.permute.xlu0 %2431
    %v2433 = vsel %vm1350, %v2432, 0
    %2435 = vmatprep.subr.mxu0 0.0
    %2436 = vmatpush1.msra.mxu0 %v106
    %2437 = vmatprep.subr.mxu0 0.0
    %2438 = vmatpush1.msra.mxu0 %v107
    %2439 = vmatprep.subr.mxu0 0.0
    %2440 = vmatpush1.msra.mxu0 %v108
    %2441 = vmatprep.subr.mxu0 0.0
    %2442 = vmatpush1.msra.mxu0 %v109
    %2443 = vmatprep.subr.mxu0 0.0
    %2444 = vmatpush1.msra.mxu0 0.0
    %2445 = vmatprep.subr.mxu0 0.0
    %2446 = vmatpush1.msra.mxu0 0.0
    %2447 = vmatprep.subr.mxu0 0.0
    %2448 = vmatpush1.msra.mxu0 0.0
    %2449 = vmatprep.subr.mxu0 0.0
    %2450 = vmatpush1.msra.mxu0 0.0
    %2451 = vmatprep.subr.mxu0 0.0
    %2452 = vmatpush1.msra.mxu0 0.0
    %2453 = vmatprep.subr.mxu0 0.0
    %2454 = vmatpush1.msra.mxu0 0.0
    %2455 = vmatprep.subr.mxu0 0.0
    %2456 = vmatpush1.msra.mxu0 0.0
    %2457 = vmatprep.subr.mxu0 0.0
    %2458 = vmatpush1.msra.mxu0 0.0
    %2459 = vmatprep.subr.mxu0 0.0
    %2460 = vmatpush1.msra.mxu0 0.0
    %2461 = vmatprep.subr.mxu0 0.0
    %2462 = vmatpush1.msra.mxu0 0.0
    %2463 = vmatprep.subr.mxu0 0.0
    %2464 = vmatpush1.msra.mxu0 0.0
    %2465 = vmatprep.subr.mxu0 0.0
    %2466 = vmatpush1.msra.mxu0 0.0
    %2467 = vmatprep.subr.mxu0 0.0
    %2468 = vmatpush1.msra.mxu0 0.0
    %2469 = vmatprep.subr.mxu0 0.0
    %2470 = vmatpush1.msra.mxu0 0.0
    %2471 = vmatprep.subr.mxu0 0.0
    %2472 = vmatpush1.msra.mxu0 0.0
    %2473 = vmatprep.subr.mxu0 0.0
    %2474 = vmatpush1.msra.mxu0 0.0
    %2475 = vmatprep.subr.mxu0 0.0
    %2476 = vmatpush1.msra.mxu0 0.0
    %2477 = vmatprep.subr.mxu0 0.0
    %2478 = vmatpush1.msra.mxu0 0.0
    %2479 = vmatprep.subr.mxu0 0.0
    %2480 = vmatpush1.msra.mxu0 0.0
    %2481 = vmatprep.subr.mxu0 0.0
    %2482 = vmatpush1.msra.mxu0 0.0
    %2483 = vmatprep.subr.mxu0 0.0
    %2484 = vmatpush1.msra.mxu0 0.0
    %2485 = vmatprep.subr.mxu0 0.0
    %2486 = vmatpush1.msra.mxu0 0.0
    %2487 = vmatprep.subr.mxu0 0.0
    %2488 = vmatpush1.msra.mxu0 0.0
    %2489 = vmatprep.subr.mxu0 0.0
    %2490 = vmatpush1.msra.mxu0 0.0
    %2491 = vmatprep.subr.mxu0 0.0
    %2492 = vmatpush1.msra.mxu0 0.0
    %2493 = vmatprep.subr.mxu0 0.0
    %2494 = vmatpush1.msra.mxu0 0.0
    %2495 = vmatprep.subr.mxu0 0.0
    %2496 = vmatpush1.msra.mxu0 0.0
    %2497 = vmatprep.subr.mxu0 0.0
    %2498 = vmatpush1.msra.mxu0 0.0
    %2499 = vmatprep.mubr.f32.mxu0 0.0
    %2500 = vmatmul.mubr.f32.gmra.mrb[0].mxu0 %v2433
    %v2501 = vpop.f32.mrb[0].mxu0
    %v2502 = vadd.f32 0.0, %v2501
    %v2503 = vpop.f32.mrb[0].mxu0
    %2504 = vdwg.mxu0
    %2506 = vrot.lane.b32.xlu0 %v2367, 32
    %v2507 = vpop.permute.xlu0 %2506
    %v2508 = vsel %vm1350, %v2507, 0
    %2510 = vmatprep.subr.mxu0 0.0
    %2511 = vmatpush1.msra.mxu0 %v110
    %2512 = vmatprep.subr.mxu0 0.0
    %2513 = vmatpush1.msra.mxu0 %v111
    %2514 = vmatprep.subr.mxu0 0.0
    %2515 = vmatpush1.msra.mxu0 %v112
    %2516 = vmatprep.subr.mxu0 0.0
    %2517 = vmatpush1.msra.mxu0 %v113
    %2518 = vmatprep.subr.mxu0 0.0
    %2519 = vmatpush1.msra.mxu0 0.0
    %2520 = vmatprep.subr.mxu0 0.0
    %2521 = vmatpush1.msra.mxu0 0.0
    %2522 = vmatprep.subr.mxu0 0.0
    %2523 = vmatpush1.msra.mxu0 0.0
    %2524 = vmatprep.subr.mxu0 0.0
    %2525 = vmatpush1.msra.mxu0 0.0
    %2526 = vmatprep.subr.mxu0 0.0
    %2527 = vmatpush1.msra.mxu0 0.0
    %2528 = vmatprep.subr.mxu0 0.0
    %2529 = vmatpush1.msra.mxu0 0.0
    %2530 = vmatprep.subr.mxu0 0.0
    %2531 = vmatpush1.msra.mxu0 0.0
    %2532 = vmatprep.subr.mxu0 0.0
    %2533 = vmatpush1.msra.mxu0 0.0
    %2534 = vmatprep.subr.mxu0 0.0
    %2535 = vmatpush1.msra.mxu0 0.0
    %2536 = vmatprep.subr.mxu0 0.0
    %2537 = vmatpush1.msra.mxu0 0.0
    %2538 = vmatprep.subr.mxu0 0.0
    %2539 = vmatpush1.msra.mxu0 0.0
    %2540 = vmatprep.subr.mxu0 0.0
    %2541 = vmatpush1.msra.mxu0 0.0
    %2542 = vmatprep.subr.mxu0 0.0
    %2543 = vmatpush1.msra.mxu0 0.0
    %2544 = vmatprep.subr.mxu0 0.0
    %2545 = vmatpush1.msra.mxu0 0.0
    %2546 = vmatprep.subr.mxu0 0.0
    %2547 = vmatpush1.msra.mxu0 0.0
    %2548 = vmatprep.subr.mxu0 0.0
    %2549 = vmatpush1.msra.mxu0 0.0
    %2550 = vmatprep.subr.mxu0 0.0
    %2551 = vmatpush1.msra.mxu0 0.0
    %2552 = vmatprep.subr.mxu0 0.0
    %2553 = vmatpush1.msra.mxu0 0.0
    %2554 = vmatprep.subr.mxu0 0.0
    %2555 = vmatpush1.msra.mxu0 0.0
    %2556 = vmatprep.subr.mxu0 0.0
    %2557 = vmatpush1.msra.mxu0 0.0
    %2558 = vmatprep.subr.mxu0 0.0
    %2559 = vmatpush1.msra.mxu0 0.0
    %2560 = vmatprep.subr.mxu0 0.0
    %2561 = vmatpush1.msra.mxu0 0.0
    %2562 = vmatprep.subr.mxu0 0.0
    %2563 = vmatpush1.msra.mxu0 0.0
    %2564 = vmatprep.subr.mxu0 0.0
    %2565 = vmatpush1.msra.mxu0 0.0
    %2566 = vmatprep.subr.mxu0 0.0
    %2567 = vmatpush1.msra.mxu0 0.0
    %2568 = vmatprep.subr.mxu0 0.0
    %2569 = vmatpush1.msra.mxu0 0.0
    %2570 = vmatprep.subr.mxu0 0.0
    %2571 = vmatpush1.msra.mxu0 0.0
    %2572 = vmatprep.subr.mxu0 0.0
    %2573 = vmatpush1.msra.mxu0 0.0
    %2574 = vmatprep.mubr.f32.mxu0 0.0
    %2575 = vmatmul.mubr.f32.gmra.mrb[0].mxu0 %v2508
    %v2576 = vpop.f32.mrb[0].mxu0
    %v2577 = vadd.f32 0.0, %v2576
    %v2578 = vpop.f32.mrb[0].mxu0
    %2579 = vdwg.mxu0
    %2581 = vrot.lane.b32.xlu0 %v2392, 32
    %v2582 = vpop.permute.xlu0 %2581
    %v2583 = vsel %vm1350, %v2582, 0
    %2585 = vmatprep.subr.mxu0 0.0
    %2586 = vmatpush1.msra.mxu0 %v106
    %2587 = vmatprep.subr.mxu0 0.0
    %2588 = vmatpush1.msra.mxu0 %v107
    %2589 = vmatprep.subr.mxu0 0.0
    %2590 = vmatpush1.msra.mxu0 %v108
    %2591 = vmatprep.subr.mxu0 0.0
    %2592 = vmatpush1.msra.mxu0 %v109
    %2593 = vmatprep.subr.mxu0 0.0
    %2594 = vmatpush1.msra.mxu0 0.0
    %2595 = vmatprep.subr.mxu0 0.0
    %2596 = vmatpush1.msra.mxu0 0.0
    %2597 = vmatprep.subr.mxu0 0.0
    %2598 = vmatpush1.msra.mxu0 0.0
    %2599 = vmatprep.subr.mxu0 0.0
    %2600 = vmatpush1.msra.mxu0 0.0
    %2601 = vmatprep.subr.mxu0 0.0
    %2602 = vmatpush1.msra.mxu0 0.0
    %2603 = vmatprep.subr.mxu0 0.0
    %2604 = vmatpush1.msra.mxu0 0.0
    %2605 = vmatprep.subr.mxu0 0.0
    %2606 = vmatpush1.msra.mxu0 0.0
    %2607 = vmatprep.subr.mxu0 0.0
    %2608 = vmatpush1.msra.mxu0 0.0
    %2609 = vmatprep.subr.mxu0 0.0
    %2610 = vmatpush1.msra.mxu0 0.0
    %2611 = vmatprep.subr.mxu0 0.0
    %2612 = vmatpush1.msra.mxu0 0.0
    %2613 = vmatprep.subr.mxu0 0.0
    %2614 = vmatpush1.msra.mxu0 0.0
    %2615 = vmatprep.subr.mxu0 0.0
    %2616 = vmatpush1.msra.mxu0 0.0
    %2617 = vmatprep.subr.mxu0 0.0
    %2618 = vmatpush1.msra.mxu0 0.0
    %2619 = vmatprep.subr.mxu0 0.0
    %2620 = vmatpush1.msra.mxu0 0.0
    %2621 = vmatprep.subr.mxu0 0.0
    %2622 = vmatpush1.msra.mxu0 0.0
    %2623 = vmatprep.subr.mxu0 0.0
    %2624 = vmatpush1.msra.mxu0 0.0
    %2625 = vmatprep.subr.mxu0 0.0
    %2626 = vmatpush1.msra.mxu0 0.0
    %2627 = vmatprep.subr.mxu0 0.0
    %2628 = vmatpush1.msra.mxu0 0.0
    %2629 = vmatprep.subr.mxu0 0.0
    %2630 = vmatpush1.msra.mxu0 0.0
    %2631 = vmatprep.subr.mxu0 0.0
    %2632 = vmatpush1.msra.mxu0 0.0
    %2633 = vmatprep.subr.mxu0 0.0
    %2634 = vmatpush1.msra.mxu0 0.0
    %2635 = vmatprep.subr.mxu0 0.0
    %2636 = vmatpush1.msra.mxu0 0.0
    %2637 = vmatprep.subr.mxu0 0.0
    %2638 = vmatpush1.msra.mxu0 0.0
    %2639 = vmatprep.subr.mxu0 0.0
    %2640 = vmatpush1.msra.mxu0 0.0
    %2641 = vmatprep.subr.mxu0 0.0
    %2642 = vmatpush1.msra.mxu0 0.0
    %2643 = vmatprep.subr.mxu0 0.0
    %2644 = vmatpush1.msra.mxu0 0.0
    %2645 = vmatprep.subr.mxu0 0.0
    %2646 = vmatpush1.msra.mxu0 0.0
    %2647 = vmatprep.subr.mxu0 0.0
    %2648 = vmatpush1.msra.mxu0 0.0
    %2649 = vmatprep.mubr.f32.mxu0 0.0
    %2650 = vmatmul.mubr.f32.gmra.mrb[0].mxu0 %v2583
    %v2651 = vpop.f32.mrb[0].mxu0
    %v2652 = vadd.f32 0.0, %v2651
    %v2653 = vpop.f32.mrb[0].mxu0
    %2654 = vdwg.mxu0
    %2656 = vrot.lane.b32.xlu0 %v2417, 32
    %v2657 = vpop.permute.xlu0 %2656
    %v2658 = vsel %vm1350, %v2657, 0
    %2660 = vmatprep.subr.mxu0 0.0
    %2661 = vmatpush1.msra.mxu0 %v110
    %2662 = vmatprep.subr.mxu0 0.0
    %2663 = vmatpush1.msra.mxu0 %v111
    %2664 = vmatprep.subr.mxu0 0.0
    %2665 = vmatpush1.msra.mxu0 %v112
    %2666 = vmatprep.subr.mxu0 0.0
    %2667 = vmatpush1.msra.mxu0 %v113
    %2668 = vmatprep.subr.mxu0 0.0
    %2669 = vmatpush1.msra.mxu0 0.0
    %2670 = vmatprep.subr.mxu0 0.0
    %2671 = vmatpush1.msra.mxu0 0.0
    %2672 = vmatprep.subr.mxu0 0.0
    %2673 = vmatpush1.msra.mxu0 0.0
    %2674 = vmatprep.subr.mxu0 0.0
    %2675 = vmatpush1.msra.mxu0 0.0
    %2676 = vmatprep.subr.mxu0 0.0
    %2677 = vmatpush1.msra.mxu0 0.0
    %2678 = vmatprep.subr.mxu0 0.0
    %2679 = vmatpush1.msra.mxu0 0.0
    %2680 = vmatprep.subr.mxu0 0.0
    %2681 = vmatpush1.msra.mxu0 0.0
    %2682 = vmatprep.subr.mxu0 0.0
    %2683 = vmatpush1.msra.mxu0 0.0
    %2684 = vmatprep.subr.mxu0 0.0
    %2685 = vmatpush1.msra.mxu0 0.0
    %2686 = vmatprep.subr.mxu0 0.0
    %2687 = vmatpush1.msra.mxu0 0.0
    %2688 = vmatprep.subr.mxu0 0.0
    %2689 = vmatpush1.msra.mxu0 0.0
    %2690 = vmatprep.subr.mxu0 0.0
    %2691 = vmatpush1.msra.mxu0 0.0
    %2692 = vmatprep.subr.mxu0 0.0
    %2693 = vmatpush1.msra.mxu0 0.0
    %2694 = vmatprep.subr.mxu0 0.0
    %2695 = vmatpush1.msra.mxu0 0.0
    %2696 = vmatprep.subr.mxu0 0.0
    %2697 = vmatpush1.msra.mxu0 0.0
    %2698 = vmatprep.subr.mxu0 0.0
    %2699 = vmatpush1.msra.mxu0 0.0
    %2700 = vmatprep.subr.mxu0 0.0
    %2701 = vmatpush1.msra.mxu0 0.0
    %2702 = vmatprep.subr.mxu0 0.0
    %2703 = vmatpush1.msra.mxu0 0.0
    %2704 = vmatprep.subr.mxu0 0.0
    %2705 = vmatpush1.msra.mxu0 0.0
    %2706 = vmatprep.subr.mxu0 0.0
    %2707 = vmatpush1.msra.mxu0 0.0
    %2708 = vmatprep.subr.mxu0 0.0
    %2709 = vmatpush1.msra.mxu0 0.0
    %2710 = vmatprep.subr.mxu0 0.0
    %2711 = vmatpush1.msra.mxu0 0.0
    %2712 = vmatprep.subr.mxu0 0.0
    %2713 = vmatpush1.msra.mxu0 0.0
    %2714 = vmatprep.subr.mxu0 0.0
    %2715 = vmatpush1.msra.mxu0 0.0
    %2716 = vmatprep.subr.mxu0 0.0
    %2717 = vmatpush1.msra.mxu0 0.0
    %2718 = vmatprep.subr.mxu0 0.0
    %2719 = vmatpush1.msra.mxu0 0.0
    %2720 = vmatprep.subr.mxu0 0.0
    %2721 = vmatpush1.msra.mxu0 0.0
    %2722 = vmatprep.subr.mxu0 0.0
    %2723 = vmatpush1.msra.mxu0 0.0
    %2724 = vmatprep.mubr.f32.mxu0 0.0
    %2725 = vmatmul.mubr.f32.gmra.mrb[0].mxu0 %v2658
    %v2726 = vpop.f32.mrb[0].mxu0
    %v2727 = vadd.f32 0.0, %v2726
    %v2728 = vpop.f32.mrb[0].mxu0
    %2729 = vdwg.mxu0
    %v2730 = vadd.f32 %v422, %v2502
    %v2731 = vsub.f32 0.0, %v2730
    %v2732 = vmul.f32 %v2731, 1.442695
    %v2733 = vpow.pop %v2732
    %v2734 = vadd.f32 %v2733, 1.0
    %v2735 = vrcp.pop %v2734
    %v2736 = vmul.f32 1.0, %v2735
    %v2737 = vtanh.pop %v2730
    %v2738 = vmul.f32 %v2736, %v2336
    %2740 = vrot.lane.b32.xlu0 %v2737, 64
    %v2741 = vpop.permute.xlu0 %2740
    %v2743 = vmul.f32 %v2736, %v2741
    %2745 = vrot.lane.b32.xlu0 %v2743, 32
    %v2746 = vpop.permute.xlu0 %2745
    %v2748 = vadd.f32 %v2738, %v2746
    %v2749 = vtanh.pop %v2748
    %2751 = vrot.lane.b32.xlu0 %v2749, 64
    %v2752 = vpop.permute.xlu0 %2751
    %v2754 = vmul.f32 %v2736, %v2752
    %v2755 = vadd.f32 %v501, %v2577
    %v2756 = vsub.f32 0.0, %v2755
    %v2757 = vmul.f32 %v2756, 1.442695
    %v2758 = vpow.pop %v2757
    %v2759 = vadd.f32 %v2758, 1.0
    %v2760 = vrcp.pop %v2759
    %v2761 = vmul.f32 1.0, %v2760
    %v2762 = vtanh.pop %v2755
    %v2763 = vmul.f32 %v2761, %v2361
    %2765 = vrot.lane.b32.xlu0 %v2762, 64
    %v2766 = vpop.permute.xlu0 %2765
    %v2768 = vmul.f32 %v2761, %v2766
    %2770 = vrot.lane.b32.xlu0 %v2768, 32
    %v2771 = vpop.permute.xlu0 %2770
    %v2773 = vadd.f32 %v2763, %v2771
    %v2774 = vtanh.pop %v2773
    %2776 = vrot.lane.b32.xlu0 %v2774, 64
    %v2777 = vpop.permute.xlu0 %2776
    %v2779 = vmul.f32 %v2761, %v2777
    %v2780 = vadd.f32 %v1038, %v2652
    %v2781 = vsub.f32 0.0, %v2780
    %v2782 = vmul.f32 %v2781, 1.442695
    %v2783 = vpow.pop %v2782
    %v2784 = vadd.f32 %v2783, 1.0
    %v2785 = vrcp.pop %v2784
    %v2786 = vmul.f32 1.0, %v2785
    %v2787 = vtanh.pop %v2780
    %v2788 = vmul.f32 %v2786, %v2386
    %2790 = vrot.lane.b32.xlu0 %v2787, 64
    %v2791 = vpop.permute.xlu0 %2790
    %v2793 = vmul.f32 %v2786, %v2791
    %2795 = vrot.lane.b32.xlu0 %v2793, 32
    %v2796 = vpop.permute.xlu0 %2795
    %v2798 = vadd.f32 %v2788, %v2796
    %v2799 = vtanh.pop %v2798
    %2801 = vrot.lane.b32.xlu0 %v2799, 64
    %v2802 = vpop.permute.xlu0 %2801
    %v2804 = vmul.f32 %v2786, %v2802
    %v2805 = vadd.f32 %v1117, %v2727
    %v2806 = vsub.f32 0.0, %v2805
    %v2807 = vmul.f32 %v2806, 1.442695
    %v2808 = vpow.pop %v2807
    %v2809 = vadd.f32 %v2808, 1.0
    %v2810 = vrcp.pop %v2809
    %v2811 = vmul.f32 1.0, %v2810
    %v2812 = vtanh.pop %v2805
    %v2813 = vmul.f32 %v2811, %v2411
    %2815 = vrot.lane.b32.xlu0 %v2812, 64
    %v2816 = vpop.permute.xlu0 %2815
    %v2818 = vmul.f32 %v2811, %v2816
    %2820 = vrot.lane.b32.xlu0 %v2818, 32
    %v2821 = vpop.permute.xlu0 %2820
    %v2823 = vadd.f32 %v2813, %v2821
    %v2824 = vtanh.pop %v2823
    %2826 = vrot.lane.b32.xlu0 %v2824, 64
    %v2827 = vpop.permute.xlu0 %2826
    %v2829 = vmul.f32 %v2811, %v2827
    %v2830 = vmul.f32 %v2754, %v2804
    %v2831 = vadd.f32 %v2419, %v2830
    %v2832 = vmul.f32 %v2779, %v2829
    %v2833 = vadd.f32 %v2421, %v2832
    %v2834 = vmul.f32 %v2754, %v2754
    %v2835 = vadd.f32 %v2423, %v2834
    %v2836 = vmul.f32 %v2779, %v2779
    %v2837 = vadd.f32 %v2425, %v2836
    %v2838 = vmul.f32 %v2804, %v2804
    %v2839 = vadd.f32 %v2427, %v2838
    %v2840 = vmul.f32 %v2829, %v2829
    %v2841 = vadd.f32 %v2429, %v2840
    %2843 = vrot.lane.b32.xlu0 %v2754, 32
    %v2844 = vpop.permute.xlu0 %2843
    %v2845 = vsel %vm1350, %v2844, 0
    %2847 = vmatprep.subr.mxu0 0.0
    %2848 = vmatpush1.msra.mxu0 %v106
    %2849 = vmatprep.subr.mxu0 0.0
    %2850 = vmatpush1.msra.mxu0 %v107
    %2851 = vmatprep.subr.mxu0 0.0
    %2852 = vmatpush1.msra.mxu0 %v108
    %2853 = vmatprep.subr.mxu0 0.0
    %2854 = vmatpush1.msra.mxu0 %v109
    %2855 = vmatprep.subr.mxu0 0.0
    %2856 = vmatpush1.msra.mxu0 0.0
    %2857 = vmatprep.subr.mxu0 0.0
    %2858 = vmatpush1.msra.mxu0 0.0
    %2859 = vmatprep.subr.mxu0 0.0
    %2860 = vmatpush1.msra.mxu0 0.0
    %2861 = vmatprep.subr.mxu0 0.0
    %2862 = vmatpush1.msra.mxu0 0.0
    %2863 = vmatprep.subr.mxu0 0.0
    %2864 = vmatpush1.msra.mxu0 0.0
    %2865 = vmatprep.subr.mxu0 0.0
    %2866 = vmatpush1.msra.mxu0 0.0
    %2867 = vmatprep.subr.mxu0 0.0
    %2868 = vmatpush1.msra.mxu0 0.0
    %2869 = vmatprep.subr.mxu0 0.0
    %2870 = vmatpush1.msra.mxu0 0.0
    %2871 = vmatprep.subr.mxu0 0.0
    %2872 = vmatpush1.msra.mxu0 0.0
    %2873 = vmatprep.subr.mxu0 0.0
    %2874 = vmatpush1.msra.mxu0 0.0
    %2875 = vmatprep.subr.mxu0 0.0
    %2876 = vmatpush1.msra.mxu0 0.0
    %2877 = vmatprep.subr.mxu0 0.0
    %2878 = vmatpush1.msra.mxu0 0.0
    %2879 = vmatprep.subr.mxu0 0.0
    %2880 = vmatpush1.msra.mxu0 0.0
    %2881 = vmatprep.subr.mxu0 0.0
    %2882 = vmatpush1.msra.mxu0 0.0
    %2883 = vmatprep.subr.mxu0 0.0
    %2884 = vmatpush1.msra.mxu0 0.0
    %2885 = vmatprep.subr.mxu0 0.0
    %2886 = vmatpush1.msra.mxu0 0.0
    %2887 = vmatprep.subr.mxu0 0.0
    %2888 = vmatpush1.msra.mxu0 0.0
    %2889 = vmatprep.subr.mxu0 0.0
    %2890 = vmatpush1.msra.mxu0 0.0
    %2891 = vmatprep.subr.mxu0 0.0
    %2892 = vmatpush1.msra.mxu0 0.0
    %2893 = vmatprep.subr.mxu0 0.0
    %2894 = vmatpush1.msra.mxu0 0.0
    %2895 = vmatprep.subr.mxu0 0.0
    %2896 = vmatpush1.msra.mxu0 0.0
    %2897 = vmatprep.subr.mxu0 0.0
    %2898 = vmatpush1.msra.mxu0 0.0
    %2899 = vmatprep.subr.mxu0 0.0
    %2900 = vmatpush1.msra.mxu0 0.0
    %2901 = vmatprep.subr.mxu0 0.0
    %2902 = vmatpush1.msra.mxu0 0.0
    %2903 = vmatprep.subr.mxu0 0.0
    %2904 = vmatpush1.msra.mxu0 0.0
    %2905 = vmatprep.subr.mxu0 0.0
    %2906 = vmatpush1.msra.mxu0 0.0
    %2907 = vmatprep.subr.mxu0 0.0
    %2908 = vmatpush1.msra.mxu0 0.0
    %2909 = vmatprep.subr.mxu0 0.0
    %2910 = vmatpush1.msra.mxu0 0.0
    %2911 = vmatprep.mubr.f32.mxu0 0.0
    %2912 = vmatmul.mubr.f32.gmra.mrb[0].mxu0 %v2845
    %v2913 = vpop.f32.mrb[0].mxu0
    %v2914 = vadd.f32 0.0, %v2913
    %v2915 = vpop.f32.mrb[0].mxu0
    %2916 = vdwg.mxu0
    %2918 = vrot.lane.b32.xlu0 %v2779, 32
    %v2919 = vpop.permute.xlu0 %2918
    %v2920 = vsel %vm1350, %v2919, 0
    %2922 = vmatprep.subr.mxu0 0.0
    %2923 = vmatpush1.msra.mxu0 %v110
    %2924 = vmatprep.subr.mxu0 0.0
    %2925 = vmatpush1.msra.mxu0 %v111
    %2926 = vmatprep.subr.mxu0 0.0
    %2927 = vmatpush1.msra.mxu0 %v112
    %2928 = vmatprep.subr.mxu0 0.0
    %2929 = vmatpush1.msra.mxu0 %v113
    %2930 = vmatprep.subr.mxu0 0.0
    %2931 = vmatpush1.msra.mxu0 0.0
    %2932 = vmatprep.subr.mxu0 0.0
    %2933 = vmatpush1.msra.mxu0 0.0
    %2934 = vmatprep.subr.mxu0 0.0
    %2935 = vmatpush1.msra.mxu0 0.0
    %2936 = vmatprep.subr.mxu0 0.0
    %2937 = vmatpush1.msra.mxu0 0.0
    %2938 = vmatprep.subr.mxu0 0.0
    %2939 = vmatpush1.msra.mxu0 0.0
    %2940 = vmatprep.subr.mxu0 0.0
    %2941 = vmatpush1.msra.mxu0 0.0
    %2942 = vmatprep.subr.mxu0 0.0
    %2943 = vmatpush1.msra.mxu0 0.0
    %2944 = vmatprep.subr.mxu0 0.0
    %2945 = vmatpush1.msra.mxu0 0.0
    %2946 = vmatprep.subr.mxu0 0.0
    %2947 = vmatpush1.msra.mxu0 0.0
    %2948 = vmatprep.subr.mxu0 0.0
    %2949 = vmatpush1.msra.mxu0 0.0
    %2950 = vmatprep.subr.mxu0 0.0
    %2951 = vmatpush1.msra.mxu0 0.0
    %2952 = vmatprep.subr.mxu0 0.0
    %2953 = vmatpush1.msra.mxu0 0.0
    %2954 = vmatprep.subr.mxu0 0.0
    %2955 = vmatpush1.msra.mxu0 0.0
    %2956 = vmatprep.subr.mxu0 0.0
    %2957 = vmatpush1.msra.mxu0 0.0
    %2958 = vmatprep.subr.mxu0 0.0
    %2959 = vmatpush1.msra.mxu0 0.0
    %2960 = vmatprep.subr.mxu0 0.0
    %2961 = vmatpush1.msra.mxu0 0.0
    %2962 = vmatprep.subr.mxu0 0.0
    %2963 = vmatpush1.msra.mxu0 0.0
    %2964 = vmatprep.subr.mxu0 0.0
    %2965 = vmatpush1.msra.mxu0 0.0
    %2966 = vmatprep.subr.mxu0 0.0
    %2967 = vmatpush1.msra.mxu0 0.0
    %2968 = vmatprep.subr.mxu0 0.0
    %2969 = vmatpush1.msra.mxu0 0.0
    %2970 = vmatprep.subr.mxu0 0.0
    %2971 = vmatpush1.msra.mxu0 0.0
    %2972 = vmatprep.subr.mxu0 0.0
    %2973 = vmatpush1.msra.mxu0 0.0
    %2974 = vmatprep.subr.mxu0 0.0
    %2975 = vmatpush1.msra.mxu0 0.0
    %2976 = vmatprep.subr.mxu0 0.0
    %2977 = vmatpush1.msra.mxu0 0.0
    %2978 = vmatprep.subr.mxu0 0.0
    %2979 = vmatpush1.msra.mxu0 0.0
    %2980 = vmatprep.subr.mxu0 0.0
    %2981 = vmatpush1.msra.mxu0 0.0
    %2982 = vmatprep.subr.mxu0 0.0
    %2983 = vmatpush1.msra.mxu0 0.0
    %2984 = vmatprep.subr.mxu0 0.0
    %2985 = vmatpush1.msra.mxu0 0.0
    %2986 = vmatprep.mubr.f32.mxu0 0.0
    %2987 = vmatmul.mubr.f32.gmra.mrb[0].mxu0 %v2920
    %v2988 = vpop.f32.mrb[0].mxu0
    %v2989 = vadd.f32 0.0, %v2988
    %v2990 = vpop.f32.mrb[0].mxu0
    %2991 = vdwg.mxu0
    %2993 = vrot.lane.b32.xlu0 %v2804, 32
    %v2994 = vpop.permute.xlu0 %2993
    %v2995 = vsel %vm1350, %v2994, 0
    %2997 = vmatprep.subr.mxu0 0.0
    %2998 = vmatpush1.msra.mxu0 %v106
    %2999 = vmatprep.subr.mxu0 0.0
    %3000 = vmatpush1.msra.mxu0 %v107
    %3001 = vmatprep.subr.mxu0 0.0
    %3002 = vmatpush1.msra.mxu0 %v108
    %3003 = vmatprep.subr.mxu0 0.0
    %3004 = vmatpush1.msra.mxu0 %v109
    %3005 = vmatprep.subr.mxu0 0.0
    %3006 = vmatpush1.msra.mxu0 0.0
    %3007 = vmatprep.subr.mxu0 0.0
    %3008 = vmatpush1.msra.mxu0 0.0
    %3009 = vmatprep.subr.mxu0 0.0
    %3010 = vmatpush1.msra.mxu0 0.0
    %3011 = vmatprep.subr.mxu0 0.0
    %3012 = vmatpush1.msra.mxu0 0.0
    %3013 = vmatprep.subr.mxu0 0.0
    %3014 = vmatpush1.msra.mxu0 0.0
    %3015 = vmatprep.subr.mxu0 0.0
    %3016 = vmatpush1.msra.mxu0 0.0
    %3017 = vmatprep.subr.mxu0 0.0
    %3018 = vmatpush1.msra.mxu0 0.0
    %3019 = vmatprep.subr.mxu0 0.0
    %3020 = vmatpush1.msra.mxu0 0.0
    %3021 = vmatprep.subr.mxu0 0.0
    %3022 = vmatpush1.msra.mxu0 0.0
    %3023 = vmatprep.subr.mxu0 0.0
    %3024 = vmatpush1.msra.mxu0 0.0
    %3025 = vmatprep.subr.mxu0 0.0
    %3026 = vmatpush1.msra.mxu0 0.0
    %3027 = vmatprep.subr.mxu0 0.0
    %3028 = vmatpush1.msra.mxu0 0.0
    %3029 = vmatprep.subr.mxu0 0.0
    %3030 = vmatpush1.msra.mxu0 0.0
    %3031 = vmatprep.subr.mxu0 0.0
    %3032 = vmatpush1.msra.mxu0 0.0
    %3033 = vmatprep.subr.mxu0 0.0
    %3034 = vmatpush1.msra.mxu0 0.0
    %3035 = vmatprep.subr.mxu0 0.0
    %3036 = vmatpush1.msra.mxu0 0.0
    %3037 = vmatprep.subr.mxu0 0.0
    %3038 = vmatpush1.msra.mxu0 0.0
    %3039 = vmatprep.subr.mxu0 0.0
    %3040 = vmatpush1.msra.mxu0 0.0
    %3041 = vmatprep.subr.mxu0 0.0
    %3042 = vmatpush1.msra.mxu0 0.0
    %3043 = vmatprep.subr.mxu0 0.0
    %3044 = vmatpush1.msra.mxu0 0.0
    %3045 = vmatprep.subr.mxu0 0.0
    %3046 = vmatpush1.msra.mxu0 0.0
    %3047 = vmatprep.subr.mxu0 0.0
    %3048 = vmatpush1.msra.mxu0 0.0
    %3049 = vmatprep.subr.mxu0 0.0
    %3050 = vmatpush1.msra.mxu0 0.0
    %3051 = vmatprep.subr.mxu0 0.0
    %3052 = vmatpush1.msra.mxu0 0.0
    %3053 = vmatprep.subr.mxu0 0.0
    %3054 = vmatpush1.msra.mxu0 0.0
    %3055 = vmatprep.subr.mxu0 0.0
    %3056 = vmatpush1.msra.mxu0 0.0
    %3057 = vmatprep.subr.mxu0 0.0
    %3058 = vmatpush1.msra.mxu0 0.0
    %3059 = vmatprep.subr.mxu0 0.0
    %3060 = vmatpush1.msra.mxu0 0.0
    %3061 = vmatprep.mubr.f32.mxu0 0.0
    %3062 = vmatmul.mubr.f32.gmra.mrb[0].mxu0 %v2995
    %v3063 = vpop.f32.mrb[0].mxu0
    %v3064 = vadd.f32 0.0, %v3063
    %v3065 = vpop.f32.mrb[0].mxu0
    %3066 = vdwg.mxu0
    %3068 = vrot.lane.b32.xlu0 %v2829, 32
    %v3069 = vpop.permute.xlu0 %3068
    %v3070 = vsel %vm1350, %v3069, 0
    %3072 = vmatprep.subr.mxu0 0.0
    %3073 = vmatpush1.msra.mxu0 %v110
    %3074 = vmatprep.subr.mxu0 0.0
    %3075 = vmatpush1.msra.mxu0 %v111
    %3076 = vmatprep.subr.mxu0 0.0
    %3077 = vmatpush1.msra.mxu0 %v112
    %3078 = vmatprep.subr.mxu0 0.0
    %3079 = vmatpush1.msra.mxu0 %v113
    %3080 = vmatprep.subr.mxu0 0.0
    %3081 = vmatpush1.msra.mxu0 0.0
    %3082 = vmatprep.subr.mxu0 0.0
    %3083 = vmatpush1.msra.mxu0 0.0
    %3084 = vmatprep.subr.mxu0 0.0
    %3085 = vmatpush1.msra.mxu0 0.0
    %3086 = vmatprep.subr.mxu0 0.0
    %3087 = vmatpush1.msra.mxu0 0.0
    %3088 = vmatprep.subr.mxu0 0.0
    %3089 = vmatpush1.msra.mxu0 0.0
    %3090 = vmatprep.subr.mxu0 0.0
    %3091 = vmatpush1.msra.mxu0 0.0
    %3092 = vmatprep.subr.mxu0 0.0
    %3093 = vmatpush1.msra.mxu0 0.0
    %3094 = vmatprep.subr.mxu0 0.0
    %3095 = vmatpush1.msra.mxu0 0.0
    %3096 = vmatprep.subr.mxu0 0.0
    %3097 = vmatpush1.msra.mxu0 0.0
    %3098 = vmatprep.subr.mxu0 0.0
    %3099 = vmatpush1.msra.mxu0 0.0
    %3100 = vmatprep.subr.mxu0 0.0
    %3101 = vmatpush1.msra.mxu0 0.0
    %3102 = vmatprep.subr.mxu0 0.0
    %3103 = vmatpush1.msra.mxu0 0.0
    %3104 = vmatprep.subr.mxu0 0.0
    %3105 = vmatpush1.msra.mxu0 0.0
    %3106 = vmatprep.subr.mxu0 0.0
    %3107 = vmatpush1.msra.mxu0 0.0
    %3108 = vmatprep.subr.mxu0 0.0
    %3109 = vmatpush1.msra.mxu0 0.0
    %3110 = vmatprep.subr.mxu0 0.0
    %3111 = vmatpush1.msra.mxu0 0.0
    %3112 = vmatprep.subr.mxu0 0.0
    %3113 = vmatpush1.msra.mxu0 0.0
    %3114 = vmatprep.subr.mxu0 0.0
    %3115 = vmatpush1.msra.mxu0 0.0
    %3116 = vmatprep.subr.mxu0 0.0
    %3117 = vmatpush1.msra.mxu0 0.0
    %3118 = vmatprep.subr.mxu0 0.0
    %3119 = vmatpush1.msra.mxu0 0.0
    %3120 = vmatprep.subr.mxu0 0.0
    %3121 = vmatpush1.msra.mxu0 0.0
    %3122 = vmatprep.subr.mxu0 0.0
    %3123 = vmatpush1.msra.mxu0 0.0
    %3124 = vmatprep.subr.mxu0 0.0
    %3125 = vmatpush1.msra.mxu0 0.0
    %3126 = vmatprep.subr.mxu0 0.0
    %3127 = vmatpush1.msra.mxu0 0.0
    %3128 = vmatprep.subr.mxu0 0.0
    %3129 = vmatpush1.msra.mxu0 0.0
    %3130 = vmatprep.subr.mxu0 0.0
    %3131 = vmatpush1.msra.mxu0 0.0
    %3132 = vmatprep.subr.mxu0 0.0
    %3133 = vmatpush1.msra.mxu0 0.0
    %3134 = vmatprep.subr.mxu0 0.0
    %3135 = vmatpush1.msra.mxu0 0.0
    %3136 = vmatprep.mubr.f32.mxu0 0.0
    %3137 = vmatmul.mubr.f32.gmra.mrb[0].mxu0 %v3070
    %v3138 = vpop.f32.mrb[0].mxu0
    %v3139 = vadd.f32 0.0, %v3138
    %v3140 = vpop.f32.mrb[0].mxu0
    %3141 = vdwg.mxu0
    %v3142 = vadd.f32 %v499, %v2914
    %v3143 = vsub.f32 0.0, %v3142
    %v3144 = vmul.f32 %v3143, 1.442695
    %v3145 = vpow.pop %v3144
    %v3146 = vadd.f32 %v3145, 1.0
    %v3147 = vrcp.pop %v3146
    %v3148 = vmul.f32 1.0, %v3147
    %v3149 = vtanh.pop %v3142
    %v3150 = vmul.f32 %v3148, %v2748
    %3152 = vrot.lane.b32.xlu0 %v3149, 64
    %v3153 = vpop.permute.xlu0 %3152
    %v3155 = vmul.f32 %v3148, %v3153
    %3157 = vrot.lane.b32.xlu0 %v3155, 32
    %v3158 = vpop.permute.xlu0 %3157
    %v3160 = vadd.f32 %v3150, %v3158
    %v3161 = vtanh.pop %v3160
    %3163 = vrot.lane.b32.xlu0 %v3161, 64
    %v3164 = vpop.permute.xlu0 %3163
    %v3166 = vmul.f32 %v3148, %v3164
    %v3167 = vadd.f32 %v424, %v2989
    %v3168 = vsub.f32 0.0, %v3167
    %v3169 = vmul.f32 %v3168, 1.442695
    %v3170 = vpow.pop %v3169
    %v3171 = vadd.f32 %v3170, 1.0
    %v3172 = vrcp.pop %v3171
    %v3173 = vmul.f32 1.0, %v3172
    %v3174 = vtanh.pop %v3167
    %v3175 = vmul.f32 %v3173, %v2773
    %3177 = vrot.lane.b32.xlu0 %v3174, 64
    %v3178 = vpop.permute.xlu0 %3177
    %v3180 = vmul.f32 %v3173, %v3178
    %3182 = vrot.lane.b32.xlu0 %v3180, 32
    %v3183 = vpop.permute.xlu0 %3182
    %v3185 = vadd.f32 %v3175, %v3183
    %v3186 = vtanh.pop %v3185
    %3188 = vrot.lane.b32.xlu0 %v3186, 64
    %v3189 = vpop.permute.xlu0 %3188
    %v3191 = vmul.f32 %v3173, %v3189
    %v3192 = vadd.f32 %v1115, %v3064
    %v3193 = vsub.f32 0.0, %v3192
    %v3194 = vmul.f32 %v3193, 1.442695
    %v3195 = vpow.pop %v3194
    %v3196 = vadd.f32 %v3195, 1.0
    %v3197 = vrcp.pop %v3196
    %v3198 = vmul.f32 1.0, %v3197
    %v3199 = vtanh.pop %v3192
    %v3200 = vmul.f32 %v3198, %v2798
    %3202 = vrot.lane.b32.xlu0 %v3199, 64
    %v3203 = vpop.permute.xlu0 %3202
    %v3205 = vmul.f32 %v3198, %v3203
    %3207 = vrot.lane.b32.xlu0 %v3205, 32
    %v3208 = vpop.permute.xlu0 %3207
    %v3210 = vadd.f32 %v3200, %v3208
    %v3211 = vtanh.pop %v3210
    %3213 = vrot.lane.b32.xlu0 %v3211, 64
    %v3214 = vpop.permute.xlu0 %3213
    %v3216 = vmul.f32 %v3198, %v3214
    %v3217 = vadd.f32 %v1040, %v3139
    %v3218 = vsub.f32 0.0, %v3217
    %v3219 = vmul.f32 %v3218, 1.442695
    %v3220 = vpow.pop %v3219
    %v3221 = vadd.f32 %v3220, 1.0
    %v3222 = vrcp.pop %v3221
    %v3223 = vmul.f32 1.0, %v3222
    %v3224 = vtanh.pop %v3217
    %v3225 = vmul.f32 %v3223, %v2823
    %3227 = vrot.lane.b32.xlu0 %v3224, 64
    %v3228 = vpop.permute.xlu0 %3227
    %v3230 = vmul.f32 %v3223, %v3228
    %3232 = vrot.lane.b32.xlu0 %v3230, 32
    %v3233 = vpop.permute.xlu0 %3232
    %v3235 = vadd.f32 %v3225, %v3233
    %v3236 = vtanh.pop %v3235
    %3238 = vrot.lane.b32.xlu0 %v3236, 64
    %v3239 = vpop.permute.xlu0 %3238
    %v3241 = vmul.f32 %v3223, %v3239
    %v3242 = vmul.f32 %v3166, %v3216
    %v3243 = vadd.f32 %v2831, %v3242
    %v3244 = vmul.f32 %v3191, %v3241
    %v3245 = vadd.f32 %v2833, %v3244
    %v3246 = vmul.f32 %v3166, %v3166
    %v3247 = vadd.f32 %v2835, %v3246
    %v3248 = vmul.f32 %v3191, %v3191
    %v3249 = vadd.f32 %v2837, %v3248
    %v3250 = vmul.f32 %v3216, %v3216
    %v3251 = vadd.f32 %v2839, %v3250
    %v3252 = vmul.f32 %v3241, %v3241
    %v3253 = vadd.f32 %v2841, %v3252
    %3255 = vrot.lane.b32.xlu0 %v3166, 32
    %v3256 = vpop.permute.xlu0 %3255
    %v3257 = vsel %vm1350, %v3256, 0
    %3259 = vmatprep.subr.mxu0 0.0
    %3260 = vmatpush1.msra.mxu0 %v106
    %3261 = vmatprep.subr.mxu0 0.0
    %3262 = vmatpush1.msra.mxu0 %v107
    %3263 = vmatprep.subr.mxu0 0.0
    %3264 = vmatpush1.msra.mxu0 %v108
    %3265 = vmatprep.subr.mxu0 0.0
    %3266 = vmatpush1.msra.mxu0 %v109
    %3267 = vmatprep.subr.mxu0 0.0
    %3268 = vmatpush1.msra.mxu0 0.0
    %3269 = vmatprep.subr.mxu0 0.0
    %3270 = vmatpush1.msra.mxu0 0.0
    %3271 = vmatprep.subr.mxu0 0.0
    %3272 = vmatpush1.msra.mxu0 0.0
    %3273 = vmatprep.subr.mxu0 0.0
    %3274 = vmatpush1.msra.mxu0 0.0
    %3275 = vmatprep.subr.mxu0 0.0
    %3276 = vmatpush1.msra.mxu0 0.0
    %3277 = vmatprep.subr.mxu0 0.0
    %3278 = vmatpush1.msra.mxu0 0.0
    %3279 = vmatprep.subr.mxu0 0.0
    %3280 = vmatpush1.msra.mxu0 0.0
    %3281 = vmatprep.subr.mxu0 0.0
    %3282 = vmatpush1.msra.mxu0 0.0
    %3283 = vmatprep.subr.mxu0 0.0
    %3284 = vmatpush1.msra.mxu0 0.0
    %3285 = vmatprep.subr.mxu0 0.0
    %3286 = vmatpush1.msra.mxu0 0.0
    %3287 = vmatprep.subr.mxu0 0.0
    %3288 = vmatpush1.msra.mxu0 0.0
    %3289 = vmatprep.subr.mxu0 0.0
    %3290 = vmatpush1.msra.mxu0 0.0
    %3291 = vmatprep.subr.mxu0 0.0
    %3292 = vmatpush1.msra.mxu0 0.0
    %3293 = vmatprep.subr.mxu0 0.0
    %3294 = vmatpush1.msra.mxu0 0.0
    %3295 = vmatprep.subr.mxu0 0.0
    %3296 = vmatpush1.msra.mxu0 0.0
    %3297 = vmatprep.subr.mxu0 0.0
    %3298 = vmatpush1.msra.mxu0 0.0
    %3299 = vmatprep.subr.mxu0 0.0
    %3300 = vmatpush1.msra.mxu0 0.0
    %3301 = vmatprep.subr.mxu0 0.0
    %3302 = vmatpush1.msra.mxu0 0.0
    %3303 = vmatprep.subr.mxu0 0.0
    %3304 = vmatpush1.msra.mxu0 0.0
    %3305 = vmatprep.subr.mxu0 0.0
    %3306 = vmatpush1.msra.mxu0 0.0
    %3307 = vmatprep.subr.mxu0 0.0
    %3308 = vmatpush1.msra.mxu0 0.0
    %3309 = vmatprep.subr.mxu0 0.0
    %3310 = vmatpush1.msra.mxu0 0.0
    %3311 = vmatprep.subr.mxu0 0.0
    %3312 = vmatpush1.msra.mxu0 0.0
    %3313 = vmatprep.subr.mxu0 0.0
    %3314 = vmatpush1.msra.mxu0 0.0
    %3315 = vmatprep.subr.mxu0 0.0
    %3316 = vmatpush1.msra.mxu0 0.0
    %3317 = vmatprep.subr.mxu0 0.0
    %3318 = vmatpush1.msra.mxu0 0.0
    %3319 = vmatprep.subr.mxu0 0.0
    %3320 = vmatpush1.msra.mxu0 0.0
    %3321 = vmatprep.subr.mxu0 0.0
    %3322 = vmatpush1.msra.mxu0 0.0
    %3323 = vmatprep.mubr.f32.mxu0 0.0
    %3324 = vmatmul.mubr.f32.gmra.mrb[0].mxu0 %v3257
    %v3325 = vpop.f32.mrb[0].mxu0
    %v3326 = vadd.f32 0.0, %v3325
    %v3327 = vpop.f32.mrb[0].mxu0
    %3328 = vdwg.mxu0
    %3330 = vrot.lane.b32.xlu0 %v3191, 32
    %v3331 = vpop.permute.xlu0 %3330
    %v3332 = vsel %vm1350, %v3331, 0
    %3334 = vmatprep.subr.mxu0 0.0
    %3335 = vmatpush1.msra.mxu0 %v110
    %3336 = vmatprep.subr.mxu0 0.0
    %3337 = vmatpush1.msra.mxu0 %v111
    %3338 = vmatprep.subr.mxu0 0.0
    %3339 = vmatpush1.msra.mxu0 %v112
    %3340 = vmatprep.subr.mxu0 0.0
    %3341 = vmatpush1.msra.mxu0 %v113
    %3342 = vmatprep.subr.mxu0 0.0
    %3343 = vmatpush1.msra.mxu0 0.0
    %3344 = vmatprep.subr.mxu0 0.0
    %3345 = vmatpush1.msra.mxu0 0.0
    %3346 = vmatprep.subr.mxu0 0.0
    %3347 = vmatpush1.msra.mxu0 0.0
    %3348 = vmatprep.subr.mxu0 0.0
    %3349 = vmatpush1.msra.mxu0 0.0
    %3350 = vmatprep.subr.mxu0 0.0
    %3351 = vmatpush1.msra.mxu0 0.0
    %3352 = vmatprep.subr.mxu0 0.0
    %3353 = vmatpush1.msra.mxu0 0.0
    %3354 = vmatprep.subr.mxu0 0.0
    %3355 = vmatpush1.msra.mxu0 0.0
    %3356 = vmatprep.subr.mxu0 0.0
    %3357 = vmatpush1.msra.mxu0 0.0
    %3358 = vmatprep.subr.mxu0 0.0
    %3359 = vmatpush1.msra.mxu0 0.0
    %3360 = vmatprep.subr.mxu0 0.0
    %3361 = vmatpush1.msra.mxu0 0.0
    %3362 = vmatprep.subr.mxu0 0.0
    %3363 = vmatpush1.msra.mxu0 0.0
    %3364 = vmatprep.subr.mxu0 0.0
    %3365 = vmatpush1.msra.mxu0 0.0
    %3366 = vmatprep.subr.mxu0 0.0
    %3367 = vmatpush1.msra.mxu0 0.0
    %3368 = vmatprep.subr.mxu0 0.0
    %3369 = vmatpush1.msra.mxu0 0.0
    %3370 = vmatprep.subr.mxu0 0.0
    %3371 = vmatpush1.msra.mxu0 0.0
    %3372 = vmatprep.subr.mxu0 0.0
    %3373 = vmatpush1.msra.mxu0 0.0
    %3374 = vmatprep.subr.mxu0 0.0
    %3375 = vmatpush1.msra.mxu0 0.0
    %3376 = vmatprep.subr.mxu0 0.0
    %3377 = vmatpush1.msra.mxu0 0.0
    %3378 = vmatprep.subr.mxu0 0.0
    %3379 = vmatpush1.msra.mxu0 0.0
    %3380 = vmatprep.subr.mxu0 0.0
    %3381 = vmatpush1.msra.mxu0 0.0
    %3382 = vmatprep.subr.mxu0 0.0
    %3383 = vmatpush1.msra.mxu0 0.0
    %3384 = vmatprep.subr.mxu0 0.0
    %3385 = vmatpush1.msra.mxu0 0.0
    %3386 = vmatprep.subr.mxu0 0.0
    %3387 = vmatpush1.msra.mxu0 0.0
    %3388 = vmatprep.subr.mxu0 0.0
    %3389 = vmatpush1.msra.mxu0 0.0
    %3390 = vmatprep.subr.mxu0 0.0
    %3391 = vmatpush1.msra.mxu0 0.0
    %3392 = vmatprep.subr.mxu0 0.0
    %3393 = vmatpush1.msra.mxu0 0.0
    %3394 = vmatprep.subr.mxu0 0.0
    %3395 = vmatpush1.msra.mxu0 0.0
    %3396 = vmatprep.subr.mxu0 0.0
    %3397 = vmatpush1.msra.mxu0 0.0
    %3398 = vmatprep.mubr.f32.mxu0 0.0
    %3399 = vmatmul.mubr.f32.gmra.mrb[0].mxu0 %v3332
    %v3400 = vpop.f32.mrb[0].mxu0
    %v3401 = vadd.f32 0.0, %v3400
    %v3402 = vpop.f32.mrb[0].mxu0
    %3403 = vdwg.mxu0
    %3405 = vrot.lane.b32.xlu0 %v3216, 32
    %v3406 = vpop.permute.xlu0 %3405
    %v3407 = vsel %vm1350, %v3406, 0
    %3409 = vmatprep.subr.mxu0 0.0
    %3410 = vmatpush1.msra.mxu0 %v106
    %3411 = vmatprep.subr.mxu0 0.0
    %3412 = vmatpush1.msra.mxu0 %v107
    %3413 = vmatprep.subr.mxu0 0.0
    %3414 = vmatpush1.msra.mxu0 %v108
    %3415 = vmatprep.subr.mxu0 0.0
    %3416 = vmatpush1.msra.mxu0 %v109
    %3417 = vmatprep.subr.mxu0 0.0
    %3418 = vmatpush1.msra.mxu0 0.0
    %3419 = vmatprep.subr.mxu0 0.0
    %3420 = vmatpush1.msra.mxu0 0.0
    %3421 = vmatprep.subr.mxu0 0.0
    %3422 = vmatpush1.msra.mxu0 0.0
    %3423 = vmatprep.subr.mxu0 0.0
    %3424 = vmatpush1.msra.mxu0 0.0
    %3425 = vmatprep.subr.mxu0 0.0
    %3426 = vmatpush1.msra.mxu0 0.0
    %3427 = vmatprep.subr.mxu0 0.0
    %3428 = vmatpush1.msra.mxu0 0.0
    %3429 = vmatprep.subr.mxu0 0.0
    %3430 = vmatpush1.msra.mxu0 0.0
    %3431 = vmatprep.subr.mxu0 0.0
    %3432 = vmatpush1.msra.mxu0 0.0
    %3433 = vmatprep.subr.mxu0 0.0
    %3434 = vmatpush1.msra.mxu0 0.0
    %3435 = vmatprep.subr.mxu0 0.0
    %3436 = vmatpush1.msra.mxu0 0.0
    %3437 = vmatprep.subr.mxu0 0.0
    %3438 = vmatpush1.msra.mxu0 0.0
    %3439 = vmatprep.subr.mxu0 0.0
    %3440 = vmatpush1.msra.mxu0 0.0
    %3441 = vmatprep.subr.mxu0 0.0
    %3442 = vmatpush1.msra.mxu0 0.0
    %3443 = vmatprep.subr.mxu0 0.0
    %3444 = vmatpush1.msra.mxu0 0.0
    %3445 = vmatprep.subr.mxu0 0.0
    %3446 = vmatpush1.msra.mxu0 0.0
    %3447 = vmatprep.subr.mxu0 0.0
    %3448 = vmatpush1.msra.mxu0 0.0
    %3449 = vmatprep.subr.mxu0 0.0
    %3450 = vmatpush1.msra.mxu0 0.0
    %3451 = vmatprep.subr.mxu0 0.0
    %3452 = vmatpush1.msra.mxu0 0.0
    %3453 = vmatprep.subr.mxu0 0.0
    %3454 = vmatpush1.msra.mxu0 0.0
    %3455 = vmatprep.subr.mxu0 0.0
    %3456 = vmatpush1.msra.mxu0 0.0
    %3457 = vmatprep.subr.mxu0 0.0
    %3458 = vmatpush1.msra.mxu0 0.0
    %3459 = vmatprep.subr.mxu0 0.0
    %3460 = vmatpush1.msra.mxu0 0.0
    %3461 = vmatprep.subr.mxu0 0.0
    %3462 = vmatpush1.msra.mxu0 0.0
    %3463 = vmatprep.subr.mxu0 0.0
    %3464 = vmatpush1.msra.mxu0 0.0
    %3465 = vmatprep.subr.mxu0 0.0
    %3466 = vmatpush1.msra.mxu0 0.0
    %3467 = vmatprep.subr.mxu0 0.0
    %3468 = vmatpush1.msra.mxu0 0.0
    %3469 = vmatprep.subr.mxu0 0.0
    %3470 = vmatpush1.msra.mxu0 0.0
    %3471 = vmatprep.subr.mxu0 0.0
    %3472 = vmatpush1.msra.mxu0 0.0
    %3473 = vmatprep.mubr.f32.mxu0 0.0
    %3474 = vmatmul.mubr.f32.gmra.mrb[0].mxu0 %v3407
    %v3475 = vpop.f32.mrb[0].mxu0
    %v3476 = vadd.f32 0.0, %v3475
    %v3477 = vpop.f32.mrb[0].mxu0
    %3478 = vdwg.mxu0
    %3480 = vrot.lane.b32.xlu0 %v3241, 32
    %v3481 = vpop.permute.xlu0 %3480
    %v3482 = vsel %vm1350, %v3481, 0
    %3484 = vmatprep.subr.mxu0 0.0
    %3485 = vmatpush1.msra.mxu0 %v110
    %3486 = vmatprep.subr.mxu0 0.0
    %3487 = vmatpush1.msra.mxu0 %v111
    %3488 = vmatprep.subr.mxu0 0.0
    %3489 = vmatpush1.msra.mxu0 %v112
    %3490 = vmatprep.subr.mxu0 0.0
    %3491 = vmatpush1.msra.mxu0 %v113
    %3492 = vmatprep.subr.mxu0 0.0
    %3493 = vmatpush1.msra.mxu0 0.0
    %3494 = vmatprep.subr.mxu0 0.0
    %3495 = vmatpush1.msra.mxu0 0.0
    %3496 = vmatprep.subr.mxu0 0.0
    %3497 = vmatpush1.msra.mxu0 0.0
    %3498 = vmatprep.subr.mxu0 0.0
    %3499 = vmatpush1.msra.mxu0 0.0
    %3500 = vmatprep.subr.mxu0 0.0
    %3501 = vmatpush1.msra.mxu0 0.0
    %3502 = vmatprep.subr.mxu0 0.0
    %3503 = vmatpush1.msra.mxu0 0.0
    %3504 = vmatprep.subr.mxu0 0.0
    %3505 = vmatpush1.msra.mxu0 0.0
    %3506 = vmatprep.subr.mxu0 0.0
    %3507 = vmatpush1.msra.mxu0 0.0
    %3508 = vmatprep.subr.mxu0 0.0
    %3509 = vmatpush1.msra.mxu0 0.0
    %3510 = vmatprep.subr.mxu0 0.0
    %3511 = vmatpush1.msra.mxu0 0.0
    %3512 = vmatprep.subr.mxu0 0.0
    %3513 = vmatpush1.msra.mxu0 0.0
    %3514 = vmatprep.subr.mxu0 0.0
    %3515 = vmatpush1.msra.mxu0 0.0
    %3516 = vmatprep.subr.mxu0 0.0
    %3517 = vmatpush1.msra.mxu0 0.0
    %3518 = vmatprep.subr.mxu0 0.0
    %3519 = vmatpush1.msra.mxu0 0.0
    %3520 = vmatprep.subr.mxu0 0.0
    %3521 = vmatpush1.msra.mxu0 0.0
    %3522 = vmatprep.subr.mxu0 0.0
    %3523 = vmatpush1.msra.mxu0 0.0
    %3524 = vmatprep.subr.mxu0 0.0
    %3525 = vmatpush1.msra.mxu0 0.0
    %3526 = vmatprep.subr.mxu0 0.0
    %3527 = vmatpush1.msra.mxu0 0.0
    %3528 = vmatprep.subr.mxu0 0.0
    %3529 = vmatpush1.msra.mxu0 0.0
    %3530 = vmatprep.subr.mxu0 0.0
    %3531 = vmatpush1.msra.mxu0 0.0
    %3532 = vmatprep.subr.mxu0 0.0
    %3533 = vmatpush1.msra.mxu0 0.0
    %3534 = vmatprep.subr.mxu0 0.0
    %3535 = vmatpush1.msra.mxu0 0.0
    %3536 = vmatprep.subr.mxu0 0.0
    %3537 = vmatpush1.msra.mxu0 0.0
    %3538 = vmatprep.subr.mxu0 0.0
    %3539 = vmatpush1.msra.mxu0 0.0
    %3540 = vmatprep.subr.mxu0 0.0
    %3541 = vmatpush1.msra.mxu0 0.0
    %3542 = vmatprep.subr.mxu0 0.0
    %3543 = vmatpush1.msra.mxu0 0.0
    %3544 = vmatprep.subr.mxu0 0.0
    %3545 = vmatpush1.msra.mxu0 0.0
    %3546 = vmatprep.subr.mxu0 0.0
    %3547 = vmatpush1.msra.mxu0 0.0
    %3548 = vmatprep.mubr.f32.mxu0 0.0
    %3549 = vmatmul.mubr.f32.gmra.mrb[0].mxu0 %v3482
    %v3550 = vpop.f32.mrb[0].mxu0
    %v3551 = vadd.f32 0.0, %v3550
    %v3552 = vpop.f32.mrb[0].mxu0
    %3553 = vdwg.mxu0
    %v3554 = vadd.f32 %v576, %v3326
    %v3555 = vsub.f32 0.0, %v3554
    %v3556 = vmul.f32 %v3555, 1.442695
    %v3557 = vpow.pop %v3556
    %v3558 = vadd.f32 %v3557, 1.0
    %v3559 = vrcp.pop %v3558
    %v3560 = vmul.f32 1.0, %v3559
    %v3561 = vtanh.pop %v3554
    %v3562 = vmul.f32 %v3560, %v3160
    %3564 = vrot.lane.b32.xlu0 %v3561, 64
    %v3565 = vpop.permute.xlu0 %3564
    %v3567 = vmul.f32 %v3560, %v3565
    %3569 = vrot.lane.b32.xlu0 %v3567, 32
    %v3570 = vpop.permute.xlu0 %3569
    %v3572 = vadd.f32 %v3562, %v3570
    %v3573 = vtanh.pop %v3572
    %3575 = vrot.lane.b32.xlu0 %v3573, 64
    %v3576 = vpop.permute.xlu0 %3575
    %v3578 = vmul.f32 %v3560, %v3576
    %v3579 = vadd.f32 %v347, %v3401
    %v3580 = vsub.f32 0.0, %v3579
    %v3581 = vmul.f32 %v3580, 1.442695
    %v3582 = vpow.pop %v3581
    %v3583 = vadd.f32 %v3582, 1.0
    %v3584 = vrcp.pop %v3583
    %v3585 = vmul.f32 1.0, %v3584
    %v3586 = vtanh.pop %v3579
    %v3587 = vmul.f32 %v3585, %v3185
    %3589 = vrot.lane.b32.xlu0 %v3586, 64
    %v3590 = vpop.permute.xlu0 %3589
    %v3592 = vmul.f32 %v3585, %v3590
    %3594 = vrot.lane.b32.xlu0 %v3592, 32
    %v3595 = vpop.permute.xlu0 %3594
    %v3597 = vadd.f32 %v3587, %v3595
    %v3598 = vtanh.pop %v3597
    %3600 = vrot.lane.b32.xlu0 %v3598, 64
    %v3601 = vpop.permute.xlu0 %3600
    %v3603 = vmul.f32 %v3585, %v3601
    %v3604 = vadd.f32 %v1192, %v3476
    %v3605 = vsub.f32 0.0, %v3604
    %v3606 = vmul.f32 %v3605, 1.442695
    %v3607 = vpow.pop %v3606
    %v3608 = vadd.f32 %v3607, 1.0
    %v3609 = vrcp.pop %v3608
    %v3610 = vmul.f32 1.0, %v3609
    %v3611 = vtanh.pop %v3604
    %v3612 = vmul.f32 %v3610, %v3210
    %3614 = vrot.lane.b32.xlu0 %v3611, 64
    %v3615 = vpop.permute.xlu0 %3614
    %v3617 = vmul.f32 %v3610, %v3615
    %3619 = vrot.lane.b32.xlu0 %v3617, 32
    %v3620 = vpop.permute.xlu0 %3619
    %v3622 = vadd.f32 %v3612, %v3620
    %v3623 = vtanh.pop %v3622
    %3625 = vrot.lane.b32.xlu0 %v3623, 64
    %v3626 = vpop.permute.xlu0 %3625
    %v3628 = vmul.f32 %v3610, %v3626
    %v3629 = vadd.f32 %v963, %v3551
    %v3630 = vsub.f32 0.0, %v3629
    %v3631 = vmul.f32 %v3630, 1.442695
    %v3632 = vpow.pop %v3631
    %v3633 = vadd.f32 %v3632, 1.0
    %v3634 = vrcp.pop %v3633
    %v3635 = vmul.f32 1.0, %v3634
    %v3636 = vtanh.pop %v3629
    %v3637 = vmul.f32 %v3635, %v3235
    %3639 = vrot.lane.b32.xlu0 %v3636, 64
    %v3640 = vpop.permute.xlu0 %3639
    %v3642 = vmul.f32 %v3635, %v3640
    %3644 = vrot.lane.b32.xlu0 %v3642, 32
    %v3645 = vpop.permute.xlu0 %3644
    %v3647 = vadd.f32 %v3637, %v3645
    %v3648 = vtanh.pop %v3647
    %3650 = vrot.lane.b32.xlu0 %v3648, 64
    %v3651 = vpop.permute.xlu0 %3650
    %v3653 = vmul.f32 %v3635, %v3651
    %v3654 = vmul.f32 %v3578, %v3628
    %v3655 = vadd.f32 %v3243, %v3654
    %v3656 = vmul.f32 %v3603, %v3653
    %v3657 = vadd.f32 %v3245, %v3656
    %v3658 = vmul.f32 %v3578, %v3578
    %v3659 = vadd.f32 %v3247, %v3658
    %v3660 = vmul.f32 %v3603, %v3603
    %v3661 = vadd.f32 %v3249, %v3660
    %v3662 = vmul.f32 %v3628, %v3628
    %v3663 = vadd.f32 %v3251, %v3662
    %v3664 = vmul.f32 %v3653, %v3653
    %v3665 = vadd.f32 %v3253, %v3664
    %3667 = vrot.lane.b32.xlu0 %v3578, 32
    %v3668 = vpop.permute.xlu0 %3667
    %v3669 = vsel %vm1350, %v3668, 0
    %3671 = vmatprep.subr.mxu0 0.0
    %3672 = vmatpush1.msra.mxu0 %v106
    %3673 = vmatprep.subr.mxu0 0.0
    %3674 = vmatpush1.msra.mxu0 %v107
    %3675 = vmatprep.subr.mxu0 0.0
    %3676 = vmatpush1.msra.mxu0 %v108
    %3677 = vmatprep.subr.mxu0 0.0
    %3678 = vmatpush1.msra.mxu0 %v109
    %3679 = vmatprep.subr.mxu0 0.0
    %3680 = vmatpush1.msra.mxu0 0.0
    %3681 = vmatprep.subr.mxu0 0.0
    %3682 = vmatpush1.msra.mxu0 0.0
    %3683 = vmatprep.subr.mxu0 0.0
    %3684 = vmatpush1.msra.mxu0 0.0
    %3685 = vmatprep.subr.mxu0 0.0
    %3686 = vmatpush1.msra.mxu0 0.0
    %3687 = vmatprep.subr.mxu0 0.0
    %3688 = vmatpush1.msra.mxu0 0.0
    %3689 = vmatprep.subr.mxu0 0.0
    %3690 = vmatpush1.msra.mxu0 0.0
    %3691 = vmatprep.subr.mxu0 0.0
    %3692 = vmatpush1.msra.mxu0 0.0
    %3693 = vmatprep.subr.mxu0 0.0
    %3694 = vmatpush1.msra.mxu0 0.0
    %3695 = vmatprep.subr.mxu0 0.0
    %3696 = vmatpush1.msra.mxu0 0.0
    %3697 = vmatprep.subr.mxu0 0.0
    %3698 = vmatpush1.msra.mxu0 0.0
    %3699 = vmatprep.subr.mxu0 0.0
    %3700 = vmatpush1.msra.mxu0 0.0
    %3701 = vmatprep.subr.mxu0 0.0
    %3702 = vmatpush1.msra.mxu0 0.0
    %3703 = vmatprep.subr.mxu0 0.0
    %3704 = vmatpush1.msra.mxu0 0.0
    %3705 = vmatprep.subr.mxu0 0.0
    %3706 = vmatpush1.msra.mxu0 0.0
    %3707 = vmatprep.subr.mxu0 0.0
    %3708 = vmatpush1.msra.mxu0 0.0
    %3709 = vmatprep.subr.mxu0 0.0
    %3710 = vmatpush1.msra.mxu0 0.0
    %3711 = vmatprep.subr.mxu0 0.0
    %3712 = vmatpush1.msra.mxu0 0.0
    %3713 = vmatprep.subr.mxu0 0.0
    %3714 = vmatpush1.msra.mxu0 0.0
    %3715 = vmatprep.subr.mxu0 0.0
    %3716 = vmatpush1.msra.mxu0 0.0
    %3717 = vmatprep.subr.mxu0 0.0
    %3718 = vmatpush1.msra.mxu0 0.0
    %3719 = vmatprep.subr.mxu0 0.0
    %3720 = vmatpush1.msra.mxu0 0.0
    %3721 = vmatprep.subr.mxu0 0.0
    %3722 = vmatpush1.msra.mxu0 0.0
    %3723 = vmatprep.subr.mxu0 0.0
    %3724 = vmatpush1.msra.mxu0 0.0
    %3725 = vmatprep.subr.mxu0 0.0
    %3726 = vmatpush1.msra.mxu0 0.0
    %3727 = vmatprep.subr.mxu0 0.0
    %3728 = vmatpush1.msra.mxu0 0.0
    %3729 = vmatprep.subr.mxu0 0.0
    %3730 = vmatpush1.msra.mxu0 0.0
    %3731 = vmatprep.subr.mxu0 0.0
    %3732 = vmatpush1.msra.mxu0 0.0
    %3733 = vmatprep.subr.mxu0 0.0
    %3734 = vmatpush1.msra.mxu0 0.0
    %3735 = vmatprep.mubr.f32.mxu0 0.0
    %3736 = vmatmul.mubr.f32.gmra.mrb[0].mxu0 %v3669
    %v3737 = vpop.f32.mrb[0].mxu0
    %v3738 = vadd.f32 0.0, %v3737
    %v3739 = vpop.f32.mrb[0].mxu0
    %3740 = vdwg.mxu0
    %3742 = vrot.lane.b32.xlu0 %v3603, 32
    %v3743 = vpop.permute.xlu0 %3742
    %v3744 = vsel %vm1350, %v3743, 0
    %3746 = vmatprep.subr.mxu0 0.0
    %3747 = vmatpush1.msra.mxu0 %v110
    %3748 = vmatprep.subr.mxu0 0.0
    %3749 = vmatpush1.msra.mxu0 %v111
    %3750 = vmatprep.subr.mxu0 0.0
    %3751 = vmatpush1.msra.mxu0 %v112
    %3752 = vmatprep.subr.mxu0 0.0
    %3753 = vmatpush1.msra.mxu0 %v113
    %3754 = vmatprep.subr.mxu0 0.0
    %3755 = vmatpush1.msra.mxu0 0.0
    %3756 = vmatprep.subr.mxu0 0.0
    %3757 = vmatpush1.msra.mxu0 0.0
    %3758 = vmatprep.subr.mxu0 0.0
    %3759 = vmatpush1.msra.mxu0 0.0
    %3760 = vmatprep.subr.mxu0 0.0
    %3761 = vmatpush1.msra.mxu0 0.0
    %3762 = vmatprep.subr.mxu0 0.0
    %3763 = vmatpush1.msra.mxu0 0.0
    %3764 = vmatprep.subr.mxu0 0.0
    %3765 = vmatpush1.msra.mxu0 0.0
    %3766 = vmatprep.subr.mxu0 0.0
    %3767 = vmatpush1.msra.mxu0 0.0
    %3768 = vmatprep.subr.mxu0 0.0
    %3769 = vmatpush1.msra.mxu0 0.0
    %3770 = vmatprep.subr.mxu0 0.0
    %3771 = vmatpush1.msra.mxu0 0.0
    %3772 = vmatprep.subr.mxu0 0.0
    %3773 = vmatpush1.msra.mxu0 0.0
    %3774 = vmatprep.subr.mxu0 0.0
    %3775 = vmatpush1.msra.mxu0 0.0
    %3776 = vmatprep.subr.mxu0 0.0
    %3777 = vmatpush1.msra.mxu0 0.0
    %3778 = vmatprep.subr.mxu0 0.0
    %3779 = vmatpush1.msra.mxu0 0.0
    %3780 = vmatprep.subr.mxu0 0.0
    %3781 = vmatpush1.msra.mxu0 0.0
    %3782 = vmatprep.subr.mxu0 0.0
    %3783 = vmatpush1.msra.mxu0 0.0
    %3784 = vmatprep.subr.mxu0 0.0
    %3785 = vmatpush1.msra.mxu0 0.0
    %3786 = vmatprep.subr.mxu0 0.0
    %3787 = vmatpush1.msra.mxu0 0.0
    %3788 = vmatprep.subr.mxu0 0.0
    %3789 = vmatpush1.msra.mxu0 0.0
    %3790 = vmatprep.subr.mxu0 0.0
    %3791 = vmatpush1.msra.mxu0 0.0
    %3792 = vmatprep.subr.mxu0 0.0
    %3793 = vmatpush1.msra.mxu0 0.0
    %3794 = vmatprep.subr.mxu0 0.0
    %3795 = vmatpush1.msra.mxu0 0.0
    %3796 = vmatprep.subr.mxu0 0.0
    %3797 = vmatpush1.msra.mxu0 0.0
    %3798 = vmatprep.subr.mxu0 0.0
    %3799 = vmatpush1.msra.mxu0 0.0
    %3800 = vmatprep.subr.mxu0 0.0
    %3801 = vmatpush1.msra.mxu0 0.0
    %3802 = vmatprep.subr.mxu0 0.0
    %3803 = vmatpush1.msra.mxu0 0.0
    %3804 = vmatprep.subr.mxu0 0.0
    %3805 = vmatpush1.msra.mxu0 0.0
    %3806 = vmatprep.subr.mxu0 0.0
    %3807 = vmatpush1.msra.mxu0 0.0
    %3808 = vmatprep.subr.mxu0 0.0
    %3809 = vmatpush1.msra.mxu0 0.0
    %3810 = vmatprep.mubr.f32.mxu0 0.0
    %3811 = vmatmul.mubr.f32.gmra.mrb[0].mxu0 %v3744
    %v3812 = vpop.f32.mrb[0].mxu0
    %v3813 = vadd.f32 0.0, %v3812
    %v3814 = vpop.f32.mrb[0].mxu0
    %3815 = vdwg.mxu0
    %3817 = vrot.lane.b32.xlu0 %v3628, 32
    %v3818 = vpop.permute.xlu0 %3817
    %v3819 = vsel %vm1350, %v3818, 0
    %3821 = vmatprep.subr.mxu0 0.0
    %3822 = vmatpush1.msra.mxu0 %v106
    %3823 = vmatprep.subr.mxu0 0.0
    %3824 = vmatpush1.msra.mxu0 %v107
    %3825 = vmatprep.subr.mxu0 0.0
    %3826 = vmatpush1.msra.mxu0 %v108
    %3827 = vmatprep.subr.mxu0 0.0
    %3828 = vmatpush1.msra.mxu0 %v109
    %3829 = vmatprep.subr.mxu0 0.0
    %3830 = vmatpush1.msra.mxu0 0.0
    %3831 = vmatprep.subr.mxu0 0.0
    %3832 = vmatpush1.msra.mxu0 0.0
    %3833 = vmatprep.subr.mxu0 0.0
    %3834 = vmatpush1.msra.mxu0 0.0
    %3835 = vmatprep.subr.mxu0 0.0
    %3836 = vmatpush1.msra.mxu0 0.0
    %3837 = vmatprep.subr.mxu0 0.0
    %3838 = vmatpush1.msra.mxu0 0.0
    %3839 = vmatprep.subr.mxu0 0.0
    %3840 = vmatpush1.msra.mxu0 0.0
    %3841 = vmatprep.subr.mxu0 0.0
    %3842 = vmatpush1.msra.mxu0 0.0
    %3843 = vmatprep.subr.mxu0 0.0
    %3844 = vmatpush1.msra.mxu0 0.0
    %3845 = vmatprep.subr.mxu0 0.0
    %3846 = vmatpush1.msra.mxu0 0.0
    %3847 = vmatprep.subr.mxu0 0.0
    %3848 = vmatpush1.msra.mxu0 0.0
    %3849 = vmatprep.subr.mxu0 0.0
    %3850 = vmatpush1.msra.mxu0 0.0
    %3851 = vmatprep.subr.mxu0 0.0
    %3852 = vmatpush1.msra.mxu0 0.0
    %3853 = vmatprep.subr.mxu0 0.0
    %3854 = vmatpush1.msra.mxu0 0.0
    %3855 = vmatprep.subr.mxu0 0.0
    %3856 = vmatpush1.msra.mxu0 0.0
    %3857 = vmatprep.subr.mxu0 0.0
    %3858 = vmatpush1.msra.mxu0 0.0
    %3859 = vmatprep.subr.mxu0 0.0
    %3860 = vmatpush1.msra.mxu0 0.0
    %3861 = vmatprep.subr.mxu0 0.0
    %3862 = vmatpush1.msra.mxu0 0.0
    %3863 = vmatprep.subr.mxu0 0.0
    %3864 = vmatpush1.msra.mxu0 0.0
    %3865 = vmatprep.subr.mxu0 0.0
    %3866 = vmatpush1.msra.mxu0 0.0
    %3867 = vmatprep.subr.mxu0 0.0
    %3868 = vmatpush1.msra.mxu0 0.0
    %3869 = vmatprep.subr.mxu0 0.0
    %3870 = vmatpush1.msra.mxu0 0.0
    %3871 = vmatprep.subr.mxu0 0.0
    %3872 = vmatpush1.msra.mxu0 0.0
    %3873 = vmatprep.subr.mxu0 0.0
    %3874 = vmatpush1.msra.mxu0 0.0
    %3875 = vmatprep.subr.mxu0 0.0
    %3876 = vmatpush1.msra.mxu0 0.0
    %3877 = vmatprep.subr.mxu0 0.0
    %3878 = vmatpush1.msra.mxu0 0.0
    %3879 = vmatprep.subr.mxu0 0.0
    %3880 = vmatpush1.msra.mxu0 0.0
    %3881 = vmatprep.subr.mxu0 0.0
    %3882 = vmatpush1.msra.mxu0 0.0
    %3883 = vmatprep.subr.mxu0 0.0
    %3884 = vmatpush1.msra.mxu0 0.0
    %3885 = vmatprep.mubr.f32.mxu0 0.0
    %3886 = vmatmul.mubr.f32.gmra.mrb[0].mxu0 %v3819
    %v3887 = vpop.f32.mrb[0].mxu0
    %v3888 = vadd.f32 0.0, %v3887
    %v3889 = vpop.f32.mrb[0].mxu0
    %3890 = vdwg.mxu0
    %3892 = vrot.lane.b32.xlu0 %v3653, 32
    %v3893 = vpop.permute.xlu0 %3892
    %v3894 = vsel %vm1350, %v3893, 0
    %3896 = vmatprep.subr.mxu0 0.0
    %3897 = vmatpush1.msra.mxu0 %v110
    %3898 = vmatprep.subr.mxu0 0.0
    %3899 = vmatpush1.msra.mxu0 %v111
    %3900 = vmatprep.subr.mxu0 0.0
    %3901 = vmatpush1.msra.mxu0 %v112
    %3902 = vmatprep.subr.mxu0 0.0
    %3903 = vmatpush1.msra.mxu0 %v113
    %3904 = vmatprep.subr.mxu0 0.0
    %3905 = vmatpush1.msra.mxu0 0.0
    %3906 = vmatprep.subr.mxu0 0.0
    %3907 = vmatpush1.msra.mxu0 0.0
    %3908 = vmatprep.subr.mxu0 0.0
    %3909 = vmatpush1.msra.mxu0 0.0
    %3910 = vmatprep.subr.mxu0 0.0
    %3911 = vmatpush1.msra.mxu0 0.0
    %3912 = vmatprep.subr.mxu0 0.0
    %3913 = vmatpush1.msra.mxu0 0.0
    %3914 = vmatprep.subr.mxu0 0.0
    %3915 = vmatpush1.msra.mxu0 0.0
    %3916 = vmatprep.subr.mxu0 0.0
    %3917 = vmatpush1.msra.mxu0 0.0
    %3918 = vmatprep.subr.mxu0 0.0
    %3919 = vmatpush1.msra.mxu0 0.0
    %3920 = vmatprep.subr.mxu0 0.0
    %3921 = vmatpush1.msra.mxu0 0.0
    %3922 = vmatprep.subr.mxu0 0.0
    %3923 = vmatpush1.msra.mxu0 0.0
    %3924 = vmatprep.subr.mxu0 0.0
    %3925 = vmatpush1.msra.mxu0 0.0
    %3926 = vmatprep.subr.mxu0 0.0
    %3927 = vmatpush1.msra.mxu0 0.0
    %3928 = vmatprep.subr.mxu0 0.0
    %3929 = vmatpush1.msra.mxu0 0.0
    %3930 = vmatprep.subr.mxu0 0.0
    %3931 = vmatpush1.msra.mxu0 0.0
    %3932 = vmatprep.subr.mxu0 0.0
    %3933 = vmatpush1.msra.mxu0 0.0
    %3934 = vmatprep.subr.mxu0 0.0
    %3935 = vmatpush1.msra.mxu0 0.0
    %3936 = vmatprep.subr.mxu0 0.0
    %3937 = vmatpush1.msra.mxu0 0.0
    %3938 = vmatprep.subr.mxu0 0.0
    %3939 = vmatpush1.msra.mxu0 0.0
    %3940 = vmatprep.subr.mxu0 0.0
    %3941 = vmatpush1.msra.mxu0 0.0
    %3942 = vmatprep.subr.mxu0 0.0
    %3943 = vmatpush1.msra.mxu0 0.0
    %3944 = vmatprep.subr.mxu0 0.0
    %3945 = vmatpush1.msra.mxu0 0.0
    %3946 = vmatprep.subr.mxu0 0.0
    %3947 = vmatpush1.msra.mxu0 0.0
    %3948 = vmatprep.subr.mxu0 0.0
    %3949 = vmatpush1.msra.mxu0 0.0
    %3950 = vmatprep.subr.mxu0 0.0
    %3951 = vmatpush1.msra.mxu0 0.0
    %3952 = vmatprep.subr.mxu0 0.0
    %3953 = vmatpush1.msra.mxu0 0.0
    %3954 = vmatprep.subr.mxu0 0.0
    %3955 = vmatpush1.msra.mxu0 0.0
    %3956 = vmatprep.subr.mxu0 0.0
    %3957 = vmatpush1.msra.mxu0 0.0
    %3958 = vmatprep.subr.mxu0 0.0
    %3959 = vmatpush1.msra.mxu0 0.0
    %3960 = vmatprep.mubr.f32.mxu0 0.0
    %3961 = vmatmul.mubr.f32.gmra.mrb[0].mxu0 %v3894
    %v3962 = vpop.f32.mrb[0].mxu0
    %v3963 = vadd.f32 0.0, %v3962
    %v3964 = vpop.f32.mrb[0].mxu0
    %3965 = vdwg.mxu0
    %v3966 = vadd.f32 %v653, %v3738
    %v3967 = vsub.f32 0.0, %v3966
    %v3968 = vmul.f32 %v3967, 1.442695
    %v3969 = vpow.pop %v3968
    %v3970 = vadd.f32 %v3969, 1.0
    %v3971 = vrcp.pop %v3970
    %v3972 = vmul.f32 1.0, %v3971
    %v3973 = vtanh.pop %v3966
    %v3974 = vmul.f32 %v3972, %v3572
    %3976 = vrot.lane.b32.xlu0 %v3973, 64
    %v3977 = vpop.permute.xlu0 %3976
    %v3979 = vmul.f32 %v3972, %v3977
    %3981 = vrot.lane.b32.xlu0 %v3979, 32
    %v3982 = vpop.permute.xlu0 %3981
    %v3984 = vadd.f32 %v3974, %v3982
    %v3985 = vtanh.pop %v3984
    %3987 = vrot.lane.b32.xlu0 %v3985, 64
    %v3988 = vpop.permute.xlu0 %3987
    %v3990 = vmul.f32 %v3972, %v3988
    %v3991 = vadd.f32 %v270, %v3813
    %v3992 = vsub.f32 0.0, %v3991
    %v3993 = vmul.f32 %v3992, 1.442695
    %v3994 = vpow.pop %v3993
    %v3995 = vadd.f32 %v3994, 1.0
    %v3996 = vrcp.pop %v3995
    %v3997 = vmul.f32 1.0, %v3996
    %v3998 = vtanh.pop %v3991
    %v3999 = vmul.f32 %v3997, %v3597
    %4001 = vrot.lane.b32.xlu0 %v3998, 64
    %v4002 = vpop.permute.xlu0 %4001
    %v4004 = vmul.f32 %v3997, %v4002
    %4006 = vrot.lane.b32.xlu0 %v4004, 32
    %v4007 = vpop.permute.xlu0 %4006
    %v4009 = vadd.f32 %v3999, %v4007
    %v4010 = vtanh.pop %v4009
    %4012 = vrot.lane.b32.xlu0 %v4010, 64
    %v4013 = vpop.permute.xlu0 %4012
    %v4015 = vmul.f32 %v3997, %v4013
    %v4016 = vadd.f32 %v1269, %v3888
    %v4017 = vsub.f32 0.0, %v4016
    %v4018 = vmul.f32 %v4017, 1.442695
    %v4019 = vpow.pop %v4018
    %v4020 = vadd.f32 %v4019, 1.0
    %v4021 = vrcp.pop %v4020
    %v4022 = vmul.f32 1.0, %v4021
    %v4023 = vtanh.pop %v4016
    %v4024 = vmul.f32 %v4022, %v3622
    %4026 = vrot.lane.b32.xlu0 %v4023, 64
    %v4027 = vpop.permute.xlu0 %4026
    %v4029 = vmul.f32 %v4022, %v4027
    %4031 = vrot.lane.b32.xlu0 %v4029, 32
    %v4032 = vpop.permute.xlu0 %4031
    %v4034 = vadd.f32 %v4024, %v4032
    %v4035 = vtanh.pop %v4034
    %4037 = vrot.lane.b32.xlu0 %v4035, 64
    %v4038 = vpop.permute.xlu0 %4037
    %v4040 = vmul.f32 %v4022, %v4038
    %v4041 = vadd.f32 %v886, %v3963
    %v4042 = vsub.f32 0.0, %v4041
    %v4043 = vmul.f32 %v4042, 1.442695
    %v4044 = vpow.pop %v4043
    %v4045 = vadd.f32 %v4044, 1.0
    %v4046 = vrcp.pop %v4045
    %v4047 = vmul.f32 1.0, %v4046
    %v4048 = vtanh.pop %v4041
    %v4049 = vmul.f32 %v4047, %v3647
    %4051 = vrot.lane.b32.xlu0 %v4048, 64
    %v4052 = vpop.permute.xlu0 %4051
    %v4054 = vmul.f32 %v4047, %v4052
    %4056 = vrot.lane.b32.xlu0 %v4054, 32
    %v4057 = vpop.permute.xlu0 %4056
    %v4059 = vadd.f32 %v4049, %v4057
    %v4060 = vtanh.pop %v4059
    %4062 = vrot.lane.b32.xlu0 %v4060, 64
    %v4063 = vpop.permute.xlu0 %4062
    %v4065 = vmul.f32 %v4047, %v4063
    %v4066 = vmul.f32 %v3990, %v4040
    %v4067 = vadd.f32 %v3655, %v4066
    %v4068 = vmul.f32 %v4015, %v4065
    %v4069 = vadd.f32 %v3657, %v4068
    %v4070 = vmul.f32 %v3990, %v3990
    %v4071 = vadd.f32 %v3659, %v4070
    %v4072 = vmul.f32 %v4015, %v4015
    %v4073 = vadd.f32 %v3661, %v4072
    %v4074 = vmul.f32 %v4040, %v4040
    %v4075 = vadd.f32 %v3663, %v4074
    %v4076 = vmul.f32 %v4065, %v4065
    %v4077 = vadd.f32 %v3665, %v4076
    %4079 = vrot.lane.b32.xlu0 %v3990, 32
    %v4080 = vpop.permute.xlu0 %4079
    %v4081 = vsel %vm1350, %v4080, 0
    %4083 = vmatprep.subr.mxu0 0.0
    %4084 = vmatpush1.msra.mxu0 %v106
    %4085 = vmatprep.subr.mxu0 0.0
    %4086 = vmatpush1.msra.mxu0 %v107
    %4087 = vmatprep.subr.mxu0 0.0
    %4088 = vmatpush1.msra.mxu0 %v108
    %4089 = vmatprep.subr.mxu0 0.0
    %4090 = vmatpush1.msra.mxu0 %v109
    %4091 = vmatprep.subr.mxu0 0.0
    %4092 = vmatpush1.msra.mxu0 0.0
    %4093 = vmatprep.subr.mxu0 0.0
    %4094 = vmatpush1.msra.mxu0 0.0
    %4095 = vmatprep.subr.mxu0 0.0
    %4096 = vmatpush1.msra.mxu0 0.0
    %4097 = vmatprep.subr.mxu0 0.0
    %4098 = vmatpush1.msra.mxu0 0.0
    %4099 = vmatprep.subr.mxu0 0.0
    %4100 = vmatpush1.msra.mxu0 0.0
    %4101 = vmatprep.subr.mxu0 0.0
    %4102 = vmatpush1.msra.mxu0 0.0
    %4103 = vmatprep.subr.mxu0 0.0
    %4104 = vmatpush1.msra.mxu0 0.0
    %4105 = vmatprep.subr.mxu0 0.0
    %4106 = vmatpush1.msra.mxu0 0.0
    %4107 = vmatprep.subr.mxu0 0.0
    %4108 = vmatpush1.msra.mxu0 0.0
    %4109 = vmatprep.subr.mxu0 0.0
    %4110 = vmatpush1.msra.mxu0 0.0
    %4111 = vmatprep.subr.mxu0 0.0
    %4112 = vmatpush1.msra.mxu0 0.0
    %4113 = vmatprep.subr.mxu0 0.0
    %4114 = vmatpush1.msra.mxu0 0.0
    %4115 = vmatprep.subr.mxu0 0.0
    %4116 = vmatpush1.msra.mxu0 0.0
    %4117 = vmatprep.subr.mxu0 0.0
    %4118 = vmatpush1.msra.mxu0 0.0
    %4119 = vmatprep.subr.mxu0 0.0
    %4120 = vmatpush1.msra.mxu0 0.0
    %4121 = vmatprep.subr.mxu0 0.0
    %4122 = vmatpush1.msra.mxu0 0.0
    %4123 = vmatprep.subr.mxu0 0.0
    %4124 = vmatpush1.msra.mxu0 0.0
    %4125 = vmatprep.subr.mxu0 0.0
    %4126 = vmatpush1.msra.mxu0 0.0
    %4127 = vmatprep.subr.mxu0 0.0
    %4128 = vmatpush1.msra.mxu0 0.0
    %4129 = vmatprep.subr.mxu0 0.0
    %4130 = vmatpush1.msra.mxu0 0.0
    %4131 = vmatprep.subr.mxu0 0.0
    %4132 = vmatpush1.msra.mxu0 0.0
    %4133 = vmatprep.subr.mxu0 0.0
    %4134 = vmatpush1.msra.mxu0 0.0
    %4135 = vmatprep.subr.mxu0 0.0
    %4136 = vmatpush1.msra.mxu0 0.0
    %4137 = vmatprep.subr.mxu0 0.0
    %4138 = vmatpush1.msra.mxu0 0.0
    %4139 = vmatprep.subr.mxu0 0.0
    %4140 = vmatpush1.msra.mxu0 0.0
    %4141 = vmatprep.subr.mxu0 0.0
    %4142 = vmatpush1.msra.mxu0 0.0
    %4143 = vmatprep.subr.mxu0 0.0
    %4144 = vmatpush1.msra.mxu0 0.0
    %4145 = vmatprep.subr.mxu0 0.0
    %4146 = vmatpush1.msra.mxu0 0.0
    %4147 = vmatprep.mubr.f32.mxu0 0.0
    %4148 = vmatmul.mubr.f32.gmra.mrb[0].mxu0 %v4081
    %v4149 = vpop.f32.mrb[0].mxu0
    %v4150 = vadd.f32 0.0, %v4149
    %v4151 = vpop.f32.mrb[0].mxu0
    %4152 = vdwg.mxu0
    %4154 = vrot.lane.b32.xlu0 %v4015, 32
    %v4155 = vpop.permute.xlu0 %4154
    %v4156 = vsel %vm1350, %v4155, 0
    %4158 = vmatprep.subr.mxu0 0.0
    %4159 = vmatpush1.msra.mxu0 %v110
    %4160 = vmatprep.subr.mxu0 0.0
    %4161 = vmatpush1.msra.mxu0 %v111
    %4162 = vmatprep.subr.mxu0 0.0
    %4163 = vmatpush1.msra.mxu0 %v112
    %4164 = vmatprep.subr.mxu0 0.0
    %4165 = vmatpush1.msra.mxu0 %v113
    %4166 = vmatprep.subr.mxu0 0.0
    %4167 = vmatpush1.msra.mxu0 0.0
    %4168 = vmatprep.subr.mxu0 0.0
    %4169 = vmatpush1.msra.mxu0 0.0
    %4170 = vmatprep.subr.mxu0 0.0
    %4171 = vmatpush1.msra.mxu0 0.0
    %4172 = vmatprep.subr.mxu0 0.0
    %4173 = vmatpush1.msra.mxu0 0.0
    %4174 = vmatprep.subr.mxu0 0.0
    %4175 = vmatpush1.msra.mxu0 0.0
    %4176 = vmatprep.subr.mxu0 0.0
    %4177 = vmatpush1.msra.mxu0 0.0
    %4178 = vmatprep.subr.mxu0 0.0
    %4179 = vmatpush1.msra.mxu0 0.0
    %4180 = vmatprep.subr.mxu0 0.0
    %4181 = vmatpush1.msra.mxu0 0.0
    %4182 = vmatprep.subr.mxu0 0.0
    %4183 = vmatpush1.msra.mxu0 0.0
    %4184 = vmatprep.subr.mxu0 0.0
    %4185 = vmatpush1.msra.mxu0 0.0
    %4186 = vmatprep.subr.mxu0 0.0
    %4187 = vmatpush1.msra.mxu0 0.0
    %4188 = vmatprep.subr.mxu0 0.0
    %4189 = vmatpush1.msra.mxu0 0.0
    %4190 = vmatprep.subr.mxu0 0.0
    %4191 = vmatpush1.msra.mxu0 0.0
    %4192 = vmatprep.subr.mxu0 0.0
    %4193 = vmatpush1.msra.mxu0 0.0
    %4194 = vmatprep.subr.mxu0 0.0
    %4195 = vmatpush1.msra.mxu0 0.0
    %4196 = vmatprep.subr.mxu0 0.0
    %4197 = vmatpush1.msra.mxu0 0.0
    %4198 = vmatprep.subr.mxu0 0.0
    %4199 = vmatpush1.msra.mxu0 0.0
    %4200 = vmatprep.subr.mxu0 0.0
    %4201 = vmatpush1.msra.mxu0 0.0
    %4202 = vmatprep.subr.mxu0 0.0
    %4203 = vmatpush1.msra.mxu0 0.0
    %4204 = vmatprep.subr.mxu0 0.0
    %4205 = vmatpush1.msra.mxu0 0.0
    %4206 = vmatprep.subr.mxu0 0.0
    %4207 = vmatpush1.msra.mxu0 0.0
    %4208 = vmatprep.subr.mxu0 0.0
    %4209 = vmatpush1.msra.mxu0 0.0
    %4210 = vmatprep.subr.mxu0 0.0
    %4211 = vmatpush1.msra.mxu0 0.0
    %4212 = vmatprep.subr.mxu0 0.0
    %4213 = vmatpush1.msra.mxu0 0.0
    %4214 = vmatprep.subr.mxu0 0.0
    %4215 = vmatpush1.msra.mxu0 0.0
    %4216 = vmatprep.subr.mxu0 0.0
    %4217 = vmatpush1.msra.mxu0 0.0
    %4218 = vmatprep.subr.mxu0 0.0
    %4219 = vmatpush1.msra.mxu0 0.0
    %4220 = vmatprep.subr.mxu0 0.0
    %4221 = vmatpush1.msra.mxu0 0.0
    %4222 = vmatprep.mubr.f32.mxu0 0.0
    %4223 = vmatmul.mubr.f32.gmra.mrb[0].mxu0 %v4156
    %v4224 = vpop.f32.mrb[0].mxu0
    %v4225 = vadd.f32 0.0, %v4224
    %v4226 = vpop.f32.mrb[0].mxu0
    %4227 = vdwg.mxu0
    %4229 = vrot.lane.b32.xlu0 %v4040, 32
    %v4230 = vpop.permute.xlu0 %4229
    %v4231 = vsel %vm1350, %v4230, 0
    %4233 = vmatprep.subr.mxu0 0.0
    %4234 = vmatpush1.msra.mxu0 %v106
    %4235 = vmatprep.subr.mxu0 0.0
    %4236 = vmatpush1.msra.mxu0 %v107
    %4237 = vmatprep.subr.mxu0 0.0
    %4238 = vmatpush1.msra.mxu0 %v108
    %4239 = vmatprep.subr.mxu0 0.0
    %4240 = vmatpush1.msra.mxu0 %v109
    %4241 = vmatprep.subr.mxu0 0.0
    %4242 = vmatpush1.msra.mxu0 0.0
    %4243 = vmatprep.subr.mxu0 0.0
    %4244 = vmatpush1.msra.mxu0 0.0
    %4245 = vmatprep.subr.mxu0 0.0
    %4246 = vmatpush1.msra.mxu0 0.0
    %4247 = vmatprep.subr.mxu0 0.0
    %4248 = vmatpush1.msra.mxu0 0.0
    %4249 = vmatprep.subr.mxu0 0.0
    %4250 = vmatpush1.msra.mxu0 0.0
    %4251 = vmatprep.subr.mxu0 0.0
    %4252 = vmatpush1.msra.mxu0 0.0
    %4253 = vmatprep.subr.mxu0 0.0
    %4254 = vmatpush1.msra.mxu0 0.0
    %4255 = vmatprep.subr.mxu0 0.0
    %4256 = vmatpush1.msra.mxu0 0.0
    %4257 = vmatprep.subr.mxu0 0.0
    %4258 = vmatpush1.msra.mxu0 0.0
    %4259 = vmatprep.subr.mxu0 0.0
    %4260 = vmatpush1.msra.mxu0 0.0
    %4261 = vmatprep.subr.mxu0 0.0
    %4262 = vmatpush1.msra.mxu0 0.0
    %4263 = vmatprep.subr.mxu0 0.0
    %4264 = vmatpush1.msra.mxu0 0.0
    %4265 = vmatprep.subr.mxu0 0.0
    %4266 = vmatpush1.msra.mxu0 0.0
    %4267 = vmatprep.subr.mxu0 0.0
    %4268 = vmatpush1.msra.mxu0 0.0
    %4269 = vmatprep.subr.mxu0 0.0
    %4270 = vmatpush1.msra.mxu0 0.0
    %4271 = vmatprep.subr.mxu0 0.0
    %4272 = vmatpush1.msra.mxu0 0.0
    %4273 = vmatprep.subr.mxu0 0.0
    %4274 = vmatpush1.msra.mxu0 0.0
    %4275 = vmatprep.subr.mxu0 0.0
    %4276 = vmatpush1.msra.mxu0 0.0
    %4277 = vmatprep.subr.mxu0 0.0
    %4278 = vmatpush1.msra.mxu0 0.0
    %4279 = vmatprep.subr.mxu0 0.0
    %4280 = vmatpush1.msra.mxu0 0.0
    %4281 = vmatprep.subr.mxu0 0.0
    %4282 = vmatpush1.msra.mxu0 0.0
    %4283 = vmatprep.subr.mxu0 0.0
    %4284 = vmatpush1.msra.mxu0 0.0
    %4285 = vmatprep.subr.mxu0 0.0
    %4286 = vmatpush1.msra.mxu0 0.0
    %4287 = vmatprep.subr.mxu0 0.0
    %4288 = vmatpush1.msra.mxu0 0.0
    %4289 = vmatprep.subr.mxu0 0.0
    %4290 = vmatpush1.msra.mxu0 0.0
    %4291 = vmatprep.subr.mxu0 0.0
    %4292 = vmatpush1.msra.mxu0 0.0
    %4293 = vmatprep.subr.mxu0 0.0
    %4294 = vmatpush1.msra.mxu0 0.0
    %4295 = vmatprep.subr.mxu0 0.0
    %4296 = vmatpush1.msra.mxu0 0.0
    %4297 = vmatprep.mubr.f32.mxu0 0.0
    %4298 = vmatmul.mubr.f32.gmra.mrb[0].mxu0 %v4231
    %v4299 = vpop.f32.mrb[0].mxu0
    %v4300 = vadd.f32 0.0, %v4299
    %v4301 = vpop.f32.mrb[0].mxu0
    %4302 = vdwg.mxu0
    %4304 = vrot.lane.b32.xlu0 %v4065, 32
    %v4305 = vpop.permute.xlu0 %4304
    %v4306 = vsel %vm1350, %v4305, 0
    %4308 = vmatprep.subr.mxu0 0.0
    %4309 = vmatpush1.msra.mxu0 %v110
    %4310 = vmatprep.subr.mxu0 0.0
    %4311 = vmatpush1.msra.mxu0 %v111
    %4312 = vmatprep.subr.mxu0 0.0
    %4313 = vmatpush1.msra.mxu0 %v112
    %4314 = vmatprep.subr.mxu0 0.0
    %4315 = vmatpush1.msra.mxu0 %v113
    %4316 = vmatprep.subr.mxu0 0.0
    %4317 = vmatpush1.msra.mxu0 0.0
    %4318 = vmatprep.subr.mxu0 0.0
    %4319 = vmatpush1.msra.mxu0 0.0
    %4320 = vmatprep.subr.mxu0 0.0
    %4321 = vmatpush1.msra.mxu0 0.0
    %4322 = vmatprep.subr.mxu0 0.0
    %4323 = vmatpush1.msra.mxu0 0.0
    %4324 = vmatprep.subr.mxu0 0.0
    %4325 = vmatpush1.msra.mxu0 0.0
    %4326 = vmatprep.subr.mxu0 0.0
    %4327 = vmatpush1.msra.mxu0 0.0
    %4328 = vmatprep.subr.mxu0 0.0
    %4329 = vmatpush1.msra.mxu0 0.0
    %4330 = vmatprep.subr.mxu0 0.0
    %4331 = vmatpush1.msra.mxu0 0.0
    %4332 = vmatprep.subr.mxu0 0.0
    %4333 = vmatpush1.msra.mxu0 0.0
    %4334 = vmatprep.subr.mxu0 0.0
    %4335 = vmatpush1.msra.mxu0 0.0
    %4336 = vmatprep.subr.mxu0 0.0
    %4337 = vmatpush1.msra.mxu0 0.0
    %4338 = vmatprep.subr.mxu0 0.0
    %4339 = vmatpush1.msra.mxu0 0.0
    %4340 = vmatprep.subr.mxu0 0.0
    %4341 = vmatpush1.msra.mxu0 0.0
    %4342 = vmatprep.subr.mxu0 0.0
    %4343 = vmatpush1.msra.mxu0 0.0
    %4344 = vmatprep.subr.mxu0 0.0
    %4345 = vmatpush1.msra.mxu0 0.0
    %4346 = vmatprep.subr.mxu0 0.0
    %4347 = vmatpush1.msra.mxu0 0.0
    %4348 = vmatprep.subr.mxu0 0.0
    %4349 = vmatpush1.msra.mxu0 0.0
    %4350 = vmatprep.subr.mxu0 0.0
    %4351 = vmatpush1.msra.mxu0 0.0
    %4352 = vmatprep.subr.mxu0 0.0
    %4353 = vmatpush1.msra.mxu0 0.0
    %4354 = vmatprep.subr.mxu0 0.0
    %4355 = vmatpush1.msra.mxu0 0.0
    %4356 = vmatprep.subr.mxu0 0.0
    %4357 = vmatpush1.msra.mxu0 0.0
    %4358 = vmatprep.subr.mxu0 0.0
    %4359 = vmatpush1.msra.mxu0 0.0
    %4360 = vmatprep.subr.mxu0 0.0
    %4361 = vmatpush1.msra.mxu0 0.0
    %4362 = vmatprep.subr.mxu0 0.0
    %4363 = vmatpush1.msra.mxu0 0.0
    %4364 = vmatprep.subr.mxu0 0.0
    %4365 = vmatpush1.msra.mxu0 0.0
    %4366 = vmatprep.subr.mxu0 0.0
    %4367 = vmatpush1.msra.mxu0 0.0
    %4368 = vmatprep.subr.mxu0 0.0
    %4369 = vmatpush1.msra.mxu0 0.0
    %4370 = vmatprep.subr.mxu0 0.0
    %4371 = vmatpush1.msra.mxu0 0.0
    %4372 = vmatprep.mubr.f32.mxu0 0.0
    %4373 = vmatmul.mubr.f32.gmra.mrb[0].mxu0 %v4306
    %v4374 = vpop.f32.mrb[0].mxu0
    %v4375 = vadd.f32 0.0, %v4374
    %v4376 = vpop.f32.mrb[0].mxu0
    %4377 = vdwg.mxu0
    %v4378 = vadd.f32 %v730, %v4150
    %v4379 = vsub.f32 0.0, %v4378
    %v4380 = vmul.f32 %v4379, 1.442695
    %v4381 = vpow.pop %v4380
    %v4382 = vadd.f32 %v4381, 1.0
    %v4383 = vrcp.pop %v4382
    %v4384 = vmul.f32 1.0, %v4383
    %v4385 = vtanh.pop %v4378
    %v4386 = vmul.f32 %v4384, %v3984
    %4388 = vrot.lane.b32.xlu0 %v4385, 64
    %v4389 = vpop.permute.xlu0 %4388
    %v4391 = vmul.f32 %v4384, %v4389
    %4393 = vrot.lane.b32.xlu0 %v4391, 32
    %v4394 = vpop.permute.xlu0 %4393
    %v4396 = vadd.f32 %v4386, %v4394
    %v4397 = vtanh.pop %v4396
    %4399 = vrot.lane.b32.xlu0 %v4397, 64
    %v4400 = vpop.permute.xlu0 %4399
    %v4402 = vmul.f32 %v4384, %v4400
    %v4403 = vadd.f32 %v193, %v4225
    %v4404 = vsub.f32 0.0, %v4403
    %v4405 = vmul.f32 %v4404, 1.442695
    %v4406 = vpow.pop %v4405
    %v4407 = vadd.f32 %v4406, 1.0
    %v4408 = vrcp.pop %v4407
    %v4409 = vmul.f32 1.0, %v4408
    %v4410 = vtanh.pop %v4403
    %v4411 = vmul.f32 %v4409, %v4009
    %4413 = vrot.lane.b32.xlu0 %v4410, 64
    %v4414 = vpop.permute.xlu0 %4413
    %v4416 = vmul.f32 %v4409, %v4414
    %4418 = vrot.lane.b32.xlu0 %v4416, 32
    %v4419 = vpop.permute.xlu0 %4418
    %v4421 = vadd.f32 %v4411, %v4419
    %v4422 = vtanh.pop %v4421
    %4424 = vrot.lane.b32.xlu0 %v4422, 64
    %v4425 = vpop.permute.xlu0 %4424
    %v4427 = vmul.f32 %v4409, %v4425
    %v4428 = vadd.f32 %v1346, %v4300
    %v4429 = vsub.f32 0.0, %v4428
    %v4430 = vmul.f32 %v4429, 1.442695
    %v4431 = vpow.pop %v4430
    %v4432 = vadd.f32 %v4431, 1.0
    %v4433 = vrcp.pop %v4432
    %v4434 = vmul.f32 1.0, %v4433
    %v4435 = vtanh.pop %v4428
    %v4436 = vmul.f32 %v4434, %v4034
    %4438 = vrot.lane.b32.xlu0 %v4435, 64
    %v4439 = vpop.permute.xlu0 %4438
    %v4441 = vmul.f32 %v4434, %v4439
    %4443 = vrot.lane.b32.xlu0 %v4441, 32
    %v4444 = vpop.permute.xlu0 %4443
    %v4446 = vadd.f32 %v4436, %v4444
    %v4447 = vtanh.pop %v4446
    %4449 = vrot.lane.b32.xlu0 %v4447, 64
    %v4450 = vpop.permute.xlu0 %4449
    %v4452 = vmul.f32 %v4434, %v4450
    %v4453 = vadd.f32 %v809, %v4375
    %v4454 = vsub.f32 0.0, %v4453
    %v4455 = vmul.f32 %v4454, 1.442695
    %v4456 = vpow.pop %v4455
    %v4457 = vadd.f32 %v4456, 1.0
    %v4458 = vrcp.pop %v4457
    %v4459 = vmul.f32 1.0, %v4458
    %v4460 = vtanh.pop %v4453
    %v4461 = vmul.f32 %v4459, %v4059
    %4463 = vrot.lane.b32.xlu0 %v4460, 64
    %v4464 = vpop.permute.xlu0 %4463
    %v4466 = vmul.f32 %v4459, %v4464
    %4468 = vrot.lane.b32.xlu0 %v4466, 32
    %v4469 = vpop.permute.xlu0 %4468
    %v4471 = vadd.f32 %v4461, %v4469
    %v4472 = vtanh.pop %v4471
    %4474 = vrot.lane.b32.xlu0 %v4472, 64
    %v4475 = vpop.permute.xlu0 %4474
    %v4477 = vmul.f32 %v4459, %v4475
    %v4478 = vmul.f32 %v4402, %v4452
    %v4479 = vadd.f32 %v4067, %v4478
    %v4480 = vmul.f32 %v4427, %v4477
    %v4481 = vadd.f32 %v4069, %v4480
    %v4482 = vmul.f32 %v4402, %v4402
    %v4483 = vadd.f32 %v4071, %v4482
    %v4484 = vmul.f32 %v4427, %v4427
    %v4485 = vadd.f32 %v4073, %v4484
    %v4486 = vmul.f32 %v4452, %v4452
    %v4487 = vadd.f32 %v4075, %v4486
    %v4488 = vmul.f32 %v4477, %v4477
    %v4489 = vadd.f32 %v4077, %v4488
    %4491 = vrot.lane.b32.xlu0 %v4479, 32
    %v4492 = vpop.permute.xlu0 %4491
    %4495 = vrot.lane.b32.xlu0 %v4481, 64
    %v4496 = vpop.permute.xlu0 %4495
    %v4498 = vsel %vm1350, %v4492, %v4496
    %4500 = vrot.lane.b32.xlu0 %v4483, 32
    %v4501 = vpop.permute.xlu0 %4500
    %4504 = vrot.lane.b32.xlu0 %v4485, 64
    %v4505 = vpop.permute.xlu0 %4504
    %v4507 = vsel %vm1350, %v4501, %v4505
    %4509 = vrot.lane.b32.xlu0 %v4487, 32
    %v4510 = vpop.permute.xlu0 %4509
    %4513 = vrot.lane.b32.xlu0 %v4489, 64
    %v4514 = vpop.permute.xlu0 %4513
    %v4516 = vsel %vm1350, %v4510, %v4514
    %v4517 = vmul.f32 %v4507, %v4516
    %v4518 = vmax.f32 %v4517, 1e-16
    %v4519 = vrsqrt.pop %v4518
    %v4520 = vmul.f32 %v4498, %v4519
    %v4521 = vld [vmem:[%s5] sm:$0xff]
    %v4522 = vld [vmem:[%s5 + $0x8] sm:$0xff]
    %v4523 = vld [vmem:[%s5 + $0x10] sm:$0xff]
    %v4524 = vld [vmem:[%s5 + $0x18] sm:$0xff]
    %v4525 = vld [vmem:[%s5 + $0x20] sm:$0xff]
    %v4526 = vld [vmem:[%s5 + $0x28] sm:$0xff]
    %v4527 = vld [vmem:[%s5 + $0x30] sm:$0xff]
    %v4528 = vld [vmem:[%s5 + $0x38] sm:$0xff]
    %v4529 = vld [vmem:[%s6] sm:$0x1]
    %v4531 = vlaneseq
    %v4532 = vshrl.u32 %v4531, 7
    %v4533 = vsub.s32 0, %v4532
    %v4534 = vrot.slane %v4529, %v4533
    %vm4536 = vcmask 523264
    %v4538 = vsel %vm4536, %v4520, 0
    %4540 = vmatprep.subr.mxu0 0.0
    %4541 = vmatpush1.msra.mxu0 %v4521
    %4542 = vmatprep.subr.mxu0 0.0
    %4543 = vmatpush1.msra.mxu0 %v4522
    %4544 = vmatprep.subr.mxu0 0.0
    %4545 = vmatpush1.msra.mxu0 %v4523
    %4546 = vmatprep.subr.mxu0 0.0
    %4547 = vmatpush1.msra.mxu0 %v4524
    %4548 = vmatprep.subr.mxu0 0.0
    %4549 = vmatpush1.msra.mxu0 %v4525
    %4550 = vmatprep.subr.mxu0 0.0
    %4551 = vmatpush1.msra.mxu0 %v4526
    %4552 = vmatprep.subr.mxu0 0.0
    %4553 = vmatpush1.msra.mxu0 %v4527
    %4554 = vmatprep.subr.mxu0 0.0
    %4555 = vmatpush1.msra.mxu0 %v4528
    %4556 = vmatprep.subr.mxu0 0.0
    %4557 = vmatpush1.msra.mxu0 0.0
    %4558 = vmatprep.subr.mxu0 0.0
    %4559 = vmatpush1.msra.mxu0 0.0
    %4560 = vmatprep.subr.mxu0 0.0
    %4561 = vmatpush1.msra.mxu0 0.0
    %4562 = vmatprep.subr.mxu0 0.0
    %4563 = vmatpush1.msra.mxu0 0.0
    %4564 = vmatprep.subr.mxu0 0.0
    %4565 = vmatpush1.msra.mxu0 0.0
    %4566 = vmatprep.subr.mxu0 0.0
    %4567 = vmatpush1.msra.mxu0 0.0
    %4568 = vmatprep.subr.mxu0 0.0
    %4569 = vmatpush1.msra.mxu0 0.0
    %4570 = vmatprep.subr.mxu0 0.0
    %4571 = vmatpush1.msra.mxu0 0.0
    %4572 = vmatprep.subr.mxu0 0.0
    %4573 = vmatpush1.msra.mxu0 0.0
    %4574 = vmatprep.subr.mxu0 0.0
    %4575 = vmatpush1.msra.mxu0 0.0
    %4576 = vmatprep.subr.mxu0 0.0
    %4577 = vmatpush1.msra.mxu0 0.0
    %4578 = vmatprep.subr.mxu0 0.0
    %4579 = vmatpush1.msra.mxu0 0.0
    %4580 = vmatprep.subr.mxu0 0.0
    %4581 = vmatpush1.msra.mxu0 0.0
    %4582 = vmatprep.subr.mxu0 0.0
    %4583 = vmatpush1.msra.mxu0 0.0
    %4584 = vmatprep.subr.mxu0 0.0
    %4585 = vmatpush1.msra.mxu0 0.0
    %4586 = vmatprep.subr.mxu0 0.0
    %4587 = vmatpush1.msra.mxu0 0.0
    %4588 = vmatprep.subr.mxu0 0.0
    %4589 = vmatpush1.msra.mxu0 0.0
    %4590 = vmatprep.subr.mxu0 0.0
    %4591 = vmatpush1.msra.mxu0 0.0
    %4592 = vmatprep.subr.mxu0 0.0
    %4593 = vmatpush1.msra.mxu0 0.0
    %4594 = vmatprep.subr.mxu0 0.0
    %4595 = vmatpush1.msra.mxu0 0.0
    %4596 = vmatprep.subr.mxu0 0.0
    %4597 = vmatpush1.msra.mxu0 0.0
    %4598 = vmatprep.subr.mxu0 0.0
    %4599 = vmatpush1.msra.mxu0 0.0
    %4600 = vmatprep.subr.mxu0 0.0
    %4601 = vmatpush1.msra.mxu0 0.0
    %4602 = vmatprep.subr.mxu0 0.0
    %4603 = vmatpush1.msra.mxu0 0.0
    %4604 = vmatprep.mubr.f32.mxu0 0.0
    %4605 = vmatmul.mubr.f32.gmra.mrb[0].mxu0 %v4538
    %v4606 = vpop.f32.mrb[0].mxu0
    %v4607 = vadd.f32 %v4534, %v4606
    %v4608 = vpop.f32.mrb[0].mxu0
    %4609 = vdwg.mxu0
    %v4610 = vld [vmem:[%s7] sm:$0xff]
    %v4611 = vld [vmem:[%s7 + $0x8] sm:$0xff]
    %v4612 = vld [vmem:[%s7 + $0x10] sm:$0xff]
    %v4613 = vld [vmem:[%s7 + $0x18] sm:$0xff]
    %v4614 = vld [vmem:[%s7 + $0x20] sm:$0xff]
    %v4615 = vld [vmem:[%s7 + $0x28] sm:$0xff]
    %v4616 = vld [vmem:[%s7 + $0x30] sm:$0xff]
    %v4617 = vld [vmem:[%s7 + $0x38] sm:$0xff]
    %v4618 = vld [vmem:[%s8] sm:$0x1]
    %v4620 = vlaneseq
    %v4621 = vshrl.u32 %v4620, 7
    %v4622 = vsub.s32 0, %v4621
    %v4623 = vrot.slane %v4618, %v4622
    %v4626 = vsel %vm4536, %v4607, 0
    %4628 = vmatprep.subr.mxu0 0.0
    %4629 = vmatpush1.msra.mxu0 %v4610
    %4630 = vmatprep.subr.mxu0 0.0
    %4631 = vmatpush1.msra.mxu0 %v4611
    %4632 = vmatprep.subr.mxu0 0.0
    %4633 = vmatpush1.msra.mxu0 %v4612
    %4634 = vmatprep.subr.mxu0 0.0
    %4635 = vmatpush1.msra.mxu0 %v4613
    %4636 = vmatprep.subr.mxu0 0.0
    %4637 = vmatpush1.msra.mxu0 %v4614
    %4638 = vmatprep.subr.mxu0 0.0
    %4639 = vmatpush1.msra.mxu0 %v4615
    %4640 = vmatprep.subr.mxu0 0.0
    %4641 = vmatpush1.msra.mxu0 %v4616
    %4642 = vmatprep.subr.mxu0 0.0
    %4643 = vmatpush1.msra.mxu0 %v4617
    %4644 = vmatprep.subr.mxu0 0.0
    %4645 = vmatpush1.msra.mxu0 0.0
    %4646 = vmatprep.subr.mxu0 0.0
    %4647 = vmatpush1.msra.mxu0 0.0
    %4648 = vmatprep.subr.mxu0 0.0
    %4649 = vmatpush1.msra.mxu0 0.0
    %4650 = vmatprep.subr.mxu0 0.0
    %4651 = vmatpush1.msra.mxu0 0.0
    %4652 = vmatprep.subr.mxu0 0.0
    %4653 = vmatpush1.msra.mxu0 0.0
    %4654 = vmatprep.subr.mxu0 0.0
    %4655 = vmatpush1.msra.mxu0 0.0
    %4656 = vmatprep.subr.mxu0 0.0
    %4657 = vmatpush1.msra.mxu0 0.0
    %4658 = vmatprep.subr.mxu0 0.0
    %4659 = vmatpush1.msra.mxu0 0.0
    %4660 = vmatprep.subr.mxu0 0.0
    %4661 = vmatpush1.msra.mxu0 0.0
    %4662 = vmatprep.subr.mxu0 0.0
    %4663 = vmatpush1.msra.mxu0 0.0
    %4664 = vmatprep.subr.mxu0 0.0
    %4665 = vmatpush1.msra.mxu0 0.0
    %4666 = vmatprep.subr.mxu0 0.0
    %4667 = vmatpush1.msra.mxu0 0.0
    %4668 = vmatprep.subr.mxu0 0.0
    %4669 = vmatpush1.msra.mxu0 0.0
    %4670 = vmatprep.subr.mxu0 0.0
    %4671 = vmatpush1.msra.mxu0 0.0
    %4672 = vmatprep.subr.mxu0 0.0
    %4673 = vmatpush1.msra.mxu0 0.0
    %4674 = vmatprep.subr.mxu0 0.0
    %4675 = vmatpush1.msra.mxu0 0.0
    %4676 = vmatprep.subr.mxu0 0.0
    %4677 = vmatpush1.msra.mxu0 0.0
    %4678 = vmatprep.subr.mxu0 0.0
    %4679 = vmatpush1.msra.mxu0 0.0
    %4680 = vmatprep.subr.mxu0 0.0
    %4681 = vmatpush1.msra.mxu0 0.0
    %4682 = vmatprep.subr.mxu0 0.0
    %4683 = vmatpush1.msra.mxu0 0.0
    %4684 = vmatprep.subr.mxu0 0.0
    %4685 = vmatpush1.msra.mxu0 0.0
    %4686 = vmatprep.subr.mxu0 0.0
    %4687 = vmatpush1.msra.mxu0 0.0
    %4688 = vmatprep.subr.mxu0 0.0
    %4689 = vmatpush1.msra.mxu0 0.0
    %4690 = vmatprep.subr.mxu0 0.0
    %4691 = vmatpush1.msra.mxu0 0.0
    %4692 = vmatprep.mubr.f32.mxu0 0.0
    %4693 = vmatmul.mubr.f32.gmra.mrb[0].mxu0 %v4626
    %v4694 = vpop.f32.mrb[0].mxu0
    %v4695 = vadd.f32 %v4623, %v4694
    %v4696 = vpop.f32.mrb[0].mxu0
    %4697 = vdwg.mxu0
    %v4698 = vsub.f32 0.0, %v4695
    %v4699 = vmul.f32 %v4698, 1.442695
    %v4700 = vpow.pop %v4699
    %v4701 = vadd.f32 %v4700, 1.0
    %v4702 = vrcp.pop %v4701
    %v4703 = vmul.f32 1.0, %v4702
    %vm4704 = vcmask 17408
    %4705 = vst.msk [vmem:[#allocation8] sm:$0x3] %vm4704, %v4703
    // Predicated region
    $region50: #{lstm_qa_forward.1} parent=1 // pred_check
      _
    $region51: #{lstm_qa_forward.1} parent=1 // pred_check_branch
      %4707 = sbr.rel (0) target = $region53
    $region52: #{lstm_qa_forward.1} parent=1 // pred_region
      %s4709 = ssub.s32 32, 32
      %4710 = vsyncadd [#allocation4], %s4709
      %s4712 = sshll.u32 [#allocation8], 4
      %s4713 = int_to_ptr.vmem [resolvable:$true] %s4712
      %4715 = dma.vmem_to_hbm [thread:$0]  %s4713, 32, %s9, [#allocation4]
    $region53: #{lstm_qa_forward.1} parent=1 // pred_fallthru
      _
    // Predicated region
    $region54: #{lstm_qa_forward.1} parent=1 // pred_check
      _
    $region55: #{lstm_qa_forward.1} parent=1 // pred_check_branch
      %4717 = sbr.rel (0) target = $region57
    $region56: #{lstm_qa_forward.1} parent=1 // pred_region
      %4718 = dma.done [#allocation4], 32
    $region57: #{lstm_qa_forward.1} parent=1 // pred_fallthru
      _
    %4719 = vsyncpa [#allocation3], 1
    %4720 = vsyncpa [#allocation6], 1
    %4721 = vsyncpa [#allocation4], 1

</llo_original>
